<compile_context>
chip_gen: v5e
topology: v5e:2x2
jax: 0.10.0
libtpu: 0.0.40
codegen_flags: <defaults>
</compile_context>

<pallas_src>
import math
import functools

import jax
import jax.numpy as jnp
from jax.experimental import pallas as pl
from jax.experimental.pallas import tpu as pltpu


MASK_NEG = -1e9   # finite "-inf" for additive attention masks


# ------------------------------ helpers -------------------------------------

def _row_tile(m):
    """Largest row tile (multiple of 8, <=256) dividing m, else full extent.

    Capped at 256 so the fused FFN kernel (resident W1+W2 + [tm, F] f32
    intermediate) stays inside v7x's 64 MiB VMEM at realistic E/F.
    """
    for t in (256, 128, 64, 32, 16, 8):
        if m % t == 0:
            return t
    return m


def _col_tile(n):
    """Lane-dense output tile (multiple of 128) dividing n, else full extent.

    256 matches the 256-wide MXU on v6e/v7x (also fine on v5e's 128-wide MXU).
    TODO(synk): chip-dispatch (128 on v5e) via pltpu.get_tpu_info().
    """
    for t in (256, 128):
        if n % t == 0:
            return t
    return n


def _cparams(*sem):
    # vmem_limit_bytes raises v5e's 16 MiB scoped default; 64 MiB is <= the
    # physical VMEM of every generation (v7x: 64 MiB per TensorCore).
    return pltpu.CompilerParams(dimension_semantics=sem,
                                vmem_limit_bytes=64 * 1024 * 1024)


# ----------------------------- Pallas kernels -------------------------------

def _linear_kernel(x_ref, w_ref, b_ref, o_ref):
    o_ref[...] = (jnp.dot(x_ref[...], w_ref[...],
                          preferred_element_type=jnp.float32)
                  + b_ref[...]).astype(o_ref.dtype)


def linear_pallas(x, w, b, out_dtype=jnp.bfloat16):
    # x: [M, K] (any float) -> bf16, w: [K, N] bf16, b: [N] f32 -> [M, N].
    # Tiled over rows AND output columns (lane-dense tn) so the vocab head
    # never has to hold the whole [E, V] weight in VMEM.
    # TODO(synk): add a K grid axis + VMEM accumulator for very large K.
    M, K = x.shape
    N = w.shape[1]
    tm, tn = _row_tile(M), _col_tile(N)
    return pl.pallas_call(
        _linear_kernel,
        grid=(M // tm, N // tn),
        in_specs=[pl.BlockSpec((tm, K), lambda i, j: (i, 0)),
                  pl.BlockSpec((K, tn), lambda i, j: (0, j)),
                  pl.BlockSpec((1, tn), lambda i, j: (0, j))],
        out_specs=pl.BlockSpec((tm, tn), lambda i, j: (i, j)),
        out_shape=jax.ShapeDtypeStruct((M, N), out_dtype),
        compiler_params=_cparams("parallel", "parallel"),
    )(x.astype(jnp.bfloat16), w.astype(jnp.bfloat16),
      b.reshape(1, N).astype(jnp.float32))


def _ffn_ln_kernel(x_ref, w1_ref, b1_ref, w2_ref, b2_ref, g_ref, b_ref, o_ref):
    # LayerNorm(x + W2 @ relu(W1 @ x + b1) + b2)   (Dropout = identity)
    x = x_ref[...]                                               # bf16 [tm, E]
    h = jnp.dot(x, w1_ref[...], preferred_element_type=jnp.float32) + b1_ref[...]
    h = jnp.maximum(h, 0.0)
    y = jnp.dot(h.astype(x.dtype), w2_ref[...],
                preferred_element_type=jnp.float32) + b2_ref[...]
    z = x.astype(jnp.float32) + y
    mu = jnp.mean(z, axis=-1, keepdims=True)
    var = jnp.mean((z - mu) ** 2, axis=-1, keepdims=True)
    o_ref[...] = ((z - mu) * jax.lax.rsqrt(var + 1e-5) * g_ref[...]
                  + b_ref[...]).astype(o_ref.dtype)


def ffn_ln_pallas(x, w1, b1, w2, b2, gamma, beta):
    # TODO(synk): at realistic E/F on v7x, add an F grid axis + VMEM
    # accumulator (or pipeline_mode=pl.Buffered(1) on the constant-index
    # weight specs) instead of keeping both weights fully resident.
    M, E = x.shape
    F = w1.shape[1]
    tm = _row_tile(M)
    return pl.pallas_call(
        _ffn_ln_kernel,
        grid=(M // tm,),
        in_specs=[pl.BlockSpec((tm, E), lambda i: (i, 0)),
                  pl.BlockSpec((E, F), lambda i: (0, 0)),
                  pl.BlockSpec((1, F), lambda i: (0, 0)),
                  pl.BlockSpec((F, E), lambda i: (0, 0)),
                  pl.BlockSpec((1, E), lambda i: (0, 0)),
                  pl.BlockSpec((1, E), lambda i: (0, 0)),
                  pl.BlockSpec((1, E), lambda i: (0, 0))],
        out_specs=pl.BlockSpec((tm, E), lambda i: (i, 0)),
        out_shape=jax.ShapeDtypeStruct((M, E), jnp.bfloat16),
        compiler_params=_cparams("parallel"),
    )(x.astype(jnp.bfloat16), w1, b1.reshape(1, F).astype(jnp.float32),
      w2, b2.reshape(1, E).astype(jnp.float32),
      gamma.reshape(1, E), beta.reshape(1, E))


def _posemb_kernel(x_ref, pe_ref, o_ref, *, scale):
    o_ref[0] = (x_ref[0] * scale + pe_ref[...]).astype(o_ref.dtype)


def posemb_pallas(x, pe, scale):
    # x: [B, L, E] f32 (embedding gather); pe: [L, E] shared via index_map.
    # TODO(synk): for B == 1 add a row-block axis so v7x's 2 TCs both work.
    B, L, E = x.shape
    return pl.pallas_call(
        functools.partial(_posemb_kernel, scale=scale),
        grid=(B,),
        in_specs=[pl.BlockSpec((1, L, E), lambda b: (b, 0, 0)),
                  pl.BlockSpec((L, E), lambda b: (0, 0))],
        out_specs=pl.BlockSpec((1, L, E), lambda b: (b, 0, 0)),
        out_shape=jax.ShapeDtypeStruct((B, L, E), jnp.bfloat16),
        compiler_params=_cparams("parallel"),
    )(x.astype(jnp.float32), pe.astype(jnp.float32))


def _attn_core(q, k, v, bias, wo_ref, bo, resid, g, b, scale, out_dtype):
    """Heads-batched attention fused with out_proj + residual + LayerNorm.

    q: [H, Lq, Dh], k/v: [H, S, Dh] (bf16); bias: [Lq, S] f32 additive or None;
    wo_ref: [H, Dh, E] bf16 (out_proj weight, torch head-concat row order);
    bo/g/b: [1, E] f32; resid: [Lq, E] bf16.  Returns [Lq, E] out_dtype.
    """
    # scores + softmax, batched over heads in a single einsum (MXU batched dot)
    s = jnp.einsum('hqd,hkd->hqk', q, k,
                   preferred_element_type=jnp.float32) * scale      # [H,Lq,S]
    if bias is not None:
        s = s + bias[None, :, :]
    m = jnp.max(s, axis=-1, keepdims=True)
    p = jnp.exp(s - m)
    inv = pl.reciprocal(jnp.sum(p, axis=-1, keepdims=True), approx=True)
    p = (p * inv).astype(q.dtype)
    pv = jnp.einsum('hqk,hkd->hqd', p, v,
                    preferred_element_type=jnp.float32)             # [H,Lq,Dh]
    # fused out_proj: accumulate (P @ V_h) @ W_out[h] into one [Lq, E] f32
    # accumulator — no head-concat relayout, no HBM round trip.
    nh = wo_ref.shape[0]
    acc = jnp.dot(pv[0].astype(q.dtype), wo_ref[0],
                  preferred_element_type=jnp.float32)
    for h in range(1, nh):
        acc = acc + jnp.dot(pv[h].astype(q.dtype), wo_ref[h],
                            preferred_element_type=jnp.float32)
    # fused residual + LayerNorm (eps = 1e-5, torch default), all f32.
    z = resid.astype(jnp.float32) + acc + bo
    mu = jnp.mean(z, axis=-1, keepdims=True)
    var = jnp.mean((z - mu) ** 2, axis=-1, keepdims=True)
    return ((z - mu) * jax.lax.rsqrt(var + 1e-5) * g + b).astype(out_dtype)


def _self_attn_kernel(q_ref, k_ref, v_ref, x_ref, m_ref, pad_ref,
                      wo_ref, bo_ref, g_ref, b_ref, o_ref, *, scale):
    bias = m_ref[...] + pad_ref[0]                 # [L, L] + [1, L] -> [L, L]
    o_ref[0] = _attn_core(q_ref[0], k_ref[0], v_ref[0], bias, wo_ref,
                          bo_ref[...], x_ref[0], g_ref[...], b_ref[...],
                          scale, o_ref.dtype)


def _cross_attn_kernel(q_ref, k_ref, v_ref, x_ref,
                       wo_ref, bo_ref, g_ref, b_ref, o_ref, *, scale):
    o_ref[0] = _attn_core(q_ref[0], k_ref[0], v_ref[0], None, wo_ref,
                          bo_ref[...], x_ref[0], g_ref[...], b_ref[...],
                          scale, o_ref.dtype)


def self_attention_pallas(q, k, v, x, trg_mask, pad_bias, w_out, b_out, g, b):
    # q/k/v: [B, H, L, Dh] bf16; x (residual): [B, L, E] bf16;
    # trg_mask: [L, L] f32; pad_bias: [B, 1, L] f32 additive.
    B, H, L, Dh = q.shape
    E = H * Dh
    scale = 1.0 / math.sqrt(Dh)
    return pl.pallas_call(
        functools.partial(_self_attn_kernel, scale=scale),
        grid=(B,),
        in_specs=[pl.BlockSpec((1, H, L, Dh), lambda i: (i, 0, 0, 0)),
                  pl.BlockSpec((1, H, L, Dh), lambda i: (i, 0, 0, 0)),
                  pl.BlockSpec((1, H, L, Dh), lambda i: (i, 0, 0, 0)),
                  pl.BlockSpec((1, L, E), lambda i: (i, 0, 0)),
                  pl.BlockSpec((L, L), lambda i: (0, 0)),
                  pl.BlockSpec((1, 1, L), lambda i: (i, 0, 0)),
                  pl.BlockSpec((H, Dh, E), lambda i: (0, 0, 0)),
                  pl.BlockSpec((1, E), lambda i: (0, 0)),
                  pl.BlockSpec((1, E), lambda i: (0, 0)),
                  pl.BlockSpec((1, E), lambda i: (0, 0))],
        out_specs=pl.BlockSpec((1, L, E), lambda i: (i, 0, 0)),
        out_shape=jax.ShapeDtypeStruct((B, L, E), jnp.bfloat16),
        compiler_params=_cparams("parallel"),
    )(q, k, v, x, trg_mask.astype(jnp.float32), pad_bias,
      w_out.reshape(H, Dh, E), b_out.reshape(1, E).astype(jnp.float32),
      g.reshape(1, E), b.reshape(1, E))


def cross_attention_pallas(q, k, v, x, w_out, b_out, g, b):
    # q: [B, H, L, Dh]; k/v: [B, H, S, Dh]; no masks (matches torch module).
    B, H, L, Dh = q.shape
    S = k.shape[2]
    E = H * Dh
    scale = 1.0 / math.sqrt(Dh)
    return pl.pallas_call(
        functools.partial(_cross_attn_kernel, scale=scale),
        grid=(B,),
        in_specs=[pl.BlockSpec((1, H, L, Dh), lambda i: (i, 0, 0, 0)),
                  pl.BlockSpec((1, H, S, Dh), lambda i: (i, 0, 0, 0)),
                  pl.BlockSpec((1, H, S, Dh), lambda i: (i, 0, 0, 0)),
                  pl.BlockSpec((1, L, E), lambda i: (i, 0, 0)),
                  pl.BlockSpec((H, Dh, E), lambda i: (0, 0, 0)),
                  pl.BlockSpec((1, E), lambda i: (0, 0)),
                  pl.BlockSpec((1, E), lambda i: (0, 0)),
                  pl.BlockSpec((1, E), lambda i: (0, 0))],
        out_specs=pl.BlockSpec((1, L, E), lambda i: (i, 0, 0)),
        out_shape=jax.ShapeDtypeStruct((B, L, E), jnp.bfloat16),
        compiler_params=_cparams("parallel"),
    )(q, k, v, x,
      w_out.reshape(H, Dh, E), b_out.reshape(1, E).astype(jnp.float32),
      g.reshape(1, E), b.reshape(1, E))


# ------------------------- model building blocks ----------------------------

def decoder_layer(p, x, enc, trg_mask, pad_bias, n_heads):
    # x: [B, L, E] bf16 (decoder stream), enc: [B, S, E] bf16 (encoder output)
    B, L, E = x.shape
    S = enc.shape[1]
    H, Dh = n_heads, E // n_heads

    # --- masked self-attention: fused packed QKV projection (bf16 out) ---
    qkv = linear_pallas(x.reshape(B * L, E), p['self_in_w'], p['self_in_b'])
    qkv = qkv.reshape(B, L, 3, H, Dh).transpose(2, 0, 3, 1, 4)  # [3,B,H,L,Dh]
    # attention + out_proj + residual + LayerNorm fused in one kernel
    x = self_attention_pallas(qkv[0], qkv[1], qkv[2], x, trg_mask, pad_bias,
                              p['self_out_w'], p['self_out_b'],
                              p['ln1_g'], p['ln1_b'])

    # --- cross-attention: Q from decoder, fused packed KV of encoder ---
    q2 = linear_pallas(x.reshape(B * L, E), p['cross_q_w'], p['cross_q_b'])
    q2 = q2.reshape(B, L, H, Dh).transpose(0, 2, 1, 3)          # [B,H,L,Dh]
    kv = linear_pallas(enc.reshape(B * S, E), p['cross_kv_w'], p['cross_kv_b'])
    kv = kv.reshape(B, S, 2, H, Dh).transpose(2, 0, 3, 1, 4)    # [2,B,H,S,Dh]
    x = cross_attention_pallas(q2, kv[0], kv[1], x,
                               p['cross_out_w'], p['cross_out_b'],
                               p['ln2_g'], p['ln2_b'])

    # --- FFN + residual + LN fused in one kernel ---
    x2d = ffn_ln_pallas(x.reshape(B * L, E), p['ff_w1'], p['ff_b1'],
                        p['ff_w2'], p['ff_b2'], p['ln3_g'], p['ln3_b'])
    return x2d.reshape(B, L, E)


def visual_transformer_forward(params, img, tgt, trg_mask, padding_masks,
                               n_heads, patch):
    B, L = tgt.shape
    E = params['word_emb'].shape[1]

    # additive masks with a finite large-negative (never -inf): causal [L, L]
    # shared by all batches, plus a tiny per-batch key-padding bias [B, 1, L].
    trg_mask = jnp.maximum(trg_mask.astype(jnp.float32), MASK_NEG)
    pad_bias = jnp.where(padding_masks, MASK_NEG, 0.0).astype(jnp.float32)[:, None, :]

    # --- word embedding (padding_idx=0 row is zero) + positional embedding ---
    emb = params['word_emb'][tgt]                                 # [B, L, E] f32
    x = posemb_pallas(emb, params['pe'][:L], math.sqrt(E))        # [B, L, E] bf16
    # TODO(synk): fold the scale+PE add into the first layer's QKV projection.

    # --- encoder ---
    # TODO(synk): timm pretrained encoder replaced by a deterministic
    # patch-embedding conv (im2col + Pallas matmul) producing [B, S2, E].
    Bi, C, H, W = img.shape
    ph, pw = H // patch, W // patch
    cols = (img.reshape(Bi, C, ph, patch, pw, patch)
               .transpose(0, 2, 4, 1, 3, 5)
               .reshape(Bi * ph * pw, C * patch * patch))
    enc = linear_pallas(cols, params['patch_w'],
                        params['patch_b']).reshape(Bi, ph * pw, E)  # bf16

    # --- decoder (batch-first; numerically identical to torch seq-first) ---
    for lp in params['layers']:
        x = decoder_layer(lp, x, enc, trg_mask, pad_bias, n_heads)

    # --- final vocab projection (lane-dense N tiles) + permute -> [B, V, L] ---
    out = linear_pallas(x.reshape(B * L, E), params['lin_w'], params['lin_b'],
                        out_dtype=jnp.float32)
    V = params['lin_w'].shape[1]
    return out.reshape(B, L, V).transpose(0, 2, 1)


# ------------------------------ params init ---------------------------------

def init_params(key, *, E, V, n_layers, ffn, C, patch, max_len):
    keys = jax.random.split(key, 8 + n_layers)

    def nrm(k, shape, s=0.02, dtype=jnp.bfloat16):
        return (jax.random.normal(k, shape, jnp.float32) * s).astype(dtype)

    word = nrm(keys[0], (V, E), 0.1, jnp.float32).at[0].set(0.0)  # padding_idx=0

    pos = jnp.arange(max_len, dtype=jnp.float32)[:, None]
    div = jnp.exp(jnp.arange(0, E, 2, dtype=jnp.float32)
                  * (-math.log(10000.0) / E))
    pe = jnp.zeros((max_len, E), jnp.float32)
    pe = pe.at[:, 0::2].set(jnp.sin(pos * div)).at[:, 1::2].set(jnp.cos(pos * div))

    layers = []
    for li in range(n_layers):
        lk = jax.random.split(keys[8 + li], 7)
        layers.append(dict(
            # self-attn: packed [Wq|Wk|Wv] in-proj (bf16 weights, f32 biases)
            self_in_w=nrm(lk[0], (E, 3 * E)),
            self_in_b=jnp.zeros((3 * E,), jnp.float32),
            self_out_w=nrm(lk[1], (E, E)),
            self_out_b=jnp.zeros((E,), jnp.float32),
            # cross-attn: Q projection split from packed [Wk|Wv]
            cross_q_w=nrm(lk[2], (E, E)),
            cross_q_b=jnp.zeros((E,), jnp.float32),
            cross_kv_w=nrm(lk[3], (E, 2 * E)),
            cross_kv_b=jnp.zeros((2 * E,), jnp.float32),
            cross_out_w=nrm(lk[4], (E, E)),
            cross_out_b=jnp.zeros((E,), jnp.float32),
            ln1_g=jnp.ones((E,), jnp.float32), ln1_b=jnp.zeros((E,), jnp.float32),
            ln2_g=jnp.ones((E,), jnp.float32), ln2_b=jnp.zeros((E,), jnp.float32),
            ln3_g=jnp.ones((E,), jnp.float32), ln3_b=jnp.zeros((E,), jnp.float32),
            ff_w1=nrm(lk[5], (E, ffn)), ff_b1=jnp.zeros((ffn,), jnp.float32),
            ff_w2=nrm(lk[6], (ffn, E)), ff_b2=jnp.zeros((E,), jnp.float32),
        ))

    return dict(
        word_emb=word,
        pe=pe,
        patch_w=nrm(keys[1], (C * patch * patch, E), 0.05),
        patch_b=jnp.zeros((E,), jnp.float32),
        lin_w=nrm(keys[2], (E, V), 0.05),
        lin_b=jnp.zeros((V,), jnp.float32),
        layers=layers,
    )


# ---------------------------------- main -------------------------------------

if __name__ == "__main__":
    B, C, HW = 2, 3, 16          # img: [B, C, H, W] (NCHW)
    E, heads, n_layers = 32, 4, 2
    V, L, patch = 50, 8, 4       # vocab, seq_length, patch size -> S2 = 16

    key = jax.random.PRNGKey(0)
    kp, ki, kt = jax.random.split(key, 3)

    params = init_params(kp, E=E, V=V, n_layers=n_layers, ffn=4 * E,
                         C=C, patch=patch, max_len=L)

    img = jax.random.normal(ki, (B, C, HW, HW), jnp.float32)
    tgt = jax.random.randint(kt, (B, L), 1, V).astype(jnp.int32)
    tgt = tgt.at[1, -1].set(0)                       # one padded token
    trg_mask = jnp.triu(jnp.full((L, L), -jnp.inf, jnp.float32), k=1)
    padding_masks = (tgt == 0)                       # [B, L] bool, True = pad

    fwd = jax.jit(visual_transformer_forward,
                  static_argnames=("n_heads", "patch"))
    out = fwd(params, img, tgt, trg_mask, padding_masks,
              n_heads=heads, patch=patch)
    out = jax.block_until_ready(out)

    assert out.shape == (B, V, L), out.shape
    assert bool(jnp.all(jnp.isfinite(out)))
    print("KERNEL_OK")
</pallas_src>

<mosaic_0001>
module attributes {stable_mosaic.version = 11 : i64} {
  func.func @_self_attn_kernel(%arg0: i32, %arg1: memref<1x4x8x8xbf16, #tpu.memory_space<vmem>>, %arg2: memref<1x4x8x8xbf16, #tpu.memory_space<vmem>>, %arg3: memref<1x4x8x8xbf16, #tpu.memory_space<vmem>>, %arg4: memref<1x8x32xbf16, #tpu.memory_space<vmem>>, %arg5: memref<8x8xf32, #tpu.memory_space<vmem>>, %arg6: memref<1x1x8xf32, #tpu.memory_space<vmem>>, %arg7: memref<4x8x32xbf16, #tpu.memory_space<vmem>>, %arg8: memref<1x32xf32, #tpu.memory_space<vmem>>, %arg9: memref<1x32xf32, #tpu.memory_space<vmem>>, %arg10: memref<1x32xf32, #tpu.memory_space<vmem>>, %arg11: memref<1x8x32xbf16, #tpu.memory_space<vmem>>) attributes {dimension_semantics = [#tpu.dimension_semantics<parallel>], iteration_bounds = array<i64: 2>, scalar_prefetch = 0 : i64, scratch_operands = 0 : i64, tpu.core_type = #tpu.core_type<tc>, window_params = [{transform_indices = @transform_0, window_bounds = array<i64: 1, 4, 8, 8>}, {transform_indices = @transform_1, window_bounds = array<i64: 1, 4, 8, 8>}, {transform_indices = @transform_2, window_bounds = array<i64: 1, 4, 8, 8>}, {transform_indices = @transform_3, window_bounds = array<i64: 1, 8, 32>}, {pipeline_mode = #tpu.pipeline_mode<synchronous>, transform_indices = @transform_4, window_bounds = array<i64: 8, 8>}, {transform_indices = @transform_5, window_bounds = array<i64: 1, 1, 8>}, {pipeline_mode = #tpu.pipeline_mode<synchronous>, transform_indices = @transform_6, window_bounds = array<i64: 4, 8, 32>}, {pipeline_mode = #tpu.pipeline_mode<synchronous>, transform_indices = @transform_7, window_bounds = array<i64: 1, 32>}, {pipeline_mode = #tpu.pipeline_mode<synchronous>, transform_indices = @transform_8, window_bounds = array<i64: 1, 32>}, {pipeline_mode = #tpu.pipeline_mode<synchronous>, transform_indices = @transform_9, window_bounds = array<i64: 1, 32>}, {transform_indices = @transform_10, window_bounds = array<i64: 1, 8, 32>}]} {
    %c0 = arith.constant 0 : index
    %c0_0 = arith.constant 0 : index
    %0 = vector.load %arg5[%c0, %c0_0] : memref<8x8xf32, #tpu.memory_space<vmem>>, vector<8x8xf32>
    %c0_1 = arith.constant 0 : index
    %c0_2 = arith.constant 0 : index
    %c0_3 = arith.constant 0 : index
    %1 = vector.load %arg6[%c0_1, %c0_2, %c0_3] : memref<1x1x8xf32, #tpu.memory_space<vmem>>, vector<1x1x8xf32>
    %2 = vector.shape_cast %1 : vector<1x1x8xf32> to vector<1x8xf32>
    %3 = vector.broadcast %2 : vector<1x8xf32> to vector<8x8xf32>
    %4 = arith.addf %0, %3 : vector<8x8xf32>
    %c0_4 = arith.constant 0 : index
    %c0_5 = arith.constant 0 : index
    %c0_6 = arith.constant 0 : index
    %c0_7 = arith.constant 0 : index
    %5 = vector.load %arg1[%c0_4, %c0_5, %c0_6, %c0_7] : memref<1x4x8x8xbf16, #tpu.memory_space<vmem>>, vector<1x4x8x8xbf16>
    %6 = vector.shape_cast %5 : vector<1x4x8x8xbf16> to vector<4x8x8xbf16>
    %c0_8 = arith.constant 0 : index
    %c0_9 = arith.constant 0 : index
    %c0_10 = arith.constant 0 : index
    %c0_11 = arith.constant 0 : index
    %7 = vector.load %arg2[%c0_8, %c0_9, %c0_10, %c0_11] : memref<1x4x8x8xbf16, #tpu.memory_space<vmem>>, vector<1x4x8x8xbf16>
    %8 = vector.shape_cast %7 : vector<1x4x8x8xbf16> to vector<4x8x8xbf16>
    %c0_12 = arith.constant 0 : index
    %c0_13 = arith.constant 0 : index
    %c0_14 = arith.constant 0 : index
    %c0_15 = arith.constant 0 : index
    %9 = vector.load %arg3[%c0_12, %c0_13, %c0_14, %c0_15] : memref<1x4x8x8xbf16, #tpu.memory_space<vmem>>, vector<1x4x8x8xbf16>
    %10 = vector.shape_cast %9 : vector<1x4x8x8xbf16> to vector<4x8x8xbf16>
    %c0_16 = arith.constant 0 : index
    %c0_17 = arith.constant 0 : index
    %11 = vector.load %arg8[%c0_16, %c0_17] : memref<1x32xf32, #tpu.memory_space<vmem>>, vector<1x32xf32>
    %c0_18 = arith.constant 0 : index
    %c0_19 = arith.constant 0 : index
    %c0_20 = arith.constant 0 : index
    %12 = vector.load %arg4[%c0_18, %c0_19, %c0_20] : memref<1x8x32xbf16, #tpu.memory_space<vmem>>, vector<1x8x32xbf16>
    %13 = vector.shape_cast %12 : vector<1x8x32xbf16> to vector<8x32xbf16>
    %c0_21 = arith.constant 0 : index
    %c0_22 = arith.constant 0 : index
    %14 = vector.load %arg9[%c0_21, %c0_22] : memref<1x32xf32, #tpu.memory_space<vmem>>, vector<1x32xf32>
    %c0_23 = arith.constant 0 : index
    %c0_24 = arith.constant 0 : index
    %15 = vector.load %arg10[%c0_23, %c0_24] : memref<1x32xf32, #tpu.memory_space<vmem>>, vector<1x32xf32>
    "tpu.trace_start"() <{level = 10 : i32, message = "hqd,hkd->hqk"}> : () -> ()
    %cst = arith.constant dense<0.000000e+00> : vector<4x8x8xf32>
    %16 = tpu.matmul %6, %8, %cst {dimension_numbers = #tpu.dot_dimension_numbers<[2], [2], [1], [1], [0, 0, 0, 1, 1, 1], [0], [0]>} : vector<4x8x8xbf16>, vector<4x8x8xbf16>, vector<4x8x8xf32> -> vector<4x8x8xf32>
    "tpu.trace_stop"() : () -> ()
    %cst_25 = arith.constant 0.353553385 : f32
    %17 = vector.broadcast %cst_25 : f32 to vector<4x8x8xf32>
    %18 = arith.mulf %16, %17 : vector<4x8x8xf32>
    %19 = vector.shape_cast %4 : vector<8x8xf32> to vector<1x8x8xf32>
    %20 = vector.broadcast %19 : vector<1x8x8xf32> to vector<4x8x8xf32>
    %21 = arith.addf %18, %20 : vector<4x8x8xf32>
    %cst_26 = arith.constant dense<0xFF800000> : vector<4x8xf32>
    %22 = vector.multi_reduction <maximumf>, %21, %cst_26 [2] : vector<4x8x8xf32> to vector<4x8xf32>
    %23 = vector.shape_cast %22 : vector<4x8xf32> to vector<4x8x1xf32>
    %24 = vector.broadcast %23 : vector<4x8x1xf32> to vector<4x8x8xf32>
    %25 = arith.subf %21, %24 : vector<4x8x8xf32>
    %26 = math.exp %25 : vector<4x8x8xf32>
    %cst_27 = arith.constant dense<0.000000e+00> : vector<4x8xf32>
    %27 = vector.multi_reduction <add>, %26, %cst_27 [2] : vector<4x8x8xf32> to vector<4x8xf32>
    %28 = vector.shape_cast %27 : vector<4x8xf32> to vector<4x8x1xf32>
    %29 = tpu.reciprocal %28 {approx = true} : vector<4x8x1xf32> -> vector<4x8x1xf32>
    %30 = vector.broadcast %29 : vector<4x8x1xf32> to vector<4x8x8xf32>
    %31 = arith.mulf %26, %30 : vector<4x8x8xf32>
    %32 = arith.truncf %31 : vector<4x8x8xf32> to vector<4x8x8xbf16>
    "tpu.trace_start"() <{level = 10 : i32, message = "hqk,hkd->hqd"}> : () -> ()
    %cst_28 = arith.constant dense<0.000000e+00> : vector<4x8x8xf32>
    %33 = tpu.matmul %32, %10, %cst_28 {dimension_numbers = #tpu.dot_dimension_numbers<[2], [1], [1], [2], [0, 0, 0, 1, 1, 2], [0], [0]>} : vector<4x8x8xbf16>, vector<4x8x8xbf16>, vector<4x8x8xf32> -> vector<4x8x8xf32>
    "tpu.trace_stop"() : () -> ()
    %34 = vector.extract_strided_slice %33 {offsets = [0, 0, 0], sizes = [1, 8, 8], strides = [1, 1, 1]} : vector<4x8x8xf32> to vector<1x8x8xf32>
    %35 = vector.shape_cast %34 : vector<1x8x8xf32> to vector<8x8xf32>
    %36 = arith.truncf %35 : vector<8x8xf32> to vector<8x8xbf16>
    %c0_29 = arith.constant 0 : index
    %c0_30 = arith.constant 0 : index
    %c0_31 = arith.constant 0 : index
    %37 = vector.load %arg7[%c0_29, %c0_30, %c0_31] : memref<4x8x32xbf16, #tpu.memory_space<vmem>>, vector<1x8x32xbf16>
    %38 = vector.shape_cast %37 : vector<1x8x32xbf16> to vector<8x32xbf16>
    %cst_32 = arith.constant dense<0.000000e+00> : vector<8x32xf32>
    %39 = tpu.matmul %36, %38, %cst_32 {dimension_numbers = #tpu.dot_dimension_numbers<[1], [0], [0], [1], [0, 0, 1, 1], [], []>} : vector<8x8xbf16>, vector<8x32xbf16>, vector<8x32xf32> -> vector<8x32xf32>
    %40 = vector.extract_strided_slice %33 {offsets = [1, 0, 0], sizes = [1, 8, 8], strides = [1, 1, 1]} : vector<4x8x8xf32> to vector<1x8x8xf32>
    %41 = vector.shape_cast %40 : vector<1x8x8xf32> to vector<8x8xf32>
    %42 = arith.truncf %41 : vector<8x8xf32> to vector<8x8xbf16>
    %c1 = arith.constant 1 : index
    %c0_33 = arith.constant 0 : index
    %c0_34 = arith.constant 0 : index
    %43 = vector.load %arg7[%c1, %c0_33, %c0_34] : memref<4x8x32xbf16, #tpu.memory_space<vmem>>, vector<1x8x32xbf16>
    %44 = vector.shape_cast %43 : vector<1x8x32xbf16> to vector<8x32xbf16>
    %cst_35 = arith.constant dense<0.000000e+00> : vector<8x32xf32>
    %45 = tpu.matmul %42, %44, %cst_35 {dimension_numbers = #tpu.dot_dimension_numbers<[1], [0], [0], [1], [0, 0, 1, 1], [], []>} : vector<8x8xbf16>, vector<8x32xbf16>, vector<8x32xf32> -> vector<8x32xf32>
    %46 = arith.addf %39, %45 : vector<8x32xf32>
    %47 = vector.extract_strided_slice %33 {offsets = [2, 0, 0], sizes = [1, 8, 8], strides = [1, 1, 1]} : vector<4x8x8xf32> to vector<1x8x8xf32>
    %48 = vector.shape_cast %47 : vector<1x8x8xf32> to vector<8x8xf32>
    %49 = arith.truncf %48 : vector<8x8xf32> to vector<8x8xbf16>
    %c2 = arith.constant 2 : index
    %c0_36 = arith.constant 0 : index
    %c0_37 = arith.constant 0 : index
    %50 = vector.load %arg7[%c2, %c0_36, %c0_37] : memref<4x8x32xbf16, #tpu.memory_space<vmem>>, vector<1x8x32xbf16>
    %51 = vector.shape_cast %50 : vector<1x8x32xbf16> to vector<8x32xbf16>
    %cst_38 = arith.constant dense<0.000000e+00> : vector<8x32xf32>
    %52 = tpu.matmul %49, %51, %cst_38 {dimension_numbers = #tpu.dot_dimension_numbers<[1], [0], [0], [1], [0, 0, 1, 1], [], []>} : vector<8x8xbf16>, vector<8x32xbf16>, vector<8x32xf32> -> vector<8x32xf32>
    %53 = arith.addf %46, %52 : vector<8x32xf32>
    %54 = vector.extract_strided_slice %33 {offsets = [3, 0, 0], sizes = [1, 8, 8], strides = [1, 1, 1]} : vector<4x8x8xf32> to vector<1x8x8xf32>
    %55 = vector.shape_cast %54 : vector<1x8x8xf32> to vector<8x8xf32>
    %56 = arith.truncf %55 : vector<8x8xf32> to vector<8x8xbf16>
    %c3 = arith.constant 3 : index
    %c0_39 = arith.constant 0 : index
    %c0_40 = arith.constant 0 : index
    %57 = vector.load %arg7[%c3, %c0_39, %c0_40] : memref<4x8x32xbf16, #tpu.memory_space<vmem>>, vector<1x8x32xbf16>
    %58 = vector.shape_cast %57 : vector<1x8x32xbf16> to vector<8x32xbf16>
    %cst_41 = arith.constant dense<0.000000e+00> : vector<8x32xf32>
    %59 = tpu.matmul %56, %58, %cst_41 {dimension_numbers = #tpu.dot_dimension_numbers<[1], [0], [0], [1], [0, 0, 1, 1], [], []>} : vector<8x8xbf16>, vector<8x32xbf16>, vector<8x32xf32> -> vector<8x32xf32>
    %60 = arith.addf %53, %59 : vector<8x32xf32>
    %61 = arith.extf %13 : vector<8x32xbf16> to vector<8x32xf32>
    %62 = arith.addf %61, %60 : vector<8x32xf32>
    %63 = vector.broadcast %11 : vector<1x32xf32> to vector<8x32xf32>
    %64 = arith.addf %62, %63 : vector<8x32xf32>
    %cst_42 = arith.constant dense<0.000000e+00> : vector<8xf32>
    %65 = vector.multi_reduction <add>, %64, %cst_42 [1] : vector<8x32xf32> to vector<8xf32>
    %66 = vector.shape_cast %65 : vector<8xf32> to vector<8x1xf32>
    %cst_43 = arith.constant 3.200000e+01 : f32
    %67 = vector.broadcast %cst_43 : f32 to vector<8x1xf32>
    %68 = arith.divf %66, %67 : vector<8x1xf32>
    %69 = vector.broadcast %68 : vector<8x1xf32> to vector<8x32xf32>
    %70 = arith.subf %64, %69 : vector<8x32xf32>
    %71 = arith.mulf %70, %70 : vector<8x32xf32>
    %cst_44 = arith.constant dense<0.000000e+00> : vector<8xf32>
    %72 = vector.multi_reduction <add>, %71, %cst_44 [1] : vector<8x32xf32> to vector<8xf32>
    %73 = vector.shape_cast %72 : vector<8xf32> to vector<8x1xf32>
    %cst_45 = arith.constant 3.200000e+01 : f32
    %74 = vector.broadcast %cst_45 : f32 to vector<8x1xf32>
    %75 = arith.divf %73, %74 : vector<8x1xf32>
    %76 = vector.broadcast %68 : vector<8x1xf32> to vector<8x32xf32>
    %77 = arith.subf %64, %76 : vector<8x32xf32>
    %cst_46 = arith.constant 9.99999974E-6 : f32
    %78 = vector.broadcast %cst_46 : f32 to vector<8x1xf32>
    %79 = arith.addf %75, %78 : vector<8x1xf32>
    %80 = math.rsqrt %79 : vector<8x1xf32>
    %81 = vector.broadcast %80 : vector<8x1xf32> to vector<8x32xf32>
    %82 = arith.mulf %77, %81 : vector<8x32xf32>
    %83 = vector.broadcast %14 : vector<1x32xf32> to vector<8x32xf32>
    %84 = arith.mulf %82, %83 : vector<8x32xf32>
    %85 = vector.broadcast %15 : vector<1x32xf32> to vector<8x32xf32>
    %86 = arith.addf %84, %85 : vector<8x32xf32>
    %87 = arith.truncf %86 : vector<8x32xf32> to vector<8x32xbf16>
    %c0_47 = arith.constant 0 : index
    %c0_48 = arith.constant 0 : index
    %c0_49 = arith.constant 0 : index
    %88 = vector.load %arg11[%c0_47, %c0_48, %c0_49] : memref<1x8x32xbf16, #tpu.memory_space<vmem>>, vector<1x8x32xbf16>
    %89 = vector.shape_cast %88 : vector<1x8x32xbf16> to vector<8x32xbf16>
    %90 = vector.shape_cast %87 : vector<8x32xbf16> to vector<1x8x32xbf16>
    tpu.vector_store %arg11[%c0_47, %c0_48, %c0_49], %90 {strides = array<i32>} : memref<1x8x32xbf16, #tpu.memory_space<vmem>>, vector<1x8x32xbf16>,
    return
  }
  func.func @transform_0(%arg0: i32) -> (i32, i32, i32, i32) {
    %c0_i32 = arith.constant 0 : i32
    %c0_i32_0 = arith.constant 0 : i32
    %c0_i32_1 = arith.constant 0 : i32
    %c0_i32_2 = arith.constant 0 : i32
    return %arg0, %c0_i32, %c0_i32_0, %c0_i32_1 : i32, i32, i32, i32
  }
  func.func @transform_1(%arg0: i32) -> (i32, i32, i32, i32) {
    %c0_i32 = arith.constant 0 : i32
    %c0_i32_0 = arith.constant 0 : i32
    %c0_i32_1 = arith.constant 0 : i32
    %c0_i32_2 = arith.constant 0 : i32
    return %arg0, %c0_i32, %c0_i32_0, %c0_i32_1 : i32, i32, i32, i32
  }
  func.func @transform_2(%arg0: i32) -> (i32, i32, i32, i32) {
    %c0_i32 = arith.constant 0 : i32
    %c0_i32_0 = arith.constant 0 : i32
    %c0_i32_1 = arith.constant 0 : i32
    %c0_i32_2 = arith.constant 0 : i32
    return %arg0, %c0_i32, %c0_i32_0, %c0_i32_1 : i32, i32, i32, i32
  }
  func.func @transform_3(%arg0: i32) -> (i32, i32, i32) {
    %c0_i32 = arith.constant 0 : i32
    %c0_i32_0 = arith.constant 0 : i32
    %c0_i32_1 = arith.constant 0 : i32
    return %arg0, %c0_i32, %c0_i32_0 : i32, i32, i32
  }
  func.func @transform_4(%arg0: i32) -> (i32, i32) {
    %c0_i32 = arith.constant 0 : i32
    %c0_i32_0 = arith.constant 0 : i32
    %c0_i32_1 = arith.constant 0 : i32
    return %c0_i32, %c0_i32_0 : i32, i32
  }
  func.func @transform_5(%arg0: i32) -> (i32, i32, i32) {
    %c0_i32 = arith.constant 0 : i32
    %c0_i32_0 = arith.constant 0 : i32
    %c0_i32_1 = arith.constant 0 : i32
    return %arg0, %c0_i32, %c0_i32_0 : i32, i32, i32
  }
  func.func @transform_6(%arg0: i32) -> (i32, i32, i32) {
    %c0_i32 = arith.constant 0 : i32
    %c0_i32_0 = arith.constant 0 : i32
    %c0_i32_1 = arith.constant 0 : i32
    %c0_i32_2 = arith.constant 0 : i32
    return %c0_i32, %c0_i32_0, %c0_i32_1 : i32, i32, i32
  }
  func.func @transform_7(%arg0: i32) -> (i32, i32) {
    %c0_i32 = arith.constant 0 : i32
    %c0_i32_0 = arith.constant 0 : i32
    %c0_i32_1 = arith.constant 0 : i32
    return %c0_i32, %c0_i32_0 : i32, i32
  }
  func.func @transform_8(%arg0: i32) -> (i32, i32) {
    %c0_i32 = arith.constant 0 : i32
    %c0_i32_0 = arith.constant 0 : i32
    %c0_i32_1 = arith.constant 0 : i32
    return %c0_i32, %c0_i32_0 : i32, i32
  }
  func.func @transform_9(%arg0: i32) -> (i32, i32) {
    %c0_i32 = arith.constant 0 : i32
    %c0_i32_0 = arith.constant 0 : i32
    %c0_i32_1 = arith.constant 0 : i32
    return %c0_i32, %c0_i32_0 : i32, i32
  }
  func.func @transform_10(%arg0: i32) -> (i32, i32, i32) {
    %c0_i32 = arith.constant 0 : i32
    %c0_i32_0 = arith.constant 0 : i32
    %c0_i32_1 = arith.constant 0 : i32
    return %arg0, %c0_i32, %c0_i32_0 : i32, i32, i32
  }
}

module attributes {stable_mosaic.version = 11 : i64} {
  func.func @_linear_kernel(%arg0: i32, %arg1: i32, %arg2: memref<16x32xbf16, #tpu.memory_space<vmem>>, %arg3: memref<32x96xbf16, #tpu.memory_space<vmem>>, %arg4: memref<1x96xf32, #tpu.memory_space<vmem>>, %arg5: memref<16x96xbf16, #tpu.memory_space<vmem>>) attributes {dimension_semantics = [#tpu.dimension_semantics<parallel>, #tpu.dimension_semantics<parallel>], iteration_bounds = array<i64: 1, 1>, scalar_prefetch = 0 : i64, scratch_operands = 0 : i64, tpu.core_type = #tpu.core_type<tc>, window_params = [{transform_indices = @transform_0, window_bounds = array<i64: 16, 32>}, {transform_indices = @transform_1, window_bounds = array<i64: 32, 96>}, {transform_indices = @transform_2, window_bounds = array<i64: 1, 96>}, {transform_indices = @transform_3, window_bounds = array<i64: 16, 96>}]} {
    %c0 = arith.constant 0 : index
    %c0_0 = arith.constant 0 : index
    %0 = vector.load %arg2[%c0, %c0_0] : memref<16x32xbf16, #tpu.memory_space<vmem>>, vector<16x32xbf16>
    %c0_1 = arith.constant 0 : index
    %c0_2 = arith.constant 0 : index
    %1 = vector.load %arg3[%c0_1, %c0_2] : memref<32x96xbf16, #tpu.memory_space<vmem>>, vector<32x96xbf16>
    %cst = arith.constant dense<0.000000e+00> : vector<16x96xf32>
    %2 = tpu.matmul %0, %1, %cst {dimension_numbers = #tpu.dot_dimension_numbers<[1], [0], [0], [1], [0, 0, 1, 1], [], []>} : vector<16x32xbf16>, vector<32x96xbf16>, vector<16x96xf32> -> vector<16x96xf32>
    %c0_3 = arith.constant 0 : index
    %c0_4 = arith.constant 0 : index
    %3 = vector.load %arg4[%c0_3, %c0_4] : memref<1x96xf32, #tpu.memory_space<vmem>>, vector<1x96xf32>
    %4 = vector.broadcast %3 : vector<1x96xf32> to vector<16x96xf32>
    %5 = arith.addf %2, %4 : vector<16x96xf32>
    %6 = arith.truncf %5 : vector<16x96xf32> to vector<16x96xbf16>
    %c0_5 = arith.constant 0 : index
    %c0_6 = arith.constant 0 : index
    %7 = vector.load %arg5[%c0_5, %c0_6] : memref<16x96xbf16, #tpu.memory_space<vmem>>, vector<16x96xbf16>
    tpu.vector_store %arg5[%c0_5, %c0_6], %6 {strides = array<i32>} : memref<16x96xbf16, #tpu.memory_space<vmem>>, vector<16x96xbf16>,
    return
  }
  func.func @transform_0(%arg0: i32, %arg1: i32) -> (i32, i32) {
    %c0_i32 = arith.constant 0 : i32
    %c0_i32_0 = arith.constant 0 : i32
    return %arg0, %c0_i32 : i32, i32
  }
  func.func @transform_1(%arg0: i32, %arg1: i32) -> (i32, i32) {
    %c0_i32 = arith.constant 0 : i32
    %c0_i32_0 = arith.constant 0 : i32
    return %c0_i32, %arg1 : i32, i32
  }
  func.func @transform_2(%arg0: i32, %arg1: i32) -> (i32, i32) {
    %c0_i32 = arith.constant 0 : i32
    %c0_i32_0 = arith.constant 0 : i32
    return %c0_i32, %arg1 : i32, i32
  }
  func.func @transform_3(%arg0: i32, %arg1: i32) -> (i32, i32) {
    %c0_i32 = arith.constant 0 : i32
    return %arg0, %arg1 : i32, i32
  }
}

module attributes {stable_mosaic.version = 11 : i64} {
  func.func @_posemb_kernel(%arg0: i32, %arg1: memref<1x8x32xf32, #tpu.memory_space<vmem>>, %arg2: memref<8x32xf32, #tpu.memory_space<vmem>>, %arg3: memref<1x8x32xbf16, #tpu.memory_space<vmem>>) attributes {dimension_semantics = [#tpu.dimension_semantics<parallel>], iteration_bounds = array<i64: 2>, scalar_prefetch = 0 : i64, scratch_operands = 0 : i64, tpu.core_type = #tpu.core_type<tc>, window_params = [{transform_indices = @transform_0, window_bounds = array<i64: 1, 8, 32>}, {pipeline_mode = #tpu.pipeline_mode<synchronous>, transform_indices = @transform_1, window_bounds = array<i64: 8, 32>}, {transform_indices = @transform_2, window_bounds = array<i64: 1, 8, 32>}]} {
    %c0 = arith.constant 0 : index
    %c0_0 = arith.constant 0 : index
    %c0_1 = arith.constant 0 : index
    %0 = vector.load %arg1[%c0, %c0_0, %c0_1] : memref<1x8x32xf32, #tpu.memory_space<vmem>>, vector<1x8x32xf32>
    %1 = vector.shape_cast %0 : vector<1x8x32xf32> to vector<8x32xf32>
    %cst = arith.constant 5.65685415 : f32
    %2 = vector.broadcast %cst : f32 to vector<8x32xf32>
    %3 = arith.mulf %1, %2 : vector<8x32xf32>
    %c0_2 = arith.constant 0 : index
    %c0_3 = arith.constant 0 : index
    %4 = vector.load %arg2[%c0_2, %c0_3] : memref<8x32xf32, #tpu.memory_space<vmem>>, vector<8x32xf32>
    %5 = arith.addf %3, %4 : vector<8x32xf32>
    %6 = arith.truncf %5 : vector<8x32xf32> to vector<8x32xbf16>
    %c0_4 = arith.constant 0 : index
    %c0_5 = arith.constant 0 : index
    %c0_6 = arith.constant 0 : index
    %7 = vector.load %arg3[%c0_4, %c0_5, %c0_6] : memref<1x8x32xbf16, #tpu.memory_space<vmem>>, vector<1x8x32xbf16>
    %8 = vector.shape_cast %7 : vector<1x8x32xbf16> to vector<8x32xbf16>
    %9 = vector.shape_cast %6 : vector<8x32xbf16> to vector<1x8x32xbf16>
    tpu.vector_store %arg3[%c0_4, %c0_5, %c0_6], %9 {strides = array<i32>} : memref<1x8x32xbf16, #tpu.memory_space<vmem>>, vector<1x8x32xbf16>,
    return
  }
  func.func @transform_0(%arg0: i32) -> (i32, i32, i32) {
    %c0_i32 = arith.constant 0 : i32
    %c0_i32_0 = arith.constant 0 : i32
    %c0_i32_1 = arith.constant 0 : i32
    return %arg0, %c0_i32, %c0_i32_0 : i32, i32, i32
  }
  func.func @transform_1(%arg0: i32) -> (i32, i32) {
    %c0_i32 = arith.constant 0 : i32
    %c0_i32_0 = arith.constant 0 : i32
    %c0_i32_1 = arith.constant 0 : i32
    return %c0_i32, %c0_i32_0 : i32, i32
  }
  func.func @transform_2(%arg0: i32) -> (i32, i32, i32) {
    %c0_i32 = arith.constant 0 : i32
    %c0_i32_0 = arith.constant 0 : i32
    %c0_i32_1 = arith.constant 0 : i32
    return %arg0, %c0_i32, %c0_i32_0 : i32, i32, i32
  }
}

module attributes {stable_mosaic.version = 11 : i64} {
  func.func @_linear_kernel(%arg0: i32, %arg1: i32, %arg2: memref<16x32xbf16, #tpu.memory_space<vmem>>, %arg3: memref<32x32xbf16, #tpu.memory_space<vmem>>, %arg4: memref<1x32xf32, #tpu.memory_space<vmem>>, %arg5: memref<16x32xbf16, #tpu.memory_space<vmem>>) attributes {dimension_semantics = [#tpu.dimension_semantics<parallel>, #tpu.dimension_semantics<parallel>], iteration_bounds = array<i64: 1, 1>, scalar_prefetch = 0 : i64, scratch_operands = 0 : i64, tpu.core_type = #tpu.core_type<tc>, window_params = [{transform_indices = @transform_0, window_bounds = array<i64: 16, 32>}, {transform_indices = @transform_1, window_bounds = array<i64: 32, 32>}, {transform_indices = @transform_2, window_bounds = array<i64: 1, 32>}, {transform_indices = @transform_3, window_bounds = array<i64: 16, 32>}]} {
    %c0 = arith.constant 0 : index
    %c0_0 = arith.constant 0 : index
    %0 = vector.load %arg2[%c0, %c0_0] : memref<16x32xbf16, #tpu.memory_space<vmem>>, vector<16x32xbf16>
    %c0_1 = arith.constant 0 : index
    %c0_2 = arith.constant 0 : index
    %1 = vector.load %arg3[%c0_1, %c0_2] : memref<32x32xbf16, #tpu.memory_space<vmem>>, vector<32x32xbf16>
    %cst = arith.constant dense<0.000000e+00> : vector<16x32xf32>
    %2 = tpu.matmul %0, %1, %cst {dimension_numbers = #tpu.dot_dimension_numbers<[1], [0], [0], [1], [0, 0, 1, 1], [], []>} : vector<16x32xbf16>, vector<32x32xbf16>, vector<16x32xf32> -> vector<16x32xf32>
    %c0_3 = arith.constant 0 : index
    %c0_4 = arith.constant 0 : index
    %3 = vector.load %arg4[%c0_3, %c0_4] : memref<1x32xf32, #tpu.memory_space<vmem>>, vector<1x32xf32>
    %4 = vector.broadcast %3 : vector<1x32xf32> to vector<16x32xf32>
    %5 = arith.addf %2, %4 : vector<16x32xf32>
    %6 = arith.truncf %5 : vector<16x32xf32> to vector<16x32xbf16>
    %c0_5 = arith.constant 0 : index
    %c0_6 = arith.constant 0 : index
    %7 = vector.load %arg5[%c0_5, %c0_6] : memref<16x32xbf16, #tpu.memory_space<vmem>>, vector<16x32xbf16>
    tpu.vector_store %arg5[%c0_5, %c0_6], %6 {strides = array<i32>} : memref<16x32xbf16, #tpu.memory_space<vmem>>, vector<16x32xbf16>,
    return
  }
  func.func @transform_0(%arg0: i32, %arg1: i32) -> (i32, i32) {
    %c0_i32 = arith.constant 0 : i32
    %c0_i32_0 = arith.constant 0 : i32
    return %arg0, %c0_i32 : i32, i32
  }
  func.func @transform_1(%arg0: i32, %arg1: i32) -> (i32, i32) {
    %c0_i32 = arith.constant 0 : i32
    %c0_i32_0 = arith.constant 0 : i32
    return %c0_i32, %arg1 : i32, i32
  }
  func.func @transform_2(%arg0: i32, %arg1: i32) -> (i32, i32) {
    %c0_i32 = arith.constant 0 : i32
    %c0_i32_0 = arith.constant 0 : i32
    return %c0_i32, %arg1 : i32, i32
  }
  func.func @transform_3(%arg0: i32, %arg1: i32) -> (i32, i32) {
    %c0_i32 = arith.constant 0 : i32
    return %arg0, %arg1 : i32, i32
  }
}

module attributes {stable_mosaic.version = 11 : i64} {
  func.func @_linear_kernel(%arg0: i32, %arg1: i32, %arg2: memref<32x48xbf16, #tpu.memory_space<vmem>>, %arg3: memref<48x32xbf16, #tpu.memory_space<vmem>>, %arg4: memref<1x32xf32, #tpu.memory_space<vmem>>, %arg5: memref<32x32xbf16, #tpu.memory_space<vmem>>) attributes {dimension_semantics = [#tpu.dimension_semantics<parallel>, #tpu.dimension_semantics<parallel>], iteration_bounds = array<i64: 1, 1>, scalar_prefetch = 0 : i64, scratch_operands = 0 : i64, tpu.core_type = #tpu.core_type<tc>, window_params = [{transform_indices = @transform_0, window_bounds = array<i64: 32, 48>}, {transform_indices = @transform_1, window_bounds = array<i64: 48, 32>}, {transform_indices = @transform_2, window_bounds = array<i64: 1, 32>}, {transform_indices = @transform_3, window_bounds = array<i64: 32, 32>}]} {
    %c0 = arith.constant 0 : index
    %c0_0 = arith.constant 0 : index
    %0 = vector.load %arg2[%c0, %c0_0] : memref<32x48xbf16, #tpu.memory_space<vmem>>, vector<32x48xbf16>
    %c0_1 = arith.constant 0 : index
    %c0_2 = arith.constant 0 : index
    %1 = vector.load %arg3[%c0_1, %c0_2] : memref<48x32xbf16, #tpu.memory_space<vmem>>, vector<48x32xbf16>
    %cst = arith.constant dense<0.000000e+00> : vector<32x32xf32>
    %2 = tpu.matmul %0, %1, %cst {dimension_numbers = #tpu.dot_dimension_numbers<[1], [0], [0], [1], [0, 0, 1, 1], [], []>} : vector<32x48xbf16>, vector<48x32xbf16>, vector<32x32xf32> -> vector<32x32xf32>
    %c0_3 = arith.constant 0 : index
    %c0_4 = arith.constant 0 : index
    %3 = vector.load %arg4[%c0_3, %c0_4] : memref<1x32xf32, #tpu.memory_space<vmem>>, vector<1x32xf32>
    %4 = vector.broadcast %3 : vector<1x32xf32> to vector<32x32xf32>
    %5 = arith.addf %2, %4 : vector<32x32xf32>
    %6 = arith.truncf %5 : vector<32x32xf32> to vector<32x32xbf16>
    %c0_5 = arith.constant 0 : index
    %c0_6 = arith.constant 0 : index
    %7 = vector.load %arg5[%c0_5, %c0_6] : memref<32x32xbf16, #tpu.memory_space<vmem>>, vector<32x32xbf16>
    tpu.vector_store %arg5[%c0_5, %c0_6], %6 {strides = array<i32>} : memref<32x32xbf16, #tpu.memory_space<vmem>>, vector<32x32xbf16>,
    return
  }
  func.func @transform_0(%arg0: i32, %arg1: i32) -> (i32, i32) {
    %c0_i32 = arith.constant 0 : i32
    %c0_i32_0 = arith.constant 0 : i32
    return %arg0, %c0_i32 : i32, i32
  }
  func.func @transform_1(%arg0: i32, %arg1: i32) -> (i32, i32) {
    %c0_i32 = arith.constant 0 : i32
    %c0_i32_0 = arith.constant 0 : i32
    return %c0_i32, %arg1 : i32, i32
  }
  func.func @transform_2(%arg0: i32, %arg1: i32) -> (i32, i32) {
    %c0_i32 = arith.constant 0 : i32
    %c0_i32_0 = arith.constant 0 : i32
    return %c0_i32, %arg1 : i32, i32
  }
  func.func @transform_3(%arg0: i32, %arg1: i32) -> (i32, i32) {
    %c0_i32 = arith.constant 0 : i32
    return %arg0, %arg1 : i32, i32
  }
}

module attributes {stable_mosaic.version = 11 : i64} {
  func.func @_linear_kernel(%arg0: i32, %arg1: i32, %arg2: memref<32x32xbf16, #tpu.memory_space<vmem>>, %arg3: memref<32x64xbf16, #tpu.memory_space<vmem>>, %arg4: memref<1x64xf32, #tpu.memory_space<vmem>>, %arg5: memref<32x64xbf16, #tpu.memory_space<vmem>>) attributes {dimension_semantics = [#tpu.dimension_semantics<parallel>, #tpu.dimension_semantics<parallel>], iteration_bounds = array<i64: 1, 1>, scalar_prefetch = 0 : i64, scratch_operands = 0 : i64, tpu.core_type = #tpu.core_type<tc>, window_params = [{transform_indices = @transform_0, window_bounds = array<i64: 32, 32>}, {transform_indices = @transform_1, window_bounds = array<i64: 32, 64>}, {transform_indices = @transform_2, window_bounds = array<i64: 1, 64>}, {transform_indices = @transform_3, window_bounds = array<i64: 32, 64>}]} {
    %c0 = arith.constant 0 : index
    %c0_0 = arith.constant 0 : index
    %0 = vector.load %arg2[%c0, %c0_0] : memref<32x32xbf16, #tpu.memory_space<vmem>>, vector<32x32xbf16>
    %c0_1 = arith.constant 0 : index
    %c0_2 = arith.constant 0 : index
    %1 = vector.load %arg3[%c0_1, %c0_2] : memref<32x64xbf16, #tpu.memory_space<vmem>>, vector<32x64xbf16>
    %cst = arith.constant dense<0.000000e+00> : vector<32x64xf32>
    %2 = tpu.matmul %0, %1, %cst {dimension_numbers = #tpu.dot_dimension_numbers<[1], [0], [0], [1], [0, 0, 1, 1], [], []>} : vector<32x32xbf16>, vector<32x64xbf16>, vector<32x64xf32> -> vector<32x64xf32>
    %c0_3 = arith.constant 0 : index
    %c0_4 = arith.constant 0 : index
    %3 = vector.load %arg4[%c0_3, %c0_4] : memref<1x64xf32, #tpu.memory_space<vmem>>, vector<1x64xf32>
    %4 = vector.broadcast %3 : vector<1x64xf32> to vector<32x64xf32>
    %5 = arith.addf %2, %4 : vector<32x64xf32>
    %6 = arith.truncf %5 : vector<32x64xf32> to vector<32x64xbf16>
    %c0_5 = arith.constant 0 : index
    %c0_6 = arith.constant 0 : index
    %7 = vector.load %arg5[%c0_5, %c0_6] : memref<32x64xbf16, #tpu.memory_space<vmem>>, vector<32x64xbf16>
    tpu.vector_store %arg5[%c0_5, %c0_6], %6 {strides = array<i32>} : memref<32x64xbf16, #tpu.memory_space<vmem>>, vector<32x64xbf16>,
    return
  }
  func.func @transform_0(%arg0: i32, %arg1: i32) -> (i32, i32) {
    %c0_i32 = arith.constant 0 : i32
    %c0_i32_0 = arith.constant 0 : i32
    return %arg0, %c0_i32 : i32, i32
  }
  func.func @transform_1(%arg0: i32, %arg1: i32) -> (i32, i32) {
    %c0_i32 = arith.constant 0 : i32
    %c0_i32_0 = arith.constant 0 : i32
    return %c0_i32, %arg1 : i32, i32
  }
  func.func @transform_2(%arg0: i32, %arg1: i32) -> (i32, i32) {
    %c0_i32 = arith.constant 0 : i32
    %c0_i32_0 = arith.constant 0 : i32
    return %c0_i32, %arg1 : i32, i32
  }
  func.func @transform_3(%arg0: i32, %arg1: i32) -> (i32, i32) {
    %c0_i32 = arith.constant 0 : i32
    return %arg0, %arg1 : i32, i32
  }
}

module attributes {stable_mosaic.version = 11 : i64} {
  func.func @_ffn_ln_kernel(%arg0: i32, %arg1: memref<16x32xbf16, #tpu.memory_space<vmem>>, %arg2: memref<32x128xbf16, #tpu.memory_space<vmem>>, %arg3: memref<1x128xf32, #tpu.memory_space<vmem>>, %arg4: memref<128x32xbf16, #tpu.memory_space<vmem>>, %arg5: memref<1x32xf32, #tpu.memory_space<vmem>>, %arg6: memref<1x32xf32, #tpu.memory_space<vmem>>, %arg7: memref<1x32xf32, #tpu.memory_space<vmem>>, %arg8: memref<16x32xbf16, #tpu.memory_space<vmem>>) attributes {dimension_semantics = [#tpu.dimension_semantics<parallel>], iteration_bounds = array<i64: 1>, scalar_prefetch = 0 : i64, scratch_operands = 0 : i64, tpu.core_type = #tpu.core_type<tc>, window_params = [{transform_indices = @transform_0, window_bounds = array<i64: 16, 32>}, {pipeline_mode = #tpu.pipeline_mode<synchronous>, transform_indices = @transform_1, window_bounds = array<i64: 32, 128>}, {pipeline_mode = #tpu.pipeline_mode<synchronous>, transform_indices = @transform_2, window_bounds = array<i64: 1, 128>}, {pipeline_mode = #tpu.pipeline_mode<synchronous>, transform_indices = @transform_3, window_bounds = array<i64: 128, 32>}, {pipeline_mode = #tpu.pipeline_mode<synchronous>, transform_indices = @transform_4, window_bounds = array<i64: 1, 32>}, {pipeline_mode = #tpu.pipeline_mode<synchronous>, transform_indices = @transform_5, window_bounds = array<i64: 1, 32>}, {pipeline_mode = #tpu.pipeline_mode<synchronous>, transform_indices = @transform_6, window_bounds = array<i64: 1, 32>}, {transform_indices = @transform_7, window_bounds = array<i64: 16, 32>}]} {
    %c0 = arith.constant 0 : index
    %c0_0 = arith.constant 0 : index
    %0 = vector.load %arg1[%c0, %c0_0] : memref<16x32xbf16, #tpu.memory_space<vmem>>, vector<16x32xbf16>
    %c0_1 = arith.constant 0 : index
    %c0_2 = arith.constant 0 : index
    %1 = vector.load %arg2[%c0_1, %c0_2] : memref<32x128xbf16, #tpu.memory_space<vmem>>, vector<32x128xbf16>
    %cst = arith.constant dense<0.000000e+00> : vector<16x128xf32>
    %2 = tpu.matmul %0, %1, %cst {dimension_numbers = #tpu.dot_dimension_numbers<[1], [0], [0], [1], [0, 0, 1, 1], [], []>} : vector<16x32xbf16>, vector<32x128xbf16>, vector<16x128xf32> -> vector<16x128xf32>
    %c0_3 = arith.constant 0 : index
    %c0_4 = arith.constant 0 : index
    %3 = vector.load %arg3[%c0_3, %c0_4] : memref<1x128xf32, #tpu.memory_space<vmem>>, vector<1x128xf32>
    %4 = vector.broadcast %3 : vector<1x128xf32> to vector<16x128xf32>
    %5 = arith.addf %2, %4 : vector<16x128xf32>
    %cst_5 = arith.constant 0.000000e+00 : f32
    %6 = vector.broadcast %cst_5 : f32 to vector<16x128xf32>
    %7 = arith.maximumf %5, %6 : vector<16x128xf32>
    %8 = arith.truncf %7 : vector<16x128xf32> to vector<16x128xbf16>
    %c0_6 = arith.constant 0 : index
    %c0_7 = arith.constant 0 : index
    %9 = vector.load %arg4[%c0_6, %c0_7] : memref<128x32xbf16, #tpu.memory_space<vmem>>, vector<128x32xbf16>
    %cst_8 = arith.constant dense<0.000000e+00> : vector<16x32xf32>
    %10 = tpu.matmul %8, %9, %cst_8 {dimension_numbers = #tpu.dot_dimension_numbers<[1], [0], [0], [1], [0, 0, 1, 1], [], []>} : vector<16x128xbf16>, vector<128x32xbf16>, vector<16x32xf32> -> vector<16x32xf32>
    %c0_9 = arith.constant 0 : index
    %c0_10 = arith.constant 0 : index
    %11 = vector.load %arg5[%c0_9, %c0_10] : memref<1x32xf32, #tpu.memory_space<vmem>>, vector<1x32xf32>
    %12 = vector.broadcast %11 : vector<1x32xf32> to vector<16x32xf32>
    %13 = arith.addf %10, %12 : vector<16x32xf32>
    %14 = arith.extf %0 : vector<16x32xbf16> to vector<16x32xf32>
    %15 = arith.addf %14, %13 : vector<16x32xf32>
    %cst_11 = arith.constant dense<0.000000e+00> : vector<16xf32>
    %16 = vector.multi_reduction <add>, %15, %cst_11 [1] : vector<16x32xf32> to vector<16xf32>
    %17 = vector.shape_cast %16 : vector<16xf32> to vector<16x1xf32>
    %cst_12 = arith.constant 3.200000e+01 : f32
    %18 = vector.broadcast %cst_12 : f32 to vector<16x1xf32>
    %19 = arith.divf %17, %18 : vector<16x1xf32>
    %20 = vector.broadcast %19 : vector<16x1xf32> to vector<16x32xf32>
    %21 = arith.subf %15, %20 : vector<16x32xf32>
    %22 = arith.mulf %21, %21 : vector<16x32xf32>
    %cst_13 = arith.constant dense<0.000000e+00> : vector<16xf32>
    %23 = vector.multi_reduction <add>, %22, %cst_13 [1] : vector<16x32xf32> to vector<16xf32>
    %24 = vector.shape_cast %23 : vector<16xf32> to vector<16x1xf32>
    %cst_14 = arith.constant 3.200000e+01 : f32
    %25 = vector.broadcast %cst_14 : f32 to vector<16x1xf32>
    %26 = arith.divf %24, %25 : vector<16x1xf32>
    %27 = vector.broadcast %19 : vector<16x1xf32> to vector<16x32xf32>
    %28 = arith.subf %15, %27 : vector<16x32xf32>
    %cst_15 = arith.constant 9.99999974E-6 : f32
    %29 = vector.broadcast %cst_15 : f32 to vector<16x1xf32>
    %30 = arith.addf %26, %29 : vector<16x1xf32>
    %31 = math.rsqrt %30 : vector<16x1xf32>
    %32 = vector.broadcast %31 : vector<16x1xf32> to vector<16x32xf32>
    %33 = arith.mulf %28, %32 : vector<16x32xf32>
    %c0_16 = arith.constant 0 : index
    %c0_17 = arith.constant 0 : index
    %34 = vector.load %arg6[%c0_16, %c0_17] : memref<1x32xf32, #tpu.memory_space<vmem>>, vector<1x32xf32>
    %35 = vector.broadcast %34 : vector<1x32xf32> to vector<16x32xf32>
    %36 = arith.mulf %33, %35 : vector<16x32xf32>
    %c0_18 = arith.constant 0 : index
    %c0_19 = arith.constant 0 : index
    %37 = vector.load %arg7[%c0_18, %c0_19] : memref<1x32xf32, #tpu.memory_space<vmem>>, vector<1x32xf32>
    %38 = vector.broadcast %37 : vector<1x32xf32> to vector<16x32xf32>
    %39 = arith.addf %36, %38 : vector<16x32xf32>
    %40 = arith.truncf %39 : vector<16x32xf32> to vector<16x32xbf16>
    %c0_20 = arith.constant 0 : index
    %c0_21 = arith.constant 0 : index
    %41 = vector.load %arg8[%c0_20, %c0_21] : memref<16x32xbf16, #tpu.memory_space<vmem>>, vector<16x32xbf16>
    tpu.vector_store %arg8[%c0_20, %c0_21], %40 {strides = array<i32>} : memref<16x32xbf16, #tpu.memory_space<vmem>>, vector<16x32xbf16>,
    return
  }
  func.func @transform_0(%arg0: i32) -> (i32, i32) {
    %c0_i32 = arith.constant 0 : i32
    %c0_i32_0 = arith.constant 0 : i32
    return %arg0, %c0_i32 : i32, i32
  }
  func.func @transform_1(%arg0: i32) -> (i32, i32) {
    %c0_i32 = arith.constant 0 : i32
    %c0_i32_0 = arith.constant 0 : i32
    %c0_i32_1 = arith.constant 0 : i32
    return %c0_i32, %c0_i32_0 : i32, i32
  }
  func.func @transform_2(%arg0: i32) -> (i32, i32) {
    %c0_i32 = arith.constant 0 : i32
    %c0_i32_0 = arith.constant 0 : i32
    %c0_i32_1 = arith.constant 0 : i32
    return %c0_i32, %c0_i32_0 : i32, i32
  }
  func.func @transform_3(%arg0: i32) -> (i32, i32) {
    %c0_i32 = arith.constant 0 : i32
    %c0_i32_0 = arith.constant 0 : i32
    %c0_i32_1 = arith.constant 0 : i32
    return %c0_i32, %c0_i32_0 : i32, i32
  }
  func.func @transform_4(%arg0: i32) -> (i32, i32) {
    %c0_i32 = arith.constant 0 : i32
    %c0_i32_0 = arith.constant 0 : i32
    %c0_i32_1 = arith.constant 0 : i32
    return %c0_i32, %c0_i32_0 : i32, i32
  }
  func.func @transform_5(%arg0: i32) -> (i32, i32) {
    %c0_i32 = arith.constant 0 : i32
    %c0_i32_0 = arith.constant 0 : i32
    %c0_i32_1 = arith.constant 0 : i32
    return %c0_i32, %c0_i32_0 : i32, i32
  }
  func.func @transform_6(%arg0: i32) -> (i32, i32) {
    %c0_i32 = arith.constant 0 : i32
    %c0_i32_0 = arith.constant 0 : i32
    %c0_i32_1 = arith.constant 0 : i32
    return %c0_i32, %c0_i32_0 : i32, i32
  }
  func.func @transform_7(%arg0: i32) -> (i32, i32) {
    %c0_i32 = arith.constant 0 : i32
    %c0_i32_0 = arith.constant 0 : i32
    return %arg0, %c0_i32 : i32, i32
  }
}

module attributes {stable_mosaic.version = 11 : i64} {
  func.func @_cross_attn_kernel(%arg0: i32, %arg1: memref<1x4x8x8xbf16, #tpu.memory_space<vmem>>, %arg2: memref<1x4x16x8xbf16, #tpu.memory_space<vmem>>, %arg3: memref<1x4x16x8xbf16, #tpu.memory_space<vmem>>, %arg4: memref<1x8x32xbf16, #tpu.memory_space<vmem>>, %arg5: memref<4x8x32xbf16, #tpu.memory_space<vmem>>, %arg6: memref<1x32xf32, #tpu.memory_space<vmem>>, %arg7: memref<1x32xf32, #tpu.memory_space<vmem>>, %arg8: memref<1x32xf32, #tpu.memory_space<vmem>>, %arg9: memref<1x8x32xbf16, #tpu.memory_space<vmem>>) attributes {dimension_semantics = [#tpu.dimension_semantics<parallel>], iteration_bounds = array<i64: 2>, scalar_prefetch = 0 : i64, scratch_operands = 0 : i64, tpu.core_type = #tpu.core_type<tc>, window_params = [{transform_indices = @transform_0, window_bounds = array<i64: 1, 4, 8, 8>}, {transform_indices = @transform_1, window_bounds = array<i64: 1, 4, 16, 8>}, {transform_indices = @transform_2, window_bounds = array<i64: 1, 4, 16, 8>}, {transform_indices = @transform_3, window_bounds = array<i64: 1, 8, 32>}, {pipeline_mode = #tpu.pipeline_mode<synchronous>, transform_indices = @transform_4, window_bounds = array<i64: 4, 8, 32>}, {pipeline_mode = #tpu.pipeline_mode<synchronous>, transform_indices = @transform_5, window_bounds = array<i64: 1, 32>}, {pipeline_mode = #tpu.pipeline_mode<synchronous>, transform_indices = @transform_6, window_bounds = array<i64: 1, 32>}, {pipeline_mode = #tpu.pipeline_mode<synchronous>, transform_indices = @transform_7, window_bounds = array<i64: 1, 32>}, {transform_indices = @transform_8, window_bounds = array<i64: 1, 8, 32>}]} {
    %c0 = arith.constant 0 : index
    %c0_0 = arith.constant 0 : index
    %c0_1 = arith.constant 0 : index
    %c0_2 = arith.constant 0 : index
    %0 = vector.load %arg1[%c0, %c0_0, %c0_1, %c0_2] : memref<1x4x8x8xbf16, #tpu.memory_space<vmem>>, vector<1x4x8x8xbf16>
    %1 = vector.shape_cast %0 : vector<1x4x8x8xbf16> to vector<4x8x8xbf16>
    %c0_3 = arith.constant 0 : index
    %c0_4 = arith.constant 0 : index
    %c0_5 = arith.constant 0 : index
    %c0_6 = arith.constant 0 : index
    %2 = vector.load %arg2[%c0_3, %c0_4, %c0_5, %c0_6] : memref<1x4x16x8xbf16, #tpu.memory_space<vmem>>, vector<1x4x16x8xbf16>
    %3 = vector.shape_cast %2 : vector<1x4x16x8xbf16> to vector<4x16x8xbf16>
    %c0_7 = arith.constant 0 : index
    %c0_8 = arith.constant 0 : index
    %c0_9 = arith.constant 0 : index
    %c0_10 = arith.constant 0 : index
    %4 = vector.load %arg3[%c0_7, %c0_8, %c0_9, %c0_10] : memref<1x4x16x8xbf16, #tpu.memory_space<vmem>>, vector<1x4x16x8xbf16>
    %5 = vector.shape_cast %4 : vector<1x4x16x8xbf16> to vector<4x16x8xbf16>
    %c0_11 = arith.constant 0 : index
    %c0_12 = arith.constant 0 : index
    %6 = vector.load %arg6[%c0_11, %c0_12] : memref<1x32xf32, #tpu.memory_space<vmem>>, vector<1x32xf32>
    %c0_13 = arith.constant 0 : index
    %c0_14 = arith.constant 0 : index
    %c0_15 = arith.constant 0 : index
    %7 = vector.load %arg4[%c0_13, %c0_14, %c0_15] : memref<1x8x32xbf16, #tpu.memory_space<vmem>>, vector<1x8x32xbf16>
    %8 = vector.shape_cast %7 : vector<1x8x32xbf16> to vector<8x32xbf16>
    %c0_16 = arith.constant 0 : index
    %c0_17 = arith.constant 0 : index
    %9 = vector.load %arg7[%c0_16, %c0_17] : memref<1x32xf32, #tpu.memory_space<vmem>>, vector<1x32xf32>
    %c0_18 = arith.constant 0 : index
    %c0_19 = arith.constant 0 : index
    %10 = vector.load %arg8[%c0_18, %c0_19] : memref<1x32xf32, #tpu.memory_space<vmem>>, vector<1x32xf32>
    "tpu.trace_start"() <{level = 10 : i32, message = "hqd,hkd->hqk"}> : () -> ()
    %cst = arith.constant dense<0.000000e+00> : vector<4x8x16xf32>
    %11 = tpu.matmul %1, %3, %cst {dimension_numbers = #tpu.dot_dimension_numbers<[2], [2], [1], [1], [0, 0, 0, 1, 1, 1], [0], [0]>} : vector<4x8x8xbf16>, vector<4x16x8xbf16>, vector<4x8x16xf32> -> vector<4x8x16xf32>
    "tpu.trace_stop"() : () -> ()
    %cst_20 = arith.constant 0.353553385 : f32
    %12 = vector.broadcast %cst_20 : f32 to vector<4x8x16xf32>
    %13 = arith.mulf %11, %12 : vector<4x8x16xf32>
    %cst_21 = arith.constant dense<0xFF800000> : vector<4x8xf32>
    %14 = vector.multi_reduction <maximumf>, %13, %cst_21 [2] : vector<4x8x16xf32> to vector<4x8xf32>
    %15 = vector.shape_cast %14 : vector<4x8xf32> to vector<4x8x1xf32>
    %16 = vector.broadcast %15 : vector<4x8x1xf32> to vector<4x8x16xf32>
    %17 = arith.subf %13, %16 : vector<4x8x16xf32>
    %18 = math.exp %17 : vector<4x8x16xf32>
    %cst_22 = arith.constant dense<0.000000e+00> : vector<4x8xf32>
    %19 = vector.multi_reduction <add>, %18, %cst_22 [2] : vector<4x8x16xf32> to vector<4x8xf32>
    %20 = vector.shape_cast %19 : vector<4x8xf32> to vector<4x8x1xf32>
    %21 = tpu.reciprocal %20 {approx = true} : vector<4x8x1xf32> -> vector<4x8x1xf32>
    %22 = vector.broadcast %21 : vector<4x8x1xf32> to vector<4x8x16xf32>
    %23 = arith.mulf %18, %22 : vector<4x8x16xf32>
    %24 = arith.truncf %23 : vector<4x8x16xf32> to vector<4x8x16xbf16>
    "tpu.trace_start"() <{level = 10 : i32, message = "hqk,hkd->hqd"}> : () -> ()
    %cst_23 = arith.constant dense<0.000000e+00> : vector<4x8x8xf32>
    %25 = tpu.matmul %24, %5, %cst_23 {dimension_numbers = #tpu.dot_dimension_numbers<[2], [1], [1], [2], [0, 0, 0, 1, 1, 2], [0], [0]>} : vector<4x8x16xbf16>, vector<4x16x8xbf16>, vector<4x8x8xf32> -> vector<4x8x8xf32>
    "tpu.trace_stop"() : () -> ()
    %26 = vector.extract_strided_slice %25 {offsets = [0, 0, 0], sizes = [1, 8, 8], strides = [1, 1, 1]} : vector<4x8x8xf32> to vector<1x8x8xf32>
    %27 = vector.shape_cast %26 : vector<1x8x8xf32> to vector<8x8xf32>
    %28 = arith.truncf %27 : vector<8x8xf32> to vector<8x8xbf16>
    %c0_24 = arith.constant 0 : index
    %c0_25 = arith.constant 0 : index
    %c0_26 = arith.constant 0 : index
    %29 = vector.load %arg5[%c0_24, %c0_25, %c0_26] : memref<4x8x32xbf16, #tpu.memory_space<vmem>>, vector<1x8x32xbf16>
    %30 = vector.shape_cast %29 : vector<1x8x32xbf16> to vector<8x32xbf16>
    %cst_27 = arith.constant dense<0.000000e+00> : vector<8x32xf32>
    %31 = tpu.matmul %28, %30, %cst_27 {dimension_numbers = #tpu.dot_dimension_numbers<[1], [0], [0], [1], [0, 0, 1, 1], [], []>} : vector<8x8xbf16>, vector<8x32xbf16>, vector<8x32xf32> -> vector<8x32xf32>
    %32 = vector.extract_strided_slice %25 {offsets = [1, 0, 0], sizes = [1, 8, 8], strides = [1, 1, 1]} : vector<4x8x8xf32> to vector<1x8x8xf32>
    %33 = vector.shape_cast %32 : vector<1x8x8xf32> to vector<8x8xf32>
    %34 = arith.truncf %33 : vector<8x8xf32> to vector<8x8xbf16>
    %c1 = arith.constant 1 : index
    %c0_28 = arith.constant 0 : index
    %c0_29 = arith.constant 0 : index
    %35 = vector.load %arg5[%c1, %c0_28, %c0_29] : memref<4x8x32xbf16, #tpu.memory_space<vmem>>, vector<1x8x32xbf16>
    %36 = vector.shape_cast %35 : vector<1x8x32xbf16> to vector<8x32xbf16>
    %cst_30 = arith.constant dense<0.000000e+00> : vector<8x32xf32>
    %37 = tpu.matmul %34, %36, %cst_30 {dimension_numbers = #tpu.dot_dimension_numbers<[1], [0], [0], [1], [0, 0, 1, 1], [], []>} : vector<8x8xbf16>, vector<8x32xbf16>, vector<8x32xf32> -> vector<8x32xf32>
    %38 = arith.addf %31, %37 : vector<8x32xf32>
    %39 = vector.extract_strided_slice %25 {offsets = [2, 0, 0], sizes = [1, 8, 8], strides = [1, 1, 1]} : vector<4x8x8xf32> to vector<1x8x8xf32>
    %40 = vector.shape_cast %39 : vector<1x8x8xf32> to vector<8x8xf32>
    %41 = arith.truncf %40 : vector<8x8xf32> to vector<8x8xbf16>
    %c2 = arith.constant 2 : index
    %c0_31 = arith.constant 0 : index
    %c0_32 = arith.constant 0 : index
    %42 = vector.load %arg5[%c2, %c0_31, %c0_32] : memref<4x8x32xbf16, #tpu.memory_space<vmem>>, vector<1x8x32xbf16>
    %43 = vector.shape_cast %42 : vector<1x8x32xbf16> to vector<8x32xbf16>
    %cst_33 = arith.constant dense<0.000000e+00> : vector<8x32xf32>
    %44 = tpu.matmul %41, %43, %cst_33 {dimension_numbers = #tpu.dot_dimension_numbers<[1], [0], [0], [1], [0, 0, 1, 1], [], []>} : vector<8x8xbf16>, vector<8x32xbf16>, vector<8x32xf32> -> vector<8x32xf32>
    %45 = arith.addf %38, %44 : vector<8x32xf32>
    %46 = vector.extract_strided_slice %25 {offsets = [3, 0, 0], sizes = [1, 8, 8], strides = [1, 1, 1]} : vector<4x8x8xf32> to vector<1x8x8xf32>
    %47 = vector.shape_cast %46 : vector<1x8x8xf32> to vector<8x8xf32>
    %48 = arith.truncf %47 : vector<8x8xf32> to vector<8x8xbf16>
    %c3 = arith.constant 3 : index
    %c0_34 = arith.constant 0 : index
    %c0_35 = arith.constant 0 : index
    %49 = vector.load %arg5[%c3, %c0_34, %c0_35] : memref<4x8x32xbf16, #tpu.memory_space<vmem>>, vector<1x8x32xbf16>
    %50 = vector.shape_cast %49 : vector<1x8x32xbf16> to vector<8x32xbf16>
    %cst_36 = arith.constant dense<0.000000e+00> : vector<8x32xf32>
    %51 = tpu.matmul %48, %50, %cst_36 {dimension_numbers = #tpu.dot_dimension_numbers<[1], [0], [0], [1], [0, 0, 1, 1], [], []>} : vector<8x8xbf16>, vector<8x32xbf16>, vector<8x32xf32> -> vector<8x32xf32>
    %52 = arith.addf %45, %51 : vector<8x32xf32>
    %53 = arith.extf %8 : vector<8x32xbf16> to vector<8x32xf32>
    %54 = arith.addf %53, %52 : vector<8x32xf32>
    %55 = vector.broadcast %6 : vector<1x32xf32> to vector<8x32xf32>
    %56 = arith.addf %54, %55 : vector<8x32xf32>
    %cst_37 = arith.constant dense<0.000000e+00> : vector<8xf32>
    %57 = vector.multi_reduction <add>, %56, %cst_37 [1] : vector<8x32xf32> to vector<8xf32>
    %58 = vector.shape_cast %57 : vector<8xf32> to vector<8x1xf32>
    %cst_38 = arith.constant 3.200000e+01 : f32
    %59 = vector.broadcast %cst_38 : f32 to vector<8x1xf32>
    %60 = arith.divf %58, %59 : vector<8x1xf32>
    %61 = vector.broadcast %60 : vector<8x1xf32> to vector<8x32xf32>
    %62 = arith.subf %56, %61 : vector<8x32xf32>
    %63 = arith.mulf %62, %62 : vector<8x32xf32>
    %cst_39 = arith.constant dense<0.000000e+00> : vector<8xf32>
    %64 = vector.multi_reduction <add>, %63, %cst_39 [1] : vector<8x32xf32> to vector<8xf32>
    %65 = vector.shape_cast %64 : vector<8xf32> to vector<8x1xf32>
    %cst_40 = arith.constant 3.200000e+01 : f32
    %66 = vector.broadcast %cst_40 : f32 to vector<8x1xf32>
    %67 = arith.divf %65, %66 : vector<8x1xf32>
    %68 = vector.broadcast %60 : vector<8x1xf32> to vector<8x32xf32>
    %69 = arith.subf %56, %68 : vector<8x32xf32>
    %cst_41 = arith.constant 9.99999974E-6 : f32
    %70 = vector.broadcast %cst_41 : f32 to vector<8x1xf32>
    %71 = arith.addf %67, %70 : vector<8x1xf32>
    %72 = math.rsqrt %71 : vector<8x1xf32>
    %73 = vector.broadcast %72 : vector<8x1xf32> to vector<8x32xf32>
    %74 = arith.mulf %69, %73 : vector<8x32xf32>
    %75 = vector.broadcast %9 : vector<1x32xf32> to vector<8x32xf32>
    %76 = arith.mulf %74, %75 : vector<8x32xf32>
    %77 = vector.broadcast %10 : vector<1x32xf32> to vector<8x32xf32>
    %78 = arith.addf %76, %77 : vector<8x32xf32>
    %79 = arith.truncf %78 : vector<8x32xf32> to vector<8x32xbf16>
    %c0_42 = arith.constant 0 : index
    %c0_43 = arith.constant 0 : index
    %c0_44 = arith.constant 0 : index
    %80 = vector.load %arg9[%c0_42, %c0_43, %c0_44] : memref<1x8x32xbf16, #tpu.memory_space<vmem>>, vector<1x8x32xbf16>
    %81 = vector.shape_cast %80 : vector<1x8x32xbf16> to vector<8x32xbf16>
    %82 = vector.shape_cast %79 : vector<8x32xbf16> to vector<1x8x32xbf16>
    tpu.vector_store %arg9[%c0_42, %c0_43, %c0_44], %82 {strides = array<i32>} : memref<1x8x32xbf16, #tpu.memory_space<vmem>>, vector<1x8x32xbf16>,
    return
  }
  func.func @transform_0(%arg0: i32) -> (i32, i32, i32, i32) {
    %c0_i32 = arith.constant 0 : i32
    %c0_i32_0 = arith.constant 0 : i32
    %c0_i32_1 = arith.constant 0 : i32
    %c0_i32_2 = arith.constant 0 : i32
    return %arg0, %c0_i32, %c0_i32_0, %c0_i32_1 : i32, i32, i32, i32
  }
  func.func @transform_1(%arg0: i32) -> (i32, i32, i32, i32) {
    %c0_i32 = arith.constant 0 : i32
    %c0_i32_0 = arith.constant 0 : i32
    %c0_i32_1 = arith.constant 0 : i32
    %c0_i32_2 = arith.constant 0 : i32
    return %arg0, %c0_i32, %c0_i32_0, %c0_i32_1 : i32, i32, i32, i32
  }
  func.func @transform_2(%arg0: i32) -> (i32, i32, i32, i32) {
    %c0_i32 = arith.constant 0 : i32
    %c0_i32_0 = arith.constant 0 : i32
    %c0_i32_1 = arith.constant 0 : i32
    %c0_i32_2 = arith.constant 0 : i32
    return %arg0, %c0_i32, %c0_i32_0, %c0_i32_1 : i32, i32, i32, i32
  }
  func.func @transform_3(%arg0: i32) -> (i32, i32, i32) {
    %c0_i32 = arith.constant 0 : i32
    %c0_i32_0 = arith.constant 0 : i32
    %c0_i32_1 = arith.constant 0 : i32
    return %arg0, %c0_i32, %c0_i32_0 : i32, i32, i32
  }
  func.func @transform_4(%arg0: i32) -> (i32, i32, i32) {
    %c0_i32 = arith.constant 0 : i32
    %c0_i32_0 = arith.constant 0 : i32
    %c0_i32_1 = arith.constant 0 : i32
    %c0_i32_2 = arith.constant 0 : i32
    return %c0_i32, %c0_i32_0, %c0_i32_1 : i32, i32, i32
  }
  func.func @transform_5(%arg0: i32) -> (i32, i32) {
    %c0_i32 = arith.constant 0 : i32
    %c0_i32_0 = arith.constant 0 : i32
    %c0_i32_1 = arith.constant 0 : i32
    return %c0_i32, %c0_i32_0 : i32, i32
  }
  func.func @transform_6(%arg0: i32) -> (i32, i32) {
    %c0_i32 = arith.constant 0 : i32
    %c0_i32_0 = arith.constant 0 : i32
    %c0_i32_1 = arith.constant 0 : i32
    return %c0_i32, %c0_i32_0 : i32, i32
  }
  func.func @transform_7(%arg0: i32) -> (i32, i32) {
    %c0_i32 = arith.constant 0 : i32
    %c0_i32_0 = arith.constant 0 : i32
    %c0_i32_1 = arith.constant 0 : i32
    return %c0_i32, %c0_i32_0 : i32, i32
  }
  func.func @transform_8(%arg0: i32) -> (i32, i32, i32) {
    %c0_i32 = arith.constant 0 : i32
    %c0_i32_0 = arith.constant 0 : i32
    %c0_i32_1 = arith.constant 0 : i32
    return %arg0, %c0_i32, %c0_i32_0 : i32, i32, i32
  }
}

module attributes {stable_mosaic.version = 11 : i64} {
  func.func @_linear_kernel(%arg0: i32, %arg1: i32, %arg2: memref<16x32xbf16, #tpu.memory_space<vmem>>, %arg3: memref<32x50xbf16, #tpu.memory_space<vmem>>, %arg4: memref<1x50xf32, #tpu.memory_space<vmem>>, %arg5: memref<16x50xf32, #tpu.memory_space<vmem>>) attributes {dimension_semantics = [#tpu.dimension_semantics<parallel>, #tpu.dimension_semantics<parallel>], iteration_bounds = array<i64: 1, 1>, scalar_prefetch = 0 : i64, scratch_operands = 0 : i64, tpu.core_type = #tpu.core_type<tc>, window_params = [{transform_indices = @transform_0, window_bounds = array<i64: 16, 32>}, {transform_indices = @transform_1, window_bounds = array<i64: 32, 50>}, {transform_indices = @transform_2, window_bounds = array<i64: 1, 50>}, {transform_indices = @transform_3, window_bounds = array<i64: 16, 50>}]} {
    %c0 = arith.constant 0 : index
    %c0_0 = arith.constant 0 : index
    %0 = vector.load %arg2[%c0, %c0_0] : memref<16x32xbf16, #tpu.memory_space<vmem>>, vector<16x32xbf16>
    %c0_1 = arith.constant 0 : index
    %c0_2 = arith.constant 0 : index
    %1 = vector.load %arg3[%c0_1, %c0_2] : memref<32x50xbf16, #tpu.memory_space<vmem>>, vector<32x50xbf16>
    %cst = arith.constant dense<0.000000e+00> : vector<16x50xf32>
    %2 = tpu.matmul %0, %1, %cst {dimension_numbers = #tpu.dot_dimension_numbers<[1], [0], [0], [1], [0, 0, 1, 1], [], []>} : vector<16x32xbf16>, vector<32x50xbf16>, vector<16x50xf32> -> vector<16x50xf32>
    %c0_3 = arith.constant 0 : index
    %c0_4 = arith.constant 0 : index
    %3 = vector.load %arg4[%c0_3, %c0_4] : memref<1x50xf32, #tpu.memory_space<vmem>>, vector<1x50xf32>
    %4 = vector.broadcast %3 : vector<1x50xf32> to vector<16x50xf32>
    %5 = arith.addf %2, %4 : vector<16x50xf32>
    %c0_5 = arith.constant 0 : index
    %c0_6 = arith.constant 0 : index
    %6 = vector.load %arg5[%c0_5, %c0_6] : memref<16x50xf32, #tpu.memory_space<vmem>>, vector<16x50xf32>
    tpu.vector_store %arg5[%c0_5, %c0_6], %5 {strides = array<i32>} : memref<16x50xf32, #tpu.memory_space<vmem>>, vector<16x50xf32>,
    return
  }
  func.func @transform_0(%arg0: i32, %arg1: i32) -> (i32, i32) {
    %c0_i32 = arith.constant 0 : i32
    %c0_i32_0 = arith.constant 0 : i32
    return %arg0, %c0_i32 : i32, i32
  }
  func.func @transform_1(%arg0: i32, %arg1: i32) -> (i32, i32) {
    %c0_i32 = arith.constant 0 : i32
    %c0_i32_0 = arith.constant 0 : i32
    return %c0_i32, %arg1 : i32, i32
  }
  func.func @transform_2(%arg0: i32, %arg1: i32) -> (i32, i32) {
    %c0_i32 = arith.constant 0 : i32
    %c0_i32_0 = arith.constant 0 : i32
    return %c0_i32, %arg1 : i32, i32
  }
  func.func @transform_3(%arg0: i32, %arg1: i32) -> (i32, i32) {
    %c0_i32 = arith.constant 0 : i32
    return %arg0, %arg1 : i32, i32
  }
}

</mosaic_0001>

<llo_original>
// kernel: visual_transformer_forward.17
$region0: #{visual_transformer_forward.17}
  #allocation0 [shape = 'u32[]', space=smem, size = 0x4, offset = 0x4, fixed_abs, tag = 'smem constant byte address 0x4 - core index']
  #allocation1 [shape = 'u32[72,128]{1,0:T(1,128)}', space=vmem, size = 0x9000, scoped, tag = 'internal scratch']
  %s0 = inlined_call_operand.vmem [shape: bf16[16,32], index: 0, kind: input, shape index: {}]
  %s1 = inlined_call_operand.vmem [shape: bf16[32,96], index: 1, kind: input, shape index: {}]
  %s2 = inlined_call_operand.vmem [shape: f32[1,96], index: 2, kind: input, shape index: {}]
  %s3 = inlined_call_operand.vmem [shape: bf16[16,96], index: 3, kind: output, shape index: {}]
  %s4 = sld [smem:[#allocation0]]
  $region22: #{visual_transformer_forward.17} parent=0
    _
  %s6 = ssub.s32 1, %s4
  %s7 = scalar_select 0, %s6, %s4
  // Predicated region
  $region2: #{visual_transformer_forward.17} parent=0 // pred_check
    _
  $region3: #{visual_transformer_forward.17} parent=0 // pred_check_branch
    %9 = sbr.rel (0) target = $region5
  $region4: #{visual_transformer_forward.17} parent=0 // pred_region
    _
  $region5: #{visual_transformer_forward.17} parent=0 // pred_fallthru
    _
  // Predicated region
  $region6: #{visual_transformer_forward.17} parent=0 // pred_check
    _
  $region7: #{visual_transformer_forward.17} parent=0 // pred_check_branch
    %11 = sbr.rel (0) target = $region9
  $region8: #{visual_transformer_forward.17} parent=0 // pred_region
    _
  $region9: #{visual_transformer_forward.17} parent=0 // pred_fallthru
    _
  // Predicated region
  $region10: #{visual_transformer_forward.17} parent=0 // pred_check
    _
  $region11: #{visual_transformer_forward.17} parent=0 // pred_check_branch
    %13 = sbr.rel (0) target = $region13
  $region12: #{visual_transformer_forward.17} parent=0 // pred_region
    _
  $region13: #{visual_transformer_forward.17} parent=0 // pred_fallthru
    _
  %v15 = vld [vmem:[%s0] sm:$0xf]
  %v16 = vld [vmem:[%s0 + $0x4] sm:$0xf]
  %v17 = vld [vmem:[%s1] sm:$0xf]
  %v18 = vld [vmem:[%s1 + $0x4] sm:$0xf]
  %v19 = vld [vmem:[%s1 + $0x8] sm:$0xf]
  %v20 = vld [vmem:[%s1 + $0xc] sm:$0xf]
  %v21 = vld [vmem:[%s2] sm:$0x1]
  %v23 = vperm.slane %v21, 0
  %v27 = vunpack.c.l.b16 %v15
  %v28 = vunpack.c.l.b16 %v16
  %v29 = vpack.c.b16 %v28, %v27
  %v34 = vunpack.c.l.b16 %v17
  %v35 = vunpack.c.l.b16 %v18
  %v36 = vunpack.c.l.b16 %v19
  %v37 = vunpack.c.l.b16 %v20
  %v38 = vpack.c.b16 %v35, %v34
  %v39 = vpack.c.b16 %v37, %v36
  %vm42 = vcmask 261120
  %v44 = vsel %vm42, %v29, 0
  %46 = vmatpush.bf16.msra.mxu0 0
  %47 = vmatpush.bf16.msra.mxu0 0
  %48 = vmatpush.bf16.msra.mxu0 0
  %49 = vmatpush.bf16.msra.mxu0 0
  %50 = vmatpush.bf16.msra.mxu0 0
  %51 = vmatpush.bf16.msra.mxu0 0
  %52 = vmatpush.bf16.msra.mxu0 %v39
  %53 = vmatpush.bf16.msra.mxu0 %v38
  %54 = vmatmul.bf16.gmra.mxu0 %v44
  %v55 = vpop.f32.mrf.mxu0
  %v56 = vadd.f32 %v23, %v55
  %v57 = vpop.f32.mrf.mxu0
  %v58 = vadd.f32 %v23, %v57
  %59 = vdwg.mxu0
  %v60 = vpack.c.bf16 %v56, %v56
  %v61 = vpack.c.bf16 %v58, %v58
  %vm62 = vcmask 781312
  %63 = vst.msk [vmem:[%s3] sm:$0xf] %vm62, %v60
  %64 = vst.msk [vmem:[%s3 + $0x4] sm:$0xf] %vm62, %v61
  // Predicated region
  $region14: #{visual_transformer_forward.17} parent=0 // pred_check
    _
  $region15: #{visual_transformer_forward.17} parent=0 // pred_check_branch
    %66 = sbr.rel (0) target = $region17
  $region16: #{visual_transformer_forward.17} parent=0 // pred_region
    _
  $region17: #{visual_transformer_forward.17} parent=0 // pred_fallthru
    _
  // Predicated region
  $region18: #{visual_transformer_forward.17} parent=0 // pred_check
    _
  $region19: #{visual_transformer_forward.17} parent=0 // pred_check_branch
    %68 = sbr.rel (0) target = $region21
  $region20: #{visual_transformer_forward.17} parent=0 // pred_region
    _
  $region21: #{visual_transformer_forward.17} parent=0 // pred_fallthru
    _

// kernel: visual_transformer_forward.19
$region0: #{visual_transformer_forward.19}
  #allocation0 [shape = 'u32[]', space=smem, size = 0x4, offset = 0x4, fixed_abs, tag = 'smem constant byte address 0x4 - core index']
  #allocation1 [shape = 'u32[72,128]{1,0:T(1,128)}', space=vmem, size = 0x9000, scoped, tag = 'internal scratch']
  %s0 = inlined_call_operand.vmem [shape: bf16[16,32], index: 0, kind: input, shape index: {}]
  %s1 = inlined_call_operand.vmem [shape: bf16[32,32], index: 1, kind: input, shape index: {}]
  %s2 = inlined_call_operand.vmem [shape: f32[1,32], index: 2, kind: input, shape index: {}]
  %s3 = inlined_call_operand.vmem [shape: bf16[16,32], index: 3, kind: output, shape index: {}]
  %s4 = sld [smem:[#allocation0]]
  $region22: #{visual_transformer_forward.19} parent=0
    _
  %s6 = ssub.s32 1, %s4
  %s7 = scalar_select 0, %s6, %s4
  // Predicated region
  $region2: #{visual_transformer_forward.19} parent=0 // pred_check
    _
  $region3: #{visual_transformer_forward.19} parent=0 // pred_check_branch
    %9 = sbr.rel (0) target = $region5
  $region4: #{visual_transformer_forward.19} parent=0 // pred_region
    _
  $region5: #{visual_transformer_forward.19} parent=0 // pred_fallthru
    _
  // Predicated region
  $region6: #{visual_transformer_forward.19} parent=0 // pred_check
    _
  $region7: #{visual_transformer_forward.19} parent=0 // pred_check_branch
    %11 = sbr.rel (0) target = $region9
  $region8: #{visual_transformer_forward.19} parent=0 // pred_region
    _
  $region9: #{visual_transformer_forward.19} parent=0 // pred_fallthru
    _
  // Predicated region
  $region10: #{visual_transformer_forward.19} parent=0 // pred_check
    _
  $region11: #{visual_transformer_forward.19} parent=0 // pred_check_branch
    %13 = sbr.rel (0) target = $region13
  $region12: #{visual_transformer_forward.19} parent=0 // pred_region
    _
  $region13: #{visual_transformer_forward.19} parent=0 // pred_fallthru
    _
  %v15 = vld [vmem:[%s0] sm:$0xf]
  %v16 = vld [vmem:[%s0 + $0x4] sm:$0xf]
  %v17 = vld [vmem:[%s1] sm:$0xf]
  %v18 = vld [vmem:[%s1 + $0x4] sm:$0xf]
  %v19 = vld [vmem:[%s1 + $0x8] sm:$0xf]
  %v20 = vld [vmem:[%s1 + $0xc] sm:$0xf]
  %v21 = vld [vmem:[%s2] sm:$0x1]
  %v23 = vperm.slane %v21, 0
  %v27 = vunpack.c.l.b16 %v15
  %v28 = vunpack.c.l.b16 %v16
  %v29 = vpack.c.b16 %v28, %v27
  %v34 = vunpack.c.l.b16 %v17
  %v35 = vunpack.c.l.b16 %v18
  %v36 = vunpack.c.l.b16 %v19
  %v37 = vunpack.c.l.b16 %v20
  %v38 = vpack.c.b16 %v35, %v34
  %v39 = vpack.c.b16 %v37, %v36
  %vm42 = vcmask 261120
  %v44 = vsel %vm42, %v29, 0
  %46 = vmatpush.bf16.msra.mxu0 0
  %47 = vmatpush.bf16.msra.mxu0 0
  %48 = vmatpush.bf16.msra.mxu0 0
  %49 = vmatpush.bf16.msra.mxu0 0
  %50 = vmatpush.bf16.msra.mxu0 0
  %51 = vmatpush.bf16.msra.mxu0 0
  %52 = vmatpush.bf16.msra.mxu0 %v39
  %53 = vmatpush.bf16.msra.mxu0 %v38
  %54 = vmatmul.bf16.gmra.mxu0 %v44
  %v55 = vpop.f32.mrf.mxu0
  %v56 = vadd.f32 %v23, %v55
  %v57 = vpop.f32.mrf.mxu0
  %v58 = vadd.f32 %v23, %v57
  %59 = vdwg.mxu0
  %v60 = vpack.c.bf16 %v56, %v56
  %v61 = vpack.c.bf16 %v58, %v58
  %vm62 = vcmask 257024
  %63 = vst.msk [vmem:[%s3] sm:$0xf] %vm62, %v60
  %64 = vst.msk [vmem:[%s3 + $0x4] sm:$0xf] %vm62, %v61
  // Predicated region
  $region14: #{visual_transformer_forward.19} parent=0 // pred_check
    _
  $region15: #{visual_transformer_forward.19} parent=0 // pred_check_branch
    %66 = sbr.rel (0) target = $region17
  $region16: #{visual_transformer_forward.19} parent=0 // pred_region
    _
  $region17: #{visual_transformer_forward.19} parent=0 // pred_fallthru
    _
  // Predicated region
  $region18: #{visual_transformer_forward.19} parent=0 // pred_check
    _
  $region19: #{visual_transformer_forward.19} parent=0 // pred_check_branch
    %68 = sbr.rel (0) target = $region21
  $region20: #{visual_transformer_forward.19} parent=0 // pred_region
    _
  $region21: #{visual_transformer_forward.19} parent=0 // pred_fallthru
    _

// kernel: visual_transformer_forward.15
$region0: #{visual_transformer_forward.15}
  #allocation0 [shape = 'u32[]', space=smem, size = 0x4, offset = 0x4, fixed_abs, tag = 'smem constant byte address 0x4 - core index']
  #allocation1 [shape = 'u32[72,128]{1,0:T(1,128)}', space=vmem, size = 0x9000, scoped, tag = 'internal scratch']
  %s0 = inlined_call_operand.vmem [shape: f32[2,8,32], index: 0, kind: input, shape index: {}]
  %s1 = inlined_call_operand.vmem [shape: f32[8,32], index: 1, kind: input, shape index: {}]
  %s2 = inlined_call_operand.vmem [shape: bf16[2,8,32], index: 2, kind: output, shape index: {}]
  %s3 = sld [smem:[#allocation0]]
  $region41: #{visual_transformer_forward.15} parent=0
    _
  %s5 = ssub.s32 1, %s3
  %s6 = scalar_select 0, %s5, %s3
  loop: start=0, step=1, limit=4
  $region2: #{visual_transformer_forward.15} parent=0 // loop_pre_header
    _
  $region3: #{visual_transformer_forward.15} parent=0 // loop_header
    %s8 = sphi 0, %s12
    %p9 = scmp.ge.s32.totalorder %s8, 4
    %s18 = sphi 0, %s20
    %s21 = sphi 0, %s18
    %s22 = sphi 0, %s21
    %s38 = sphi 0, %s22
    %s42 = sphi 0, %s42
    %s44 = sphi 0, %s42
    %s45 = sphi 0, %s44
    %s59 = sphi 0, %s45
    %s65 = sphi 0, %s67
    %s68 = sphi 0, %s65
    %s69 = sphi 0, %s68
    %s85 = sphi 0, %s69
  $region4: #{visual_transformer_forward.15} parent=0 // loop_header_branch
    %11 = sbr.rel (%p9) target = $region8
  $region5: #{visual_transformer_forward.15} parent=0 // loop_body
    %s13 = ssub.s32 %s8, 1
    %s14 = ssub.s32 %s8, 2
    %s15 = sadd.s32 %s8, 1
    %s16 = ssub.s32 %s8, %s15
    %p17 = scmp.eq.s32.totalorder %s16, 0
    %s19 = sadd.s32 %s18, 1
    %s20 = scalar_select %p17, %s18, %s19
    %p23 = pneg %p17
    %p24 = scmp.eq.s32.totalorder %s8, 1
    %p25 = por %p23, %p24
    %p26 = scmp.ne.s32.totalorder %s18, %s21
    %p27 = scmp.eq.s32.totalorder %s8, 0
    %p28 = por %p26, %p27
    %p29 = scmp.ne.s32.totalorder %s18, %s21
    %p30 = scmp.eq.s32.totalorder %s13, 1
    %p31 = por %p29, %p30
    %p32 = scmp.ne.s32.totalorder %s21, %s22
    %p33 = scmp.eq.s32.totalorder %s13, 0
    %p34 = por %p32, %p33
    %p35 = scmp.ne.s32.totalorder %s21, %s22
    %p36 = scmp.eq.s32.totalorder %s14, 1
    %p37 = por %p35, %p36
    %p39 = scmp.ne.s32.totalorder %s22, %s38
    %p40 = scmp.eq.s32.totalorder %s14, 0
    %p41 = por %p39, %p40
    %s43 = sadd.s32 %s42, 1
    %p46 = scmp.eq.s32.totalorder %s8, 1
    %p47 = scmp.ne.s32.totalorder %s42, %s44
    %p48 = scmp.eq.s32.totalorder %s8, 0
    %p49 = por %p47, %p48
    %p50 = scmp.ne.s32.totalorder %s42, %s44
    %p51 = scmp.eq.s32.totalorder %s13, 1
    %p52 = por %p50, %p51
    %p53 = scmp.ne.s32.totalorder %s44, %s45
    %p54 = scmp.eq.s32.totalorder %s13, 0
    %p55 = por %p53, %p54
    %p56 = scmp.ne.s32.totalorder %s44, %s45
    %p57 = scmp.eq.s32.totalorder %s14, 1
    %p58 = por %p56, %p57
    %p60 = scmp.ne.s32.totalorder %s45, %s59
    %p61 = scmp.eq.s32.totalorder %s14, 0
    %p62 = por %p60, %p61
    %s63 = ssub.s32 %s8, %s15
    %p64 = scmp.eq.s32.totalorder %s63, 0
    %s66 = sadd.s32 %s65, 1
    %s67 = scalar_select %p64, %s65, %s66
    %p70 = pneg %p64
    %p71 = scmp.eq.s32.totalorder %s8, 1
    %p72 = por %p70, %p71
    %p73 = scmp.ne.s32.totalorder %s65, %s68
    %p74 = scmp.eq.s32.totalorder %s8, 0
    %p75 = por %p73, %p74
    %p76 = scmp.ne.s32.totalorder %s65, %s68
    %p77 = scmp.eq.s32.totalorder %s13, 1
    %p78 = por %p76, %p77
    %p79 = scmp.ne.s32.totalorder %s68, %s69
    %p80 = scmp.eq.s32.totalorder %s13, 0
    %p81 = por %p79, %p80
    %p82 = scmp.ne.s32.totalorder %s68, %s69
    %p83 = scmp.eq.s32.totalorder %s14, 1
    %p84 = por %p82, %p83
    %p86 = scmp.ne.s32.totalorder %s69, %s85
    %p87 = scmp.eq.s32.totalorder %s14, 0
    %p88 = por %p86, %p87
    %p89 = scmp.le.s32.totalorder 1, %s8
    %p90 = scmp.lt.s32.totalorder %s8, 3
    %p91 = pnand %p89, %p90
    %p92 = pneg %p91
    // Predicated region
    $region9: #{visual_transformer_forward.15} parent=5 // pred_check
      _
    $region10: #{visual_transformer_forward.15} parent=5 // pred_check_branch
      %94 = sbr.rel (%p91) target = $region12
    $region11: #{visual_transformer_forward.15} parent=5 // pred_region
      %s95 = ssub.s32 %s8, 1
      // Predicated region
      $region13: #{visual_transformer_forward.15} parent=11 // pred_check
        %p96 = pneg %p55
      $region14: #{visual_transformer_forward.15} parent=11 // pred_check_branch
        %98 = sbr.rel (%p96) target = $region16
      $region15: #{visual_transformer_forward.15} parent=11 // pred_region
        _
      $region16: #{visual_transformer_forward.15} parent=11 // pred_fallthru
        _
    $region12: #{visual_transformer_forward.15} parent=5 // pred_fallthru
      _
    %p99 = scmp.lt.s32.totalorder %s8, 2
    // Predicated region
    $region17: #{visual_transformer_forward.15} parent=5 // pred_check
      %p100 = pneg %p99
    $region18: #{visual_transformer_forward.15} parent=5 // pred_check_branch
      %102 = sbr.rel (%p100) target = $region20
    $region19: #{visual_transformer_forward.15} parent=5 // pred_region
      // Predicated region
      $region21: #{visual_transformer_forward.15} parent=19 // pred_check
        %p103 = pneg %p28
      $region22: #{visual_transformer_forward.15} parent=19 // pred_check_branch
        %105 = sbr.rel (%p103) target = $region24
      $region23: #{visual_transformer_forward.15} parent=19 // pred_region
        %p106 = scmp.lt.s32.totalorder %s8, 1
        %s107 = scalar_select %p106, %s8, 1
        %s108 = smul.addr %s107, 8
        %s109 = scalar_lea.vmem %s0, %s108
      $region24: #{visual_transformer_forward.15} parent=19 // pred_fallthru
        _
    $region20: #{visual_transformer_forward.15} parent=5 // pred_fallthru
      _
    %p110 = scmp.le.s32.totalorder 1, %s8
    %p111 = scmp.lt.s32.totalorder %s8, 3
    %p112 = pnand %p110, %p111
    %p113 = pneg %p112
    // Predicated region
    $region25: #{visual_transformer_forward.15} parent=5 // pred_check
      _
    $region26: #{visual_transformer_forward.15} parent=5 // pred_check_branch
      %115 = sbr.rel (%p112) target = $region28
    $region27: #{visual_transformer_forward.15} parent=5 // pred_region
      %s116 = ssub.s32 %s8, 1
      %p117 = scmp.lt.s32.totalorder %s13, 1
      %s118 = scalar_select %p117, %s13, 1
      %s119 = smul.addr %s118, 8
      %s120 = scalar_lea.vmem %s0, %s119
      %p121 = pneg %p34
      %p122 = pneg %p31
      %p123 = pneg %p55
      %p124 = pneg %p52
      %p125 = pneg %p81
      %p126 = pneg %p78
      %p127 = scmp.lt.s32.totalorder %s13, 1
      %s128 = scalar_select %p127, %s13, 1
      %s129 = smul.addr %s128, 4
      %s130 = scalar_lea.vmem %s2, %s129
      %p131 = scmp.lt.s32.totalorder %s13, 1
      %s132 = scalar_select %p131, %s13, 1
      %s133 = smul.addr %s132, 8
      %s134 = scalar_lea.vmem %s0, %s133
      %p135 = scmp.lt.s32.totalorder %s13, 1
      %s136 = scalar_select %p135, %s13, 1
      %s137 = smul.addr %s136, 4
      %s138 = scalar_lea.vmem %s2, %s137
      %v139 = vld [vmem:[%s134] sm:$0xff]
      %v140 = vmul.f32 %v139, 5.656854
      %v141 = vld [vmem:[%s1] sm:$0xff]
      %v142 = vadd.f32 %v140, %v141
      %v143 = vpack.c.bf16 %v142, %v142
      %vm144 = vcmask 257024
      %145 = vst.msk [vmem:[%s138] sm:$0xf] %vm144, %v143
      %p146 = scmp.lt.s32.totalorder %s13, 1
      %s147 = scalar_select %p146, %s13, 1
      %s148 = smul.addr %s147, 4
      %s149 = scalar_lea.vmem %s2, %s148
      // Predicated region
      $region29: #{visual_transformer_forward.15} parent=27 // pred_check
        %p150 = pneg %p78
      $region30: #{visual_transformer_forward.15} parent=27 // pred_check_branch
        %152 = sbr.rel (%p150) target = $region32
      $region31: #{visual_transformer_forward.15} parent=27 // pred_region
        _
      $region32: #{visual_transformer_forward.15} parent=27 // pred_fallthru
        _
    $region28: #{visual_transformer_forward.15} parent=5 // pred_fallthru
      _
    %p153 = scmp.le.s32.totalorder 2, %s8
    // Predicated region
    $region33: #{visual_transformer_forward.15} parent=5 // pred_check
      %p154 = pneg %p153
    $region34: #{visual_transformer_forward.15} parent=5 // pred_check_branch
      %156 = sbr.rel (%p154) target = $region36
    $region35: #{visual_transformer_forward.15} parent=5 // pred_region
      %s157 = ssub.s32 %s8, 2
      // Predicated region
      $region37: #{visual_transformer_forward.15} parent=35 // pred_check
        %p158 = pneg %p84
      $region38: #{visual_transformer_forward.15} parent=35 // pred_check_branch
        %160 = sbr.rel (%p158) target = $region40
      $region39: #{visual_transformer_forward.15} parent=35 // pred_region
        %p161 = scmp.lt.s32.totalorder %s14, 1
        %s162 = scalar_select %p161, %s14, 1
        %s163 = smul.addr %s162, 4
        %s164 = scalar_lea.vmem %s2, %s163
      $region40: #{visual_transformer_forward.15} parent=35 // pred_fallthru
        _
    $region36: #{visual_transformer_forward.15} parent=5 // pred_fallthru
      _
  $region6: #{visual_transformer_forward.15} parent=0 // loop_footer
    %s12 = sadd.s32 1, %s8
  $region7: #{visual_transformer_forward.15} parent=0 // loop_footer_branch
    %7 = sbr.rel target = $region3
  $region8: #{visual_transformer_forward.15} parent=0 // loop_exit
    _

// kernel: visual_transformer_forward.18
$region0: #{visual_transformer_forward.18}
  #allocation0 [shape = 'u32[]', space=smem, size = 0x4, offset = 0x4, fixed_abs, tag = 'smem constant byte address 0x4 - core index']
  #allocation1 [shape = 'u32[72,128]{1,0:T(1,128)}', space=vmem, size = 0x9000, scoped, tag = 'internal scratch']
  %s0 = inlined_call_operand.vmem [shape: bf16[2,4,8,8], index: 0, kind: input, shape index: {}]
  %s1 = inlined_call_operand.vmem [shape: bf16[2,4,8,8], index: 1, kind: input, shape index: {}]
  %s2 = inlined_call_operand.vmem [shape: bf16[2,4,8,8], index: 2, kind: input, shape index: {}]
  %s3 = inlined_call_operand.vmem [shape: bf16[2,8,32], index: 3, kind: input, shape index: {}]
  %s4 = inlined_call_operand.vmem [shape: f32[8,8], index: 4, kind: input, shape index: {}]
  %s5 = inlined_call_operand.vmem [shape: f32[2,1,8], index: 5, kind: input, shape index: {}]
  %s6 = inlined_call_operand.vmem [shape: bf16[4,8,32], index: 6, kind: input, shape index: {}]
  %s7 = inlined_call_operand.vmem [shape: f32[1,32], index: 7, kind: input, shape index: {}]
  %s8 = inlined_call_operand.vmem [shape: f32[1,32], index: 8, kind: input, shape index: {}]
  %s9 = inlined_call_operand.vmem [shape: f32[1,32], index: 9, kind: input, shape index: {}]
  %s10 = inlined_call_operand.vmem [shape: bf16[2,8,32], index: 10, kind: output, shape index: {}]
  %s11 = sld [smem:[#allocation0]]
  $region73: #{visual_transformer_forward.18} parent=0
    _
  %s13 = ssub.s32 1, %s11
  %s14 = scalar_select 0, %s13, %s11
  loop: start=0, step=1, limit=4
  $region2: #{visual_transformer_forward.18} parent=0 // loop_pre_header
    _
  $region3: #{visual_transformer_forward.18} parent=0 // loop_header
    %s16 = sphi 0, %s20
    %p17 = scmp.ge.s32.totalorder %s16, 4
    %s26 = sphi 0, %s28
    %s29 = sphi 0, %s26
    %s30 = sphi 0, %s29
    %s46 = sphi 0, %s30
    %s52 = sphi 0, %s54
    %s55 = sphi 0, %s52
    %s56 = sphi 0, %s55
    %s72 = sphi 0, %s56
    %s78 = sphi 0, %s80
    %s81 = sphi 0, %s78
    %s82 = sphi 0, %s81
    %s98 = sphi 0, %s82
    %s104 = sphi 0, %s106
    %s107 = sphi 0, %s104
    %s108 = sphi 0, %s107
    %s124 = sphi 0, %s108
    %s128 = sphi 0, %s128
    %s130 = sphi 0, %s128
    %s131 = sphi 0, %s130
    %s145 = sphi 0, %s131
    %s151 = sphi 0, %s153
    %s154 = sphi 0, %s151
    %s155 = sphi 0, %s154
    %s171 = sphi 0, %s155
    %s175 = sphi 0, %s175
    %s177 = sphi 0, %s175
    %s178 = sphi 0, %s177
    %s192 = sphi 0, %s178
    %s196 = sphi 0, %s196
    %s198 = sphi 0, %s196
    %s199 = sphi 0, %s198
    %s213 = sphi 0, %s199
    %s217 = sphi 0, %s217
    %s219 = sphi 0, %s217
    %s220 = sphi 0, %s219
    %s234 = sphi 0, %s220
    %s238 = sphi 0, %s238
    %s240 = sphi 0, %s238
    %s241 = sphi 0, %s240
    %s255 = sphi 0, %s241
    %s261 = sphi 0, %s263
    %s264 = sphi 0, %s261
    %s265 = sphi 0, %s264
    %s281 = sphi 0, %s265
  $region4: #{visual_transformer_forward.18} parent=0 // loop_header_branch
    %19 = sbr.rel (%p17) target = $region8
  $region5: #{visual_transformer_forward.18} parent=0 // loop_body
    %s21 = ssub.s32 %s16, 1
    %s22 = ssub.s32 %s16, 2
    %s23 = sadd.s32 %s16, 1
    %s24 = ssub.s32 %s16, %s23
    %p25 = scmp.eq.s32.totalorder %s24, 0
    %s27 = sadd.s32 %s26, 1
    %s28 = scalar_select %p25, %s26, %s27
    %p31 = pneg %p25
    %p32 = scmp.eq.s32.totalorder %s16, 1
    %p33 = por %p31, %p32
    %p34 = scmp.ne.s32.totalorder %s26, %s29
    %p35 = scmp.eq.s32.totalorder %s16, 0
    %p36 = por %p34, %p35
    %p37 = scmp.ne.s32.totalorder %s26, %s29
    %p38 = scmp.eq.s32.totalorder %s21, 1
    %p39 = por %p37, %p38
    %p40 = scmp.ne.s32.totalorder %s29, %s30
    %p41 = scmp.eq.s32.totalorder %s21, 0
    %p42 = por %p40, %p41
    %p43 = scmp.ne.s32.totalorder %s29, %s30
    %p44 = scmp.eq.s32.totalorder %s22, 1
    %p45 = por %p43, %p44
    %p47 = scmp.ne.s32.totalorder %s30, %s46
    %p48 = scmp.eq.s32.totalorder %s22, 0
    %p49 = por %p47, %p48
    %s50 = ssub.s32 %s16, %s23
    %p51 = scmp.eq.s32.totalorder %s50, 0
    %s53 = sadd.s32 %s52, 1
    %s54 = scalar_select %p51, %s52, %s53
    %p57 = pneg %p51
    %p58 = scmp.eq.s32.totalorder %s16, 1
    %p59 = por %p57, %p58
    %p60 = scmp.ne.s32.totalorder %s52, %s55
    %p61 = scmp.eq.s32.totalorder %s16, 0
    %p62 = por %p60, %p61
    %p63 = scmp.ne.s32.totalorder %s52, %s55
    %p64 = scmp.eq.s32.totalorder %s21, 1
    %p65 = por %p63, %p64
    %p66 = scmp.ne.s32.totalorder %s55, %s56
    %p67 = scmp.eq.s32.totalorder %s21, 0
    %p68 = por %p66, %p67
    %p69 = scmp.ne.s32.totalorder %s55, %s56
    %p70 = scmp.eq.s32.totalorder %s22, 1
    %p71 = por %p69, %p70
    %p73 = scmp.ne.s32.totalorder %s56, %s72
    %p74 = scmp.eq.s32.totalorder %s22, 0
    %p75 = por %p73, %p74
    %s76 = ssub.s32 %s16, %s23
    %p77 = scmp.eq.s32.totalorder %s76, 0
    %s79 = sadd.s32 %s78, 1
    %s80 = scalar_select %p77, %s78, %s79
    %p83 = pneg %p77
    %p84 = scmp.eq.s32.totalorder %s16, 1
    %p85 = por %p83, %p84
    %p86 = scmp.ne.s32.totalorder %s78, %s81
    %p87 = scmp.eq.s32.totalorder %s16, 0
    %p88 = por %p86, %p87
    %p89 = scmp.ne.s32.totalorder %s78, %s81
    %p90 = scmp.eq.s32.totalorder %s21, 1
    %p91 = por %p89, %p90
    %p92 = scmp.ne.s32.totalorder %s81, %s82
    %p93 = scmp.eq.s32.totalorder %s21, 0
    %p94 = por %p92, %p93
    %p95 = scmp.ne.s32.totalorder %s81, %s82
    %p96 = scmp.eq.s32.totalorder %s22, 1
    %p97 = por %p95, %p96
    %p99 = scmp.ne.s32.totalorder %s82, %s98
    %p100 = scmp.eq.s32.totalorder %s22, 0
    %p101 = por %p99, %p100
    %s102 = ssub.s32 %s16, %s23
    %p103 = scmp.eq.s32.totalorder %s102, 0
    %s105 = sadd.s32 %s104, 1
    %s106 = scalar_select %p103, %s104, %s105
    %p109 = pneg %p103
    %p110 = scmp.eq.s32.totalorder %s16, 1
    %p111 = por %p109, %p110
    %p112 = scmp.ne.s32.totalorder %s104, %s107
    %p113 = scmp.eq.s32.totalorder %s16, 0
    %p114 = por %p112, %p113
    %p115 = scmp.ne.s32.totalorder %s104, %s107
    %p116 = scmp.eq.s32.totalorder %s21, 1
    %p117 = por %p115, %p116
    %p118 = scmp.ne.s32.totalorder %s107, %s108
    %p119 = scmp.eq.s32.totalorder %s21, 0
    %p120 = por %p118, %p119
    %p121 = scmp.ne.s32.totalorder %s107, %s108
    %p122 = scmp.eq.s32.totalorder %s22, 1
    %p123 = por %p121, %p122
    %p125 = scmp.ne.s32.totalorder %s108, %s124
    %p126 = scmp.eq.s32.totalorder %s22, 0
    %p127 = por %p125, %p126
    %s129 = sadd.s32 %s128, 1
    %p132 = scmp.eq.s32.totalorder %s16, 1
    %p133 = scmp.ne.s32.totalorder %s128, %s130
    %p134 = scmp.eq.s32.totalorder %s16, 0
    %p135 = por %p133, %p134
    %p136 = scmp.ne.s32.totalorder %s128, %s130
    %p137 = scmp.eq.s32.totalorder %s21, 1
    %p138 = por %p136, %p137
    %p139 = scmp.ne.s32.totalorder %s130, %s131
    %p140 = scmp.eq.s32.totalorder %s21, 0
    %p141 = por %p139, %p140
    %p142 = scmp.ne.s32.totalorder %s130, %s131
    %p143 = scmp.eq.s32.totalorder %s22, 1
    %p144 = por %p142, %p143
    %p146 = scmp.ne.s32.totalorder %s131, %s145
    %p147 = scmp.eq.s32.totalorder %s22, 0
    %p148 = por %p146, %p147
    %s149 = ssub.s32 %s16, %s23
    %p150 = scmp.eq.s32.totalorder %s149, 0
    %s152 = sadd.s32 %s151, 1
    %s153 = scalar_select %p150, %s151, %s152
    %p156 = pneg %p150
    %p157 = scmp.eq.s32.totalorder %s16, 1
    %p158 = por %p156, %p157
    %p159 = scmp.ne.s32.totalorder %s151, %s154
    %p160 = scmp.eq.s32.totalorder %s16, 0
    %p161 = por %p159, %p160
    %p162 = scmp.ne.s32.totalorder %s151, %s154
    %p163 = scmp.eq.s32.totalorder %s21, 1
    %p164 = por %p162, %p163
    %p165 = scmp.ne.s32.totalorder %s154, %s155
    %p166 = scmp.eq.s32.totalorder %s21, 0
    %p167 = por %p165, %p166
    %p168 = scmp.ne.s32.totalorder %s154, %s155
    %p169 = scmp.eq.s32.totalorder %s22, 1
    %p170 = por %p168, %p169
    %p172 = scmp.ne.s32.totalorder %s155, %s171
    %p173 = scmp.eq.s32.totalorder %s22, 0
    %p174 = por %p172, %p173
    %s176 = sadd.s32 %s175, 1
    %p179 = scmp.eq.s32.totalorder %s16, 1
    %p180 = scmp.ne.s32.totalorder %s175, %s177
    %p181 = scmp.eq.s32.totalorder %s16, 0
    %p182 = por %p180, %p181
    %p183 = scmp.ne.s32.totalorder %s175, %s177
    %p184 = scmp.eq.s32.totalorder %s21, 1
    %p185 = por %p183, %p184
    %p186 = scmp.ne.s32.totalorder %s177, %s178
    %p187 = scmp.eq.s32.totalorder %s21, 0
    %p188 = por %p186, %p187
    %p189 = scmp.ne.s32.totalorder %s177, %s178
    %p190 = scmp.eq.s32.totalorder %s22, 1
    %p191 = por %p189, %p190
    %p193 = scmp.ne.s32.totalorder %s178, %s192
    %p194 = scmp.eq.s32.totalorder %s22, 0
    %p195 = por %p193, %p194
    %s197 = sadd.s32 %s196, 1
    %p200 = scmp.eq.s32.totalorder %s16, 1
    %p201 = scmp.ne.s32.totalorder %s196, %s198
    %p202 = scmp.eq.s32.totalorder %s16, 0
    %p203 = por %p201, %p202
    %p204 = scmp.ne.s32.totalorder %s196, %s198
    %p205 = scmp.eq.s32.totalorder %s21, 1
    %p206 = por %p204, %p205
    %p207 = scmp.ne.s32.totalorder %s198, %s199
    %p208 = scmp.eq.s32.totalorder %s21, 0
    %p209 = por %p207, %p208
    %p210 = scmp.ne.s32.totalorder %s198, %s199
    %p211 = scmp.eq.s32.totalorder %s22, 1
    %p212 = por %p210, %p211
    %p214 = scmp.ne.s32.totalorder %s199, %s213
    %p215 = scmp.eq.s32.totalorder %s22, 0
    %p216 = por %p214, %p215
    %s218 = sadd.s32 %s217, 1
    %p221 = scmp.eq.s32.totalorder %s16, 1
    %p222 = scmp.ne.s32.totalorder %s217, %s219
    %p223 = scmp.eq.s32.totalorder %s16, 0
    %p224 = por %p222, %p223
    %p225 = scmp.ne.s32.totalorder %s217, %s219
    %p226 = scmp.eq.s32.totalorder %s21, 1
    %p227 = por %p225, %p226
    %p228 = scmp.ne.s32.totalorder %s219, %s220
    %p229 = scmp.eq.s32.totalorder %s21, 0
    %p230 = por %p228, %p229
    %p231 = scmp.ne.s32.totalorder %s219, %s220
    %p232 = scmp.eq.s32.totalorder %s22, 1
    %p233 = por %p231, %p232
    %p235 = scmp.ne.s32.totalorder %s220, %s234
    %p236 = scmp.eq.s32.totalorder %s22, 0
    %p237 = por %p235, %p236
    %s239 = sadd.s32 %s238, 1
    %p242 = scmp.eq.s32.totalorder %s16, 1
    %p243 = scmp.ne.s32.totalorder %s238, %s240
    %p244 = scmp.eq.s32.totalorder %s16, 0
    %p245 = por %p243, %p244
    %p246 = scmp.ne.s32.totalorder %s238, %s240
    %p247 = scmp.eq.s32.totalorder %s21, 1
    %p248 = por %p246, %p247
    %p249 = scmp.ne.s32.totalorder %s240, %s241
    %p250 = scmp.eq.s32.totalorder %s21, 0
    %p251 = por %p249, %p250
    %p252 = scmp.ne.s32.totalorder %s240, %s241
    %p253 = scmp.eq.s32.totalorder %s22, 1
    %p254 = por %p252, %p253
    %p256 = scmp.ne.s32.totalorder %s241, %s255
    %p257 = scmp.eq.s32.totalorder %s22, 0
    %p258 = por %p256, %p257
    %s259 = ssub.s32 %s16, %s23
    %p260 = scmp.eq.s32.totalorder %s259, 0
    %s262 = sadd.s32 %s261, 1
    %s263 = scalar_select %p260, %s261, %s262
    %p266 = pneg %p260
    %p267 = scmp.eq.s32.totalorder %s16, 1
    %p268 = por %p266, %p267
    %p269 = scmp.ne.s32.totalorder %s261, %s264
    %p270 = scmp.eq.s32.totalorder %s16, 0
    %p271 = por %p269, %p270
    %p272 = scmp.ne.s32.totalorder %s261, %s264
    %p273 = scmp.eq.s32.totalorder %s21, 1
    %p274 = por %p272, %p273
    %p275 = scmp.ne.s32.totalorder %s264, %s265
    %p276 = scmp.eq.s32.totalorder %s21, 0
    %p277 = por %p275, %p276
    %p278 = scmp.ne.s32.totalorder %s264, %s265
    %p279 = scmp.eq.s32.totalorder %s22, 1
    %p280 = por %p278, %p279
    %p282 = scmp.ne.s32.totalorder %s265, %s281
    %p283 = scmp.eq.s32.totalorder %s22, 0
    %p284 = por %p282, %p283
    %p285 = scmp.le.s32.totalorder 1, %s16
    %p286 = scmp.lt.s32.totalorder %s16, 3
    %p287 = pnand %p285, %p286
    %p288 = pneg %p287
    // Predicated region
    $region9: #{visual_transformer_forward.18} parent=5 // pred_check
      _
    $region10: #{visual_transformer_forward.18} parent=5 // pred_check_branch
      %290 = sbr.rel (%p287) target = $region12
    $region11: #{visual_transformer_forward.18} parent=5 // pred_region
      %s291 = ssub.s32 %s16, 1
      // Predicated region
      $region13: #{visual_transformer_forward.18} parent=11 // pred_check
        %p292 = pneg %p141
      $region14: #{visual_transformer_forward.18} parent=11 // pred_check_branch
        %294 = sbr.rel (%p292) target = $region16
      $region15: #{visual_transformer_forward.18} parent=11 // pred_region
        _
      $region16: #{visual_transformer_forward.18} parent=11 // pred_fallthru
        _
      // Predicated region
      $region17: #{visual_transformer_forward.18} parent=11 // pred_check
        %p295 = pneg %p188
      $region18: #{visual_transformer_forward.18} parent=11 // pred_check_branch
        %297 = sbr.rel (%p295) target = $region20
      $region19: #{visual_transformer_forward.18} parent=11 // pred_region
        _
      $region20: #{visual_transformer_forward.18} parent=11 // pred_fallthru
        _
      // Predicated region
      $region21: #{visual_transformer_forward.18} parent=11 // pred_check
        %p298 = pneg %p209
      $region22: #{visual_transformer_forward.18} parent=11 // pred_check_branch
        %300 = sbr.rel (%p298) target = $region24
      $region23: #{visual_transformer_forward.18} parent=11 // pred_region
        _
      $region24: #{visual_transformer_forward.18} parent=11 // pred_fallthru
        _
      // Predicated region
      $region25: #{visual_transformer_forward.18} parent=11 // pred_check
        %p301 = pneg %p230
      $region26: #{visual_transformer_forward.18} parent=11 // pred_check_branch
        %303 = sbr.rel (%p301) target = $region28
      $region27: #{visual_transformer_forward.18} parent=11 // pred_region
        _
      $region28: #{visual_transformer_forward.18} parent=11 // pred_fallthru
        _
      // Predicated region
      $region29: #{visual_transformer_forward.18} parent=11 // pred_check
        %p304 = pneg %p251
      $region30: #{visual_transformer_forward.18} parent=11 // pred_check_branch
        %306 = sbr.rel (%p304) target = $region32
      $region31: #{visual_transformer_forward.18} parent=11 // pred_region
        _
      $region32: #{visual_transformer_forward.18} parent=11 // pred_fallthru
        _
    $region12: #{visual_transformer_forward.18} parent=5 // pred_fallthru
      _
    %p307 = scmp.lt.s32.totalorder %s16, 2
    // Predicated region
    $region33: #{visual_transformer_forward.18} parent=5 // pred_check
      %p308 = pneg %p307
    $region34: #{visual_transformer_forward.18} parent=5 // pred_check_branch
      %310 = sbr.rel (%p308) target = $region36
    $region35: #{visual_transformer_forward.18} parent=5 // pred_region
      // Predicated region
      $region37: #{visual_transformer_forward.18} parent=35 // pred_check
        %p311 = pneg %p36
      $region38: #{visual_transformer_forward.18} parent=35 // pred_check_branch
        %313 = sbr.rel (%p311) target = $region40
      $region39: #{visual_transformer_forward.18} parent=35 // pred_region
        %p314 = scmp.lt.s32.totalorder %s16, 1
        %s315 = scalar_select %p314, %s16, 1
        %s316 = smul.addr %s315, 4
        %s317 = smul.addr %s316, 4
        %s318 = scalar_lea.vmem %s0, %s317
      $region40: #{visual_transformer_forward.18} parent=35 // pred_fallthru
        _
      // Predicated region
      $region41: #{visual_transformer_forward.18} parent=35 // pred_check
        %p319 = pneg %p62
      $region42: #{visual_transformer_forward.18} parent=35 // pred_check_branch
        %321 = sbr.rel (%p319) target = $region44
      $region43: #{visual_transformer_forward.18} parent=35 // pred_region
        %p322 = scmp.lt.s32.totalorder %s16, 1
        %s323 = scalar_select %p322, %s16, 1
        %s324 = smul.addr %s323, 4
        %s325 = smul.addr %s324, 4
        %s326 = scalar_lea.vmem %s1, %s325
      $region44: #{visual_transformer_forward.18} parent=35 // pred_fallthru
        _
      // Predicated region
      $region45: #{visual_transformer_forward.18} parent=35 // pred_check
        %p327 = pneg %p88
      $region46: #{visual_transformer_forward.18} parent=35 // pred_check_branch
        %329 = sbr.rel (%p327) target = $region48
      $region47: #{visual_transformer_forward.18} parent=35 // pred_region
        %p330 = scmp.lt.s32.totalorder %s16, 1
        %s331 = scalar_select %p330, %s16, 1
        %s332 = smul.addr %s331, 4
        %s333 = smul.addr %s332, 4
        %s334 = scalar_lea.vmem %s2, %s333
      $region48: #{visual_transformer_forward.18} parent=35 // pred_fallthru
        _
      // Predicated region
      $region49: #{visual_transformer_forward.18} parent=35 // pred_check
        %p335 = pneg %p114
      $region50: #{visual_transformer_forward.18} parent=35 // pred_check_branch
        %337 = sbr.rel (%p335) target = $region52
      $region51: #{visual_transformer_forward.18} parent=35 // pred_region
        %p338 = scmp.lt.s32.totalorder %s16, 1
        %s339 = scalar_select %p338, %s16, 1
        %s340 = smul.addr %s339, 4
        %s341 = scalar_lea.vmem %s3, %s340
      $region52: #{visual_transformer_forward.18} parent=35 // pred_fallthru
        _
      // Predicated region
      $region53: #{visual_transformer_forward.18} parent=35 // pred_check
        %p342 = pneg %p161
      $region54: #{visual_transformer_forward.18} parent=35 // pred_check_branch
        %344 = sbr.rel (%p342) target = $region56
      $region55: #{visual_transformer_forward.18} parent=35 // pred_region
        %p345 = scmp.lt.s32.totalorder %s16, 1
        %s346 = scalar_select %p345, %s16, 1
        %s347 = scalar_lea.vmem %s5, %s346
      $region56: #{visual_transformer_forward.18} parent=35 // pred_fallthru
        _
    $region36: #{visual_transformer_forward.18} parent=5 // pred_fallthru
      _
    %p348 = scmp.le.s32.totalorder 1, %s16
    %p349 = scmp.lt.s32.totalorder %s16, 3
    %p350 = pnand %p348, %p349
    %p351 = pneg %p350
    // Predicated region
    $region57: #{visual_transformer_forward.18} parent=5 // pred_check
      _
    $region58: #{visual_transformer_forward.18} parent=5 // pred_check_branch
      %353 = sbr.rel (%p350) target = $region60
    $region59: #{visual_transformer_forward.18} parent=5 // pred_region
      %s354 = ssub.s32 %s16, 1
      %p355 = scmp.lt.s32.totalorder %s21, 1
      %s356 = scalar_select %p355, %s21, 1
      %s357 = smul.addr %s356, 4
      %s358 = smul.addr %s357, 4
      %s359 = scalar_lea.vmem %s0, %s358
      %p360 = pneg %p42
      %p361 = pneg %p39
      %p362 = scmp.lt.s32.totalorder %s21, 1
      %s363 = scalar_select %p362, %s21, 1
      %s364 = smul.addr %s363, 4
      %s365 = smul.addr %s364, 4
      %s366 = scalar_lea.vmem %s1, %s365
      %p367 = pneg %p68
      %p368 = pneg %p65
      %p369 = scmp.lt.s32.totalorder %s21, 1
      %s370 = scalar_select %p369, %s21, 1
      %s371 = smul.addr %s370, 4
      %s372 = smul.addr %s371, 4
      %s373 = scalar_lea.vmem %s2, %s372
      %p374 = pneg %p94
      %p375 = pneg %p91
      %p376 = scmp.lt.s32.totalorder %s21, 1
      %s377 = scalar_select %p376, %s21, 1
      %s378 = smul.addr %s377, 4
      %s379 = scalar_lea.vmem %s3, %s378
      %p380 = pneg %p120
      %p381 = pneg %p117
      %p382 = pneg %p141
      %p383 = pneg %p138
      %p384 = scmp.lt.s32.totalorder %s21, 1
      %s385 = scalar_select %p384, %s21, 1
      %s386 = scalar_lea.vmem %s5, %s385
      %p387 = pneg %p167
      %p388 = pneg %p164
      %p389 = pneg %p188
      %p390 = pneg %p185
      %p391 = pneg %p209
      %p392 = pneg %p206
      %p393 = pneg %p230
      %p394 = pneg %p227
      %p395 = pneg %p251
      %p396 = pneg %p248
      %p397 = pneg %p277
      %p398 = pneg %p274
      %p399 = scmp.lt.s32.totalorder %s21, 1
      %s400 = scalar_select %p399, %s21, 1
      %s401 = smul.addr %s400, 4
      %s402 = scalar_lea.vmem %s10, %s401
      %p403 = scmp.lt.s32.totalorder %s21, 1
      %s404 = scalar_select %p403, %s21, 1
      %s405 = smul.addr %s404, 4
      %s406 = smul.addr %s405, 4
      %s407 = scalar_lea.vmem %s0, %s406
      %p408 = scmp.lt.s32.totalorder %s21, 1
      %s409 = scalar_select %p408, %s21, 1
      %s410 = smul.addr %s409, 4
      %s411 = smul.addr %s410, 4
      %s412 = scalar_lea.vmem %s1, %s411
      %p413 = scmp.lt.s32.totalorder %s21, 1
      %s414 = scalar_select %p413, %s21, 1
      %s415 = smul.addr %s414, 4
      %s416 = smul.addr %s415, 4
      %s417 = scalar_lea.vmem %s2, %s416
      %p418 = scmp.lt.s32.totalorder %s21, 1
      %s419 = scalar_select %p418, %s21, 1
      %s420 = smul.addr %s419, 4
      %s421 = scalar_lea.vmem %s3, %s420
      %p422 = scmp.lt.s32.totalorder %s21, 1
      %s423 = scalar_select %p422, %s21, 1
      %s424 = scalar_lea.vmem %s5, %s423
      %p425 = scmp.lt.s32.totalorder %s21, 1
      %s426 = scalar_select %p425, %s21, 1
      %s427 = smul.addr %s426, 4
      %s428 = scalar_lea.vmem %s10, %s427
      %v430 = vld [vmem:[%s4] sm:$0xff]
      %v431 = vld [vmem:[%s424] sm:$0x1]
      %v433 = vperm.slane %v431, 0
      %v435 = vadd.f32 %v430, %v433
      %v436 = vld [vmem:[%s407] sm:$0xf]
      %v437 = vld [vmem:[%s407 + $0x4] sm:$0xf]
      %v438 = vld [vmem:[%s407 + $0x8] sm:$0xf]
      %v439 = vld [vmem:[%s407 + $0xc] sm:$0xf]
      %v440 = vld [vmem:[%s412] sm:$0xf]
      %v441 = vld [vmem:[%s412 + $0x4] sm:$0xf]
      %v442 = vld [vmem:[%s412 + $0x8] sm:$0xf]
      %v443 = vld [vmem:[%s412 + $0xc] sm:$0xf]
      %v444 = vld [vmem:[%s417] sm:$0xf]
      %v445 = vld [vmem:[%s417 + $0x4] sm:$0xf]
      %v446 = vld [vmem:[%s417 + $0x8] sm:$0xf]
      %v447 = vld [vmem:[%s417 + $0xc] sm:$0xf]
      %v448 = vld [vmem:[%s7] sm:$0x1]
      %v449 = vld [vmem:[%s421] sm:$0xf]
      %v450 = vld [vmem:[%s8] sm:$0x1]
      %v451 = vld [vmem:[%s9] sm:$0x1]
      %vm452 = vcmask 64512
      %v454 = vsel %vm452, %v436, 0
      %v457 = vsel %vm452, %v440, 0
      %459 = vmatpush.bf16.xpose.msra.mxu0 0
      %460 = vmatpush.bf16.xpose.msra.mxu0 0
      %461 = vmatpush.bf16.xpose.msra.mxu0 0
      %462 = vmatpush.bf16.xpose.msra.mxu0 0
      %463 = vmatpush.bf16.xpose.msra.mxu0 0
      %464 = vmatpush.bf16.xpose.msra.mxu0 0
      %465 = vmatpush.bf16.xpose.msra.mxu0 0
      %466 = vmatpush.bf16.xpose.msra.mxu0 %v457
      %467 = vmatmul.bf16.gmra.mxu0 %v454
      %v468 = vpop.f32.mrf.mxu0
      %v469 = vadd.f32 0.0, %v468
      %v470 = vpop.f32.mrf.mxu0
      %471 = vdwg.mxu0
      %v473 = vsel %vm452, %v437, 0
      %v476 = vsel %vm452, %v441, 0
      %478 = vmatpush.bf16.xpose.msra.mxu0 0
      %479 = vmatpush.bf16.xpose.msra.mxu0 0
      %480 = vmatpush.bf16.xpose.msra.mxu0 0
      %481 = vmatpush.bf16.xpose.msra.mxu0 0
      %482 = vmatpush.bf16.xpose.msra.mxu0 0
      %483 = vmatpush.bf16.xpose.msra.mxu0 0
      %484 = vmatpush.bf16.xpose.msra.mxu0 0
      %485 = vmatpush.bf16.xpose.msra.mxu0 %v476
      %486 = vmatmul.bf16.gmra.mxu0 %v473
      %v487 = vpop.f32.mrf.mxu0
      %v488 = vadd.f32 0.0, %v487
      %v489 = vpop.f32.mrf.mxu0
      %490 = vdwg.mxu0
      %v492 = vsel %vm452, %v438, 0
      %v495 = vsel %vm452, %v442, 0
      %497 = vmatpush.bf16.xpose.msra.mxu0 0
      %498 = vmatpush.bf16.xpose.msra.mxu0 0
      %499 = vmatpush.bf16.xpose.msra.mxu0 0
      %500 = vmatpush.bf16.xpose.msra.mxu0 0
      %501 = vmatpush.bf16.xpose.msra.mxu0 0
      %502 = vmatpush.bf16.xpose.msra.mxu0 0
      %503 = vmatpush.bf16.xpose.msra.mxu0 0
      %504 = vmatpush.bf16.xpose.msra.mxu0 %v495
      %505 = vmatmul.bf16.gmra.mxu0 %v492
      %v506 = vpop.f32.mrf.mxu0
      %v507 = vadd.f32 0.0, %v506
      %v508 = vpop.f32.mrf.mxu0
      %509 = vdwg.mxu0
      %v511 = vsel %vm452, %v439, 0
      %v514 = vsel %vm452, %v443, 0
      %516 = vmatpush.bf16.xpose.msra.mxu0 0
      %517 = vmatpush.bf16.xpose.msra.mxu0 0
      %518 = vmatpush.bf16.xpose.msra.mxu0 0
      %519 = vmatpush.bf16.xpose.msra.mxu0 0
      %520 = vmatpush.bf16.xpose.msra.mxu0 0
      %521 = vmatpush.bf16.xpose.msra.mxu0 0
      %522 = vmatpush.bf16.xpose.msra.mxu0 0
      %523 = vmatpush.bf16.xpose.msra.mxu0 %v514
      %524 = vmatmul.bf16.gmra.mxu0 %v511
      %v525 = vpop.f32.mrf.mxu0
      %v526 = vadd.f32 0.0, %v525
      %v527 = vpop.f32.mrf.mxu0
      %528 = vdwg.mxu0
      %v529 = vmul.f32 %v469, 0.35355338
      %v530 = vmul.f32 %v488, 0.35355338
      %v531 = vmul.f32 %v507, 0.35355338
      %v532 = vmul.f32 %v526, 0.35355338
      %v533 = vadd.f32 %v529, %v435
      %v534 = vadd.f32 %v530, %v435
      %v535 = vadd.f32 %v531, %v435
      %v536 = vadd.f32 %v532, %v435
      %v537 = vsel %vm452, %v533, -inf
      %538 = vmax.xlane.f32.xlu0 %v537
      %v539 = vpop.xlane.xlu0 %538
      %v540 = vsel %vm452, %v534, -inf
      %541 = vmax.xlane.f32.xlu0 %v540
      %v542 = vpop.xlane.xlu0 %541
      %v543 = vsel %vm452, %v535, -inf
      %544 = vmax.xlane.f32.xlu0 %v543
      %v545 = vpop.xlane.xlu0 %544
      %v546 = vsel %vm452, %v536, -inf
      %547 = vmax.xlane.f32.xlu0 %v546
      %v548 = vpop.xlane.xlu0 %547
      %v549 = vsub.f32 %v533, %v539
      %v550 = vsub.f32 %v534, %v542
      %v551 = vsub.f32 %v535, %v545
      %v552 = vsub.f32 %v536, %v548
      %v553 = vmul.f32 %v549, 1.442695
      %v554 = vpow.pop %v553
      %v555 = vmul.f32 %v550, 1.442695
      %v556 = vpow.pop %v555
      %v557 = vmul.f32 %v551, 1.442695
      %v558 = vpow.pop %v557
      %v559 = vmul.f32 %v552, 1.442695
      %v560 = vpow.pop %v559
      %v561 = vsel %vm452, %v554, 0.0
      %562 = vadd.xlane.f32.xlu0 %v561
      %v563 = vpop.xlane.xlu0 %562
      %v564 = vsel %vm452, %v556, 0.0
      %565 = vadd.xlane.f32.xlu0 %v564
      %v566 = vpop.xlane.xlu0 %565
      %v567 = vsel %vm452, %v558, 0.0
      %568 = vadd.xlane.f32.xlu0 %v567
      %v569 = vpop.xlane.xlu0 %568
      %v570 = vsel %vm452, %v560, 0.0
      %571 = vadd.xlane.f32.xlu0 %v570
      %v572 = vpop.xlane.xlu0 %571
      %v573 = vrcp.pop %v563
      %v574 = vrcp.pop %v566
      %v575 = vrcp.pop %v569
      %v576 = vrcp.pop %v572
      %v577 = vmul.f32 %v554, %v573
      %v578 = vmul.f32 %v556, %v574
      %v579 = vmul.f32 %v558, %v575
      %v580 = vmul.f32 %v560, %v576
      %v581 = vpack.c.bf16 %v577, %v577
      %v582 = vpack.c.bf16 %v578, %v578
      %v583 = vpack.c.bf16 %v579, %v579
      %v584 = vpack.c.bf16 %v580, %v580
      %v586 = vsel %vm452, %v581, 0
      %vm588 = vcmask 1043456
      %v590 = vsel %vm588, %v444, 0
      %592 = vmatpush.bf16.msra.mxu0 0
      %593 = vmatpush.bf16.msra.mxu0 0
      %594 = vmatpush.bf16.msra.mxu0 0
      %595 = vmatpush.bf16.msra.mxu0 0
      %596 = vmatpush.bf16.msra.mxu0 0
      %597 = vmatpush.bf16.msra.mxu0 0
      %598 = vmatpush.bf16.msra.mxu0 0
      %599 = vmatpush.bf16.msra.mxu0 %v590
      %600 = vmatmul.bf16.gmra.mxu0 %v586
      %v601 = vpop.f32.mrf.mxu0
      %v602 = vadd.f32 0.0, %v601
      %v603 = vpop.f32.mrf.mxu0
      %604 = vdwg.mxu0
      %v606 = vsel %vm452, %v582, 0
      %v609 = vsel %vm588, %v445, 0
      %611 = vmatpush.bf16.msra.mxu0 0
      %612 = vmatpush.bf16.msra.mxu0 0
      %613 = vmatpush.bf16.msra.mxu0 0
      %614 = vmatpush.bf16.msra.mxu0 0
      %615 = vmatpush.bf16.msra.mxu0 0
      %616 = vmatpush.bf16.msra.mxu0 0
      %617 = vmatpush.bf16.msra.mxu0 0
      %618 = vmatpush.bf16.msra.mxu0 %v609
      %619 = vmatmul.bf16.gmra.mxu0 %v606
      %v620 = vpop.f32.mrf.mxu0
      %v621 = vadd.f32 0.0, %v620
      %v622 = vpop.f32.mrf.mxu0
      %623 = vdwg.mxu0
      %v625 = vsel %vm452, %v583, 0
      %v628 = vsel %vm588, %v446, 0
      %630 = vmatpush.bf16.msra.mxu0 0
      %631 = vmatpush.bf16.msra.mxu0 0
      %632 = vmatpush.bf16.msra.mxu0 0
      %633 = vmatpush.bf16.msra.mxu0 0
      %634 = vmatpush.bf16.msra.mxu0 0
      %635 = vmatpush.bf16.msra.mxu0 0
      %636 = vmatpush.bf16.msra.mxu0 0
      %637 = vmatpush.bf16.msra.mxu0 %v628
      %638 = vmatmul.bf16.gmra.mxu0 %v625
      %v639 = vpop.f32.mrf.mxu0
      %v640 = vadd.f32 0.0, %v639
      %v641 = vpop.f32.mrf.mxu0
      %642 = vdwg.mxu0
      %v644 = vsel %vm452, %v584, 0
      %v647 = vsel %vm588, %v447, 0
      %649 = vmatpush.bf16.msra.mxu0 0
      %650 = vmatpush.bf16.msra.mxu0 0
      %651 = vmatpush.bf16.msra.mxu0 0
      %652 = vmatpush.bf16.msra.mxu0 0
      %653 = vmatpush.bf16.msra.mxu0 0
      %654 = vmatpush.bf16.msra.mxu0 0
      %655 = vmatpush.bf16.msra.mxu0 0
      %656 = vmatpush.bf16.msra.mxu0 %v647
      %657 = vmatmul.bf16.gmra.mxu0 %v644
      %v658 = vpop.f32.mrf.mxu0
      %v659 = vadd.f32 0.0, %v658
      %v660 = vpop.f32.mrf.mxu0
      %661 = vdwg.mxu0
      %v662 = vpack.c.bf16 %v602, %v602
      %v663 = vld [vmem:[%s6] sm:$0xf]
      %v664 = vpack.c.bf16 %v621, %v621
      %s665 = scalar_lea.vmem %s6, 4
      %v666 = vld [vmem:[%s665] sm:$0xf]
      %v668 = vsel %vm452, %v664, 0
      %v671 = vsel %vm588, %v666, 0
      %673 = vmatpush.bf16.msra.mxu0 0
      %674 = vmatpush.bf16.msra.mxu0 0
      %675 = vmatpush.bf16.msra.mxu0 0
      %676 = vmatpush.bf16.msra.mxu0 0
      %677 = vmatpush.bf16.msra.mxu0 0
      %678 = vmatpush.bf16.msra.mxu0 0
      %679 = vmatpush.bf16.msra.mxu0 0
      %680 = vmatpush.bf16.msra.mxu0 %v671
      %681 = vmatmul.bf16.gmra.mxu0 %v668
      %v682 = vpop.f32.mrf.mxu0
      %v683 = vadd.f32 0.0, %v682
      %v684 = vpop.f32.mrf.mxu0
      %685 = vdwg.mxu0
      %v687 = vsel %vm452, %v662, 0
      %v690 = vsel %vm588, %v663, 0
      %692 = vmatpush.bf16.msra.mxu0 0
      %693 = vmatpush.bf16.msra.mxu0 0
      %694 = vmatpush.bf16.msra.mxu0 0
      %695 = vmatpush.bf16.msra.mxu0 0
      %696 = vmatpush.bf16.msra.mxu0 0
      %697 = vmatpush.bf16.msra.mxu0 0
      %698 = vmatpush.bf16.msra.mxu0 0
      %699 = vmatpush.bf16.msra.mxu0 %v690
      %700 = vmatmul.bf16.gmra.mxu0 %v687
      %v701 = vpop.f32.mrf.mxu0
      %v702 = vadd.f32 %v683, %v701
      %v703 = vpop.f32.mrf.mxu0
      %704 = vdwg.mxu0
      %v705 = vpack.c.bf16 %v640, %v640
      %s706 = scalar_lea.vmem %s6, 8
      %v707 = vld [vmem:[%s706] sm:$0xf]
      %v709 = vsel %vm452, %v705, 0
      %v712 = vsel %vm588, %v707, 0
      %714 = vmatpush.bf16.msra.mxu0 0
      %715 = vmatpush.bf16.msra.mxu0 0
      %716 = vmatpush.bf16.msra.mxu0 0
      %717 = vmatpush.bf16.msra.mxu0 0
      %718 = vmatpush.bf16.msra.mxu0 0
      %719 = vmatpush.bf16.msra.mxu0 0
      %720 = vmatpush.bf16.msra.mxu0 0
      %721 = vmatpush.bf16.msra.mxu0 %v712
      %722 = vmatmul.bf16.gmra.mxu0 %v709
      %v723 = vpop.f32.mrf.mxu0
      %v724 = vadd.f32 0.0, %v723
      %v725 = vpop.f32.mrf.mxu0
      %726 = vdwg.mxu0
      %v727 = vadd.f32 %v702, %v724
      %v728 = vpack.c.bf16 %v659, %v659
      %s729 = scalar_lea.vmem %s6, 12
      %v730 = vld [vmem:[%s729] sm:$0xf]
      %v732 = vsel %vm452, %v728, 0
      %v735 = vsel %vm588, %v730, 0
      %737 = vmatpush.bf16.msra.mxu0 0
      %738 = vmatpush.bf16.msra.mxu0 0
      %739 = vmatpush.bf16.msra.mxu0 0
      %740 = vmatpush.bf16.msra.mxu0 0
      %741 = vmatpush.bf16.msra.mxu0 0
      %742 = vmatpush.bf16.msra.mxu0 0
      %743 = vmatpush.bf16.msra.mxu0 0
      %744 = vmatpush.bf16.msra.mxu0 %v735
      %745 = vmatmul.bf16.gmra.mxu0 %v732
      %v746 = vpop.f32.mrf.mxu0
      %v747 = vadd.f32 0.0, %v746
      %v748 = vpop.f32.mrf.mxu0
      %749 = vdwg.mxu0
      %v750 = vadd.f32 %v727, %v747
      %v751 = vunpack.c.l.bf16 %v449
      %v752 = vadd.f32 %v751, %v750
      %v754 = vperm.slane %v448, 0
      %v756 = vadd.f32 %v752, %v754
      %vm757 = vcmask 261120
      %v758 = vsel %vm757, %v756, 0.0
      %759 = vadd.xlane.f32.xlu0 %v758
      %v760 = vpop.xlane.xlu0 %759
      %v761 = vrcp.pop 32.0
      %v762 = vmul.f32 32.0, %v761
      %v763 = vsub.f32 1.0, %v762
      %v764 = vmul.f32 %v761, %v763
      %v765 = vadd.f32 %v761, %v764
      %vm766 = vweird.f32 %v761
      %v767 = vsel %vm766, %v761, %v765
      %v768 = vmul.f32 %v760, %v767
      %v769 = vsub.f32 %v756, %v768
      %v770 = vmul.f32 %v769, %v769
      %v771 = vsel %vm757, %v770, 0.0
      %772 = vadd.xlane.f32.xlu0 %v771
      %v773 = vpop.xlane.xlu0 %772
      %v774 = vmul.f32 %v773, %v767
      %v775 = vadd.f32 %v774, 1e-05
      %v776 = vrsqrt.pop %v775
      %v777 = vmul.f32 %v776, %v775
      %v778 = vmul.f32 %v777, %v776
      %v779 = vmul.f32 0.5, %v778
      %v780 = vsub.f32 1.5, %v779
      %v781 = vmul.f32 %v776, %v780
      %vm782 = vweird.f32 %v775
      %vm783 = vweird.f32 %v776
      %vm784 = vmor %vm782, %vm783
      %v785 = vsel %vm784, %v776, %v781
      %v786 = vmul.f32 %v769, %v785
      %v788 = vperm.slane %v450, 0
      %v790 = vmul.f32 %v786, %v788
      %v792 = vperm.slane %v451, 0
      %v794 = vadd.f32 %v790, %v792
      %v795 = vpack.c.bf16 %v794, %v794
      %vm796 = vcmask 257024
      %797 = vst.msk [vmem:[%s428] sm:$0xf] %vm796, %v795
      %p798 = scmp.lt.s32.totalorder %s21, 1
      %s799 = scalar_select %p798, %s21, 1
      %s800 = smul.addr %s799, 4
      %s801 = scalar_lea.vmem %s10, %s800
      // Predicated region
      $region61: #{visual_transformer_forward.18} parent=59 // pred_check
        %p802 = pneg %p274
      $region62: #{visual_transformer_forward.18} parent=59 // pred_check_branch
        %804 = sbr.rel (%p802) target = $region64
      $region63: #{visual_transformer_forward.18} parent=59 // pred_region
        _
      $region64: #{visual_transformer_forward.18} parent=59 // pred_fallthru
        _
    $region60: #{visual_transformer_forward.18} parent=5 // pred_fallthru
      _
    %p805 = scmp.le.s32.totalorder 2, %s16
    // Predicated region
    $region65: #{visual_transformer_forward.18} parent=5 // pred_check
      %p806 = pneg %p805
    $region66: #{visual_transformer_forward.18} parent=5 // pred_check_branch
      %808 = sbr.rel (%p806) target = $region68
    $region67: #{visual_transformer_forward.18} parent=5 // pred_region
      %s809 = ssub.s32 %s16, 2
      // Predicated region
      $region69: #{visual_transformer_forward.18} parent=67 // pred_check
        %p810 = pneg %p280
      $region70: #{visual_transformer_forward.18} parent=67 // pred_check_branch
        %812 = sbr.rel (%p810) target = $region72
      $region71: #{visual_transformer_forward.18} parent=67 // pred_region
        %p813 = scmp.lt.s32.totalorder %s22, 1
        %s814 = scalar_select %p813, %s22, 1
        %s815 = smul.addr %s814, 4
        %s816 = scalar_lea.vmem %s10, %s815
      $region72: #{visual_transformer_forward.18} parent=67 // pred_fallthru
        _
    $region68: #{visual_transformer_forward.18} parent=5 // pred_fallthru
      _
  $region6: #{visual_transformer_forward.18} parent=0 // loop_footer
    %s20 = sadd.s32 1, %s16
  $region7: #{visual_transformer_forward.18} parent=0 // loop_footer_branch
    %15 = sbr.rel target = $region3
  $region8: #{visual_transformer_forward.18} parent=0 // loop_exit
    _

// kernel: visual_transformer_forward.16
$region0: #{visual_transformer_forward.16}
  #allocation0 [shape = 'u32[]', space=smem, size = 0x4, offset = 0x4, fixed_abs, tag = 'smem constant byte address 0x4 - core index']
  #allocation1 [shape = 'u32[72,128]{1,0:T(1,128)}', space=vmem, size = 0x9000, scoped, tag = 'internal scratch']
  %s0 = inlined_call_operand.vmem [shape: bf16[32,48], index: 0, kind: input, shape index: {}]
  %s1 = inlined_call_operand.vmem [shape: bf16[48,32], index: 1, kind: input, shape index: {}]
  %s2 = inlined_call_operand.vmem [shape: f32[1,32], index: 2, kind: input, shape index: {}]
  %s3 = inlined_call_operand.vmem [shape: bf16[32,32], index: 3, kind: output, shape index: {}]
  %s4 = sld [smem:[#allocation0]]
  $region22: #{visual_transformer_forward.16} parent=0
    _
  %s6 = ssub.s32 1, %s4
  %s7 = scalar_select 0, %s6, %s4
  // Predicated region
  $region2: #{visual_transformer_forward.16} parent=0 // pred_check
    _
  $region3: #{visual_transformer_forward.16} parent=0 // pred_check_branch
    %9 = sbr.rel (0) target = $region5
  $region4: #{visual_transformer_forward.16} parent=0 // pred_region
    _
  $region5: #{visual_transformer_forward.16} parent=0 // pred_fallthru
    _
  // Predicated region
  $region6: #{visual_transformer_forward.16} parent=0 // pred_check
    _
  $region7: #{visual_transformer_forward.16} parent=0 // pred_check_branch
    %11 = sbr.rel (0) target = $region9
  $region8: #{visual_transformer_forward.16} parent=0 // pred_region
    _
  $region9: #{visual_transformer_forward.16} parent=0 // pred_fallthru
    _
  // Predicated region
  $region10: #{visual_transformer_forward.16} parent=0 // pred_check
    _
  $region11: #{visual_transformer_forward.16} parent=0 // pred_check_branch
    %13 = sbr.rel (0) target = $region13
  $region12: #{visual_transformer_forward.16} parent=0 // pred_region
    _
  $region13: #{visual_transformer_forward.16} parent=0 // pred_fallthru
    _
  %v15 = vld [vmem:[%s0] sm:$0xf]
  %v16 = vld [vmem:[%s0 + $0x4] sm:$0xf]
  %v17 = vld [vmem:[%s0 + $0x8] sm:$0xf]
  %v18 = vld [vmem:[%s0 + $0xc] sm:$0xf]
  %v19 = vld [vmem:[%s1] sm:$0xf]
  %v20 = vld [vmem:[%s1 + $0x4] sm:$0xf]
  %v21 = vld [vmem:[%s1 + $0x8] sm:$0xf]
  %v22 = vld [vmem:[%s1 + $0xc] sm:$0xf]
  %v23 = vld [vmem:[%s1 + $0x10] sm:$0xf]
  %v24 = vld [vmem:[%s1 + $0x14] sm:$0xf]
  %v25 = vld [vmem:[%s2] sm:$0x1]
  %v27 = vperm.slane %v25, 0
  %v33 = vunpack.c.l.b16 %v15
  %v34 = vunpack.c.l.b16 %v16
  %v35 = vunpack.c.l.b16 %v17
  %v36 = vunpack.c.l.b16 %v18
  %v37 = vpack.c.b16 %v34, %v33
  %v38 = vpack.c.b16 %v36, %v35
  %v45 = vunpack.c.l.b16 %v19
  %v46 = vunpack.c.l.b16 %v20
  %v47 = vunpack.c.l.b16 %v21
  %v48 = vunpack.c.l.b16 %v22
  %v49 = vunpack.c.l.b16 %v23
  %v50 = vunpack.c.l.b16 %v24
  %v51 = vpack.c.b16 %v46, %v45
  %v52 = vpack.c.b16 %v48, %v47
  %v53 = vpack.c.b16 %v50, %v49
  %vm57 = vcmask 392192
  %v59 = vsel %vm57, %v37, 0
  %v62 = vsel %vm57, %v38, 0
  %64 = vmatpush.bf16.msra.mxu0 0
  %65 = vmatpush.bf16.msra.mxu0 0
  %66 = vmatpush.bf16.msra.mxu0 0
  %67 = vmatpush.bf16.msra.mxu0 0
  %68 = vmatpush.bf16.msra.mxu0 0
  %69 = vmatpush.bf16.msra.mxu0 %v53
  %70 = vmatpush.bf16.msra.mxu0 %v52
  %71 = vmatpush.bf16.msra.mxu0 %v51
  %72 = vmatmul.bf16.gmra.mxu0 %v59
  %v73 = vpop.f32.mrf.mxu0
  %v74 = vadd.f32 %v27, %v73
  %v75 = vpop.f32.mrf.mxu0
  %v76 = vadd.f32 %v27, %v75
  %77 = vmatmul.bf16.gmra.mxu0 %v62
  %v78 = vpop.f32.mrf.mxu0
  %v79 = vadd.f32 %v27, %v78
  %v80 = vpop.f32.mrf.mxu0
  %v81 = vadd.f32 %v27, %v80
  %82 = vdwg.mxu0
  %v83 = vpack.c.bf16 %v74, %v74
  %v84 = vpack.c.bf16 %v76, %v76
  %v85 = vpack.c.bf16 %v79, %v79
  %v86 = vpack.c.bf16 %v81, %v81
  %vm87 = vcmask 257024
  %88 = vst.msk [vmem:[%s3] sm:$0xf] %vm87, %v83
  %89 = vst.msk [vmem:[%s3 + $0x4] sm:$0xf] %vm87, %v84
  %90 = vst.msk [vmem:[%s3 + $0x8] sm:$0xf] %vm87, %v85
  %91 = vst.msk [vmem:[%s3 + $0xc] sm:$0xf] %vm87, %v86
  // Predicated region
  $region14: #{visual_transformer_forward.16} parent=0 // pred_check
    _
  $region15: #{visual_transformer_forward.16} parent=0 // pred_check_branch
    %93 = sbr.rel (0) target = $region17
  $region16: #{visual_transformer_forward.16} parent=0 // pred_region
    _
  $region17: #{visual_transformer_forward.16} parent=0 // pred_fallthru
    _
  // Predicated region
  $region18: #{visual_transformer_forward.16} parent=0 // pred_check
    _
  $region19: #{visual_transformer_forward.16} parent=0 // pred_check_branch
    %95 = sbr.rel (0) target = $region21
  $region20: #{visual_transformer_forward.16} parent=0 // pred_region
    _
  $region21: #{visual_transformer_forward.16} parent=0 // pred_fallthru
    _

// kernel: visual_transformer_forward.20
$region0: #{visual_transformer_forward.20}
  #allocation0 [shape = 'u32[]', space=smem, size = 0x4, offset = 0x4, fixed_abs, tag = 'smem constant byte address 0x4 - core index']
  #allocation1 [shape = 'u32[72,128]{1,0:T(1,128)}', space=vmem, size = 0x9000, scoped, tag = 'internal scratch']
  %s0 = inlined_call_operand.vmem [shape: bf16[32,32], index: 0, kind: input, shape index: {}]
  %s1 = inlined_call_operand.vmem [shape: bf16[32,64], index: 1, kind: input, shape index: {}]
  %s2 = inlined_call_operand.vmem [shape: f32[1,64], index: 2, kind: input, shape index: {}]
  %s3 = inlined_call_operand.vmem [shape: bf16[32,64], index: 3, kind: output, shape index: {}]
  %s4 = sld [smem:[#allocation0]]
  $region22: #{visual_transformer_forward.20} parent=0
    _
  %s6 = ssub.s32 1, %s4
  %s7 = scalar_select 0, %s6, %s4
  // Predicated region
  $region2: #{visual_transformer_forward.20} parent=0 // pred_check
    _
  $region3: #{visual_transformer_forward.20} parent=0 // pred_check_branch
    %9 = sbr.rel (0) target = $region5
  $region4: #{visual_transformer_forward.20} parent=0 // pred_region
    _
  $region5: #{visual_transformer_forward.20} parent=0 // pred_fallthru
    _
  // Predicated region
  $region6: #{visual_transformer_forward.20} parent=0 // pred_check
    _
  $region7: #{visual_transformer_forward.20} parent=0 // pred_check_branch
    %11 = sbr.rel (0) target = $region9
  $region8: #{visual_transformer_forward.20} parent=0 // pred_region
    _
  $region9: #{visual_transformer_forward.20} parent=0 // pred_fallthru
    _
  // Predicated region
  $region10: #{visual_transformer_forward.20} parent=0 // pred_check
    _
  $region11: #{visual_transformer_forward.20} parent=0 // pred_check_branch
    %13 = sbr.rel (0) target = $region13
  $region12: #{visual_transformer_forward.20} parent=0 // pred_region
    _
  $region13: #{visual_transformer_forward.20} parent=0 // pred_fallthru
    _
  %v15 = vld [vmem:[%s0] sm:$0xf]
  %v16 = vld [vmem:[%s0 + $0x4] sm:$0xf]
  %v17 = vld [vmem:[%s0 + $0x8] sm:$0xf]
  %v18 = vld [vmem:[%s0 + $0xc] sm:$0xf]
  %v19 = vld [vmem:[%s1] sm:$0xf]
  %v20 = vld [vmem:[%s1 + $0x4] sm:$0xf]
  %v21 = vld [vmem:[%s1 + $0x8] sm:$0xf]
  %v22 = vld [vmem:[%s1 + $0xc] sm:$0xf]
  %v23 = vld [vmem:[%s2] sm:$0x1]
  %v25 = vperm.slane %v23, 0
  %v31 = vunpack.c.l.b16 %v15
  %v32 = vunpack.c.l.b16 %v16
  %v33 = vunpack.c.l.b16 %v17
  %v34 = vunpack.c.l.b16 %v18
  %v35 = vpack.c.b16 %v32, %v31
  %v36 = vpack.c.b16 %v34, %v33
  %v41 = vunpack.c.l.b16 %v19
  %v42 = vunpack.c.l.b16 %v20
  %v43 = vunpack.c.l.b16 %v21
  %v44 = vunpack.c.l.b16 %v22
  %v45 = vpack.c.b16 %v42, %v41
  %v46 = vpack.c.b16 %v44, %v43
  %vm49 = vcmask 261120
  %v51 = vsel %vm49, %v35, 0
  %v54 = vsel %vm49, %v36, 0
  %56 = vmatpush.bf16.msra.mxu0 0
  %57 = vmatpush.bf16.msra.mxu0 0
  %58 = vmatpush.bf16.msra.mxu0 0
  %59 = vmatpush.bf16.msra.mxu0 0
  %60 = vmatpush.bf16.msra.mxu0 0
  %61 = vmatpush.bf16.msra.mxu0 0
  %62 = vmatpush.bf16.msra.mxu0 %v46
  %63 = vmatpush.bf16.msra.mxu0 %v45
  %64 = vmatmul.bf16.gmra.mxu0 %v51
  %v65 = vpop.f32.mrf.mxu0
  %v66 = vadd.f32 %v25, %v65
  %v67 = vpop.f32.mrf.mxu0
  %v68 = vadd.f32 %v25, %v67
  %69 = vmatmul.bf16.gmra.mxu0 %v54
  %v70 = vpop.f32.mrf.mxu0
  %v71 = vadd.f32 %v25, %v70
  %v72 = vpop.f32.mrf.mxu0
  %v73 = vadd.f32 %v25, %v72
  %74 = vdwg.mxu0
  %v75 = vpack.c.bf16 %v66, %v66
  %v76 = vpack.c.bf16 %v68, %v68
  %v77 = vpack.c.bf16 %v71, %v71
  %v78 = vpack.c.bf16 %v73, %v73
  %vm79 = vcmask 519168
  %80 = vst.msk [vmem:[%s3] sm:$0xf] %vm79, %v75
  %81 = vst.msk [vmem:[%s3 + $0x4] sm:$0xf] %vm79, %v76
  %82 = vst.msk [vmem:[%s3 + $0x8] sm:$0xf] %vm79, %v77
  %83 = vst.msk [vmem:[%s3 + $0xc] sm:$0xf] %vm79, %v78
  // Predicated region
  $region14: #{visual_transformer_forward.20} parent=0 // pred_check
    _
  $region15: #{visual_transformer_forward.20} parent=0 // pred_check_branch
    %85 = sbr.rel (0) target = $region17
  $region16: #{visual_transformer_forward.20} parent=0 // pred_region
    _
  $region17: #{visual_transformer_forward.20} parent=0 // pred_fallthru
    _
  // Predicated region
  $region18: #{visual_transformer_forward.20} parent=0 // pred_check
    _
  $region19: #{visual_transformer_forward.20} parent=0 // pred_check_branch
    %87 = sbr.rel (0) target = $region21
  $region20: #{visual_transformer_forward.20} parent=0 // pred_region
    _
  $region21: #{visual_transformer_forward.20} parent=0 // pred_fallthru
    _

// kernel: visual_transformer_forward.29
$region0: #{visual_transformer_forward.29}
  #allocation0 [shape = 'u32[]', space=smem, size = 0x4, offset = 0x4, fixed_abs, tag = 'smem constant byte address 0x4 - core index']
  #allocation1 [shape = 'u32[72,128]{1,0:T(1,128)}', space=vmem, size = 0x9000, scoped, tag = 'internal scratch']
  %s0 = inlined_call_operand.vmem [shape: bf16[16,32], index: 0, kind: input, shape index: {}]
  %s1 = inlined_call_operand.vmem [shape: bf16[32,50], index: 1, kind: input, shape index: {}]
  %s2 = inlined_call_operand.vmem [shape: f32[1,50], index: 2, kind: input, shape index: {}]
  %s3 = inlined_call_operand.hbm [shape: f32[16,50], index: 3, kind: output, shape index: {}]
  %s4 = sld [smem:[#allocation0]]
  $region22: #{visual_transformer_forward.29} parent=0
    _
  %s6 = ssub.s32 1, %s4
  %s7 = scalar_select 0, %s6, %s4
  $region1: #{visual_transformer_forward.29} parent=0
    #allocation2 [shape = 'u8[8192]{0}', space=vmem, size = 0x2000, scoped, tag = 'output window, operand 0, single buffered']
    #allocation3 [shape = 's32[1]{0}', space=sflag, size = 0x4, scoped, tag = 'scoped memory for visual_transformer_forward.29']
    %8 = vsyncpa [#allocation3], 0
    // Predicated region
    $region2: #{visual_transformer_forward.29} parent=1 // pred_check
      _
    $region3: #{visual_transformer_forward.29} parent=1 // pred_check_branch
      %10 = sbr.rel (0) target = $region5
    $region4: #{visual_transformer_forward.29} parent=1 // pred_region
      _
    $region5: #{visual_transformer_forward.29} parent=1 // pred_fallthru
      _
    // Predicated region
    $region6: #{visual_transformer_forward.29} parent=1 // pred_check
      _
    $region7: #{visual_transformer_forward.29} parent=1 // pred_check_branch
      %12 = sbr.rel (0) target = $region9
    $region8: #{visual_transformer_forward.29} parent=1 // pred_region
      _
    $region9: #{visual_transformer_forward.29} parent=1 // pred_fallthru
      _
    // Predicated region
    $region10: #{visual_transformer_forward.29} parent=1 // pred_check
      _
    $region11: #{visual_transformer_forward.29} parent=1 // pred_check_branch
      %14 = sbr.rel (0) target = $region13
    $region12: #{visual_transformer_forward.29} parent=1 // pred_region
      _
    $region13: #{visual_transformer_forward.29} parent=1 // pred_fallthru
      _
    %v16 = vld [vmem:[%s0] sm:$0xf]
    %v17 = vld [vmem:[%s0 + $0x4] sm:$0xf]
    %v18 = vld [vmem:[%s1] sm:$0xf]
    %v19 = vld [vmem:[%s1 + $0x4] sm:$0xf]
    %v20 = vld [vmem:[%s1 + $0x8] sm:$0xf]
    %v21 = vld [vmem:[%s1 + $0xc] sm:$0xf]
    %v22 = vld [vmem:[%s2] sm:$0x1]
    %v24 = vperm.slane %v22, 0
    %v28 = vunpack.c.l.b16 %v16
    %v29 = vunpack.c.l.b16 %v17
    %v30 = vpack.c.b16 %v29, %v28
    %v35 = vunpack.c.l.b16 %v18
    %v36 = vunpack.c.l.b16 %v19
    %v37 = vunpack.c.l.b16 %v20
    %v38 = vunpack.c.l.b16 %v21
    %v39 = vpack.c.b16 %v36, %v35
    %v40 = vpack.c.b16 %v38, %v37
    %vm43 = vcmask 261120
    %v45 = vsel %vm43, %v30, 0
    %47 = vmatpush.bf16.msra.mxu0 0
    %48 = vmatpush.bf16.msra.mxu0 0
    %49 = vmatpush.bf16.msra.mxu0 0
    %50 = vmatpush.bf16.msra.mxu0 0
    %51 = vmatpush.bf16.msra.mxu0 0
    %52 = vmatpush.bf16.msra.mxu0 0
    %53 = vmatpush.bf16.msra.mxu0 %v40
    %54 = vmatpush.bf16.msra.mxu0 %v39
    %55 = vmatmul.bf16.gmra.mxu0 %v45
    %v56 = vpop.f32.mrf.mxu0
    %v57 = vadd.f32 %v24, %v56
    %v58 = vpop.f32.mrf.mxu0
    %v59 = vadd.f32 %v24, %v58
    %60 = vdwg.mxu0
    %vm61 = vcmask 408576
    %62 = vst.msk [vmem:[#allocation2] sm:$0xff] %vm61, %v57
    %63 = vst.msk [vmem:[#allocation2 + $0x8] sm:$0xff] %vm61, %v59
    // Predicated region
    $region14: #{visual_transformer_forward.29} parent=1 // pred_check
      _
    $region15: #{visual_transformer_forward.29} parent=1 // pred_check_branch
      %65 = sbr.rel (0) target = $region17
    $region16: #{visual_transformer_forward.29} parent=1 // pred_region
      %67 = vsyncadd [#allocation3], 0
      %s68 = sshll.u32 [#allocation2], 4
      %s69 = int_to_ptr.vmem [resolvable:$true] %s68
      %s70 = sshll.u32 %s3, 4
      %s71 = int_to_ptr.hbm [resolvable:$true] %s70
      %76 = dma.vmem_to_hbm [thread:$0]  %s69, 256, %s71, [#allocation3], 128, 128, 8
    $region17: #{visual_transformer_forward.29} parent=1 // pred_fallthru
      _
    // Predicated region
    $region18: #{visual_transformer_forward.29} parent=1 // pred_check
      _
    $region19: #{visual_transformer_forward.29} parent=1 // pred_check_branch
      %78 = sbr.rel (0) target = $region21
    $region20: #{visual_transformer_forward.29} parent=1 // pred_region
      %80 = dma.done [#allocation3], 256
    $region21: #{visual_transformer_forward.29} parent=1 // pred_fallthru
      _
    %81 = vsyncpa [#allocation3], 1

// kernel: visual_transformer_forward.22
$region0: #{visual_transformer_forward.22}
  #allocation0 [shape = 'u32[]', space=smem, size = 0x4, offset = 0x4, fixed_abs, tag = 'smem constant byte address 0x4 - core index']
  #allocation1 [shape = 'u32[72,128]{1,0:T(1,128)}', space=vmem, size = 0x9000, scoped, tag = 'internal scratch']
  %s0 = inlined_call_operand.vmem [shape: bf16[16,32], index: 0, kind: input, shape index: {}]
  %s1 = inlined_call_operand.vmem [shape: bf16[32,128], index: 1, kind: input, shape index: {}]
  %s2 = inlined_call_operand.vmem [shape: f32[1,128], index: 2, kind: input, shape index: {}]
  %s3 = inlined_call_operand.vmem [shape: bf16[128,32], index: 3, kind: input, shape index: {}]
  %s4 = inlined_call_operand.vmem [shape: f32[1,32], index: 4, kind: input, shape index: {}]
  %s5 = inlined_call_operand.vmem [shape: f32[1,32], index: 5, kind: input, shape index: {}]
  %s6 = inlined_call_operand.vmem [shape: f32[1,32], index: 6, kind: input, shape index: {}]
  %s7 = inlined_call_operand.vmem [shape: bf16[16,32], index: 7, kind: output, shape index: {}]
  %s8 = sld [smem:[#allocation0]]
  $region38: #{visual_transformer_forward.22} parent=0
    _
  %s10 = ssub.s32 1, %s8
  %s11 = scalar_select 0, %s10, %s8
  // Predicated region
  $region2: #{visual_transformer_forward.22} parent=0 // pred_check
    _
  $region3: #{visual_transformer_forward.22} parent=0 // pred_check_branch
    %13 = sbr.rel (0) target = $region5
  $region4: #{visual_transformer_forward.22} parent=0 // pred_region
    _
  $region5: #{visual_transformer_forward.22} parent=0 // pred_fallthru
    _
  // Predicated region
  $region6: #{visual_transformer_forward.22} parent=0 // pred_check
    _
  $region7: #{visual_transformer_forward.22} parent=0 // pred_check_branch
    %15 = sbr.rel (0) target = $region9
  $region8: #{visual_transformer_forward.22} parent=0 // pred_region
    _
  $region9: #{visual_transformer_forward.22} parent=0 // pred_fallthru
    _
  // Predicated region
  $region10: #{visual_transformer_forward.22} parent=0 // pred_check
    _
  $region11: #{visual_transformer_forward.22} parent=0 // pred_check_branch
    %17 = sbr.rel (0) target = $region13
  $region12: #{visual_transformer_forward.22} parent=0 // pred_region
    _
  $region13: #{visual_transformer_forward.22} parent=0 // pred_fallthru
    _
  // Predicated region
  $region14: #{visual_transformer_forward.22} parent=0 // pred_check
    _
  $region15: #{visual_transformer_forward.22} parent=0 // pred_check_branch
    %19 = sbr.rel (0) target = $region17
  $region16: #{visual_transformer_forward.22} parent=0 // pred_region
    _
  $region17: #{visual_transformer_forward.22} parent=0 // pred_fallthru
    _
  // Predicated region
  $region18: #{visual_transformer_forward.22} parent=0 // pred_check
    _
  $region19: #{visual_transformer_forward.22} parent=0 // pred_check_branch
    %21 = sbr.rel (0) target = $region21
  $region20: #{visual_transformer_forward.22} parent=0 // pred_region
    _
  $region21: #{visual_transformer_forward.22} parent=0 // pred_fallthru
    _
  // Predicated region
  $region22: #{visual_transformer_forward.22} parent=0 // pred_check
    _
  $region23: #{visual_transformer_forward.22} parent=0 // pred_check_branch
    %23 = sbr.rel (0) target = $region25
  $region24: #{visual_transformer_forward.22} parent=0 // pred_region
    _
  $region25: #{visual_transformer_forward.22} parent=0 // pred_fallthru
    _
  // Predicated region
  $region26: #{visual_transformer_forward.22} parent=0 // pred_check
    _
  $region27: #{visual_transformer_forward.22} parent=0 // pred_check_branch
    %25 = sbr.rel (0) target = $region29
  $region28: #{visual_transformer_forward.22} parent=0 // pred_region
    _
  $region29: #{visual_transformer_forward.22} parent=0 // pred_fallthru
    _
  %v27 = vld [vmem:[%s0] sm:$0xf]
  %v28 = vld [vmem:[%s0 + $0x4] sm:$0xf]
  %v29 = vld [vmem:[%s1] sm:$0xf]
  %v30 = vld [vmem:[%s1 + $0x4] sm:$0xf]
  %v31 = vld [vmem:[%s1 + $0x8] sm:$0xf]
  %v32 = vld [vmem:[%s1 + $0xc] sm:$0xf]
  %v33 = vld [vmem:[%s2] sm:$0x1]
  %v35 = vperm.slane %v33, 0
  %v39 = vunpack.c.l.b16 %v27
  %v40 = vunpack.c.l.b16 %v28
  %v41 = vpack.c.b16 %v40, %v39
  %v46 = vunpack.c.l.b16 %v29
  %v47 = vunpack.c.l.b16 %v30
  %v48 = vunpack.c.l.b16 %v31
  %v49 = vunpack.c.l.b16 %v32
  %v50 = vpack.c.b16 %v47, %v46
  %v51 = vpack.c.b16 %v49, %v48
  %vm54 = vcmask 261120
  %v56 = vsel %vm54, %v41, 0
  %58 = vmatpush.bf16.msra.mxu0 0
  %59 = vmatpush.bf16.msra.mxu0 0
  %60 = vmatpush.bf16.msra.mxu0 0
  %61 = vmatpush.bf16.msra.mxu0 0
  %62 = vmatpush.bf16.msra.mxu0 0
  %63 = vmatpush.bf16.msra.mxu0 0
  %64 = vmatpush.bf16.msra.mxu0 %v51
  %65 = vmatpush.bf16.msra.mxu0 %v50
  %66 = vmatmul.bf16.gmra.mxu0 %v56
  %v67 = vpop.f32.mrf.mxu0
  %v68 = vadd.f32 %v35, %v67
  %v69 = vpop.f32.mrf.mxu0
  %v70 = vadd.f32 %v35, %v69
  %71 = vdwg.mxu0
  %v72 = vmax.f32 %v68, 0.0
  %v73 = vmax.f32 %v70, 0.0
  %v74 = vpack.c.bf16 %v73, %v72
  %v75 = vld [vmem:[%s3] sm:$0xf]
  %v76 = vld [vmem:[%s3 + $0x4] sm:$0xf]
  %v77 = vld [vmem:[%s3 + $0x8] sm:$0xf]
  %v78 = vld [vmem:[%s3 + $0xc] sm:$0xf]
  %v79 = vld [vmem:[%s3 + $0x10] sm:$0xf]
  %v80 = vld [vmem:[%s3 + $0x14] sm:$0xf]
  %v81 = vld [vmem:[%s3 + $0x18] sm:$0xf]
  %v82 = vld [vmem:[%s3 + $0x1c] sm:$0xf]
  %v83 = vld [vmem:[%s3 + $0x20] sm:$0xf]
  %v84 = vld [vmem:[%s3 + $0x24] sm:$0xf]
  %v85 = vld [vmem:[%s3 + $0x28] sm:$0xf]
  %v86 = vld [vmem:[%s3 + $0x2c] sm:$0xf]
  %v87 = vld [vmem:[%s3 + $0x30] sm:$0xf]
  %v88 = vld [vmem:[%s3 + $0x34] sm:$0xf]
  %v89 = vld [vmem:[%s3 + $0x38] sm:$0xf]
  %v90 = vld [vmem:[%s3 + $0x3c] sm:$0xf]
  %v91 = vld [vmem:[%s4] sm:$0x1]
  %v93 = vperm.slane %v91, 0
  %v111 = vunpack.c.l.b16 %v75
  %v112 = vunpack.c.l.b16 %v76
  %v113 = vunpack.c.l.b16 %v77
  %v114 = vunpack.c.l.b16 %v78
  %v115 = vunpack.c.l.b16 %v79
  %v116 = vunpack.c.l.b16 %v80
  %v117 = vunpack.c.l.b16 %v81
  %v118 = vunpack.c.l.b16 %v82
  %v119 = vunpack.c.l.b16 %v83
  %v120 = vunpack.c.l.b16 %v84
  %v121 = vunpack.c.l.b16 %v85
  %v122 = vunpack.c.l.b16 %v86
  %v123 = vunpack.c.l.b16 %v87
  %v124 = vunpack.c.l.b16 %v88
  %v125 = vunpack.c.l.b16 %v89
  %v126 = vunpack.c.l.b16 %v90
  %v127 = vpack.c.b16 %v112, %v111
  %v128 = vpack.c.b16 %v114, %v113
  %v129 = vpack.c.b16 %v116, %v115
  %v130 = vpack.c.b16 %v118, %v117
  %v131 = vpack.c.b16 %v120, %v119
  %v132 = vpack.c.b16 %v122, %v121
  %v133 = vpack.c.b16 %v124, %v123
  %v134 = vpack.c.b16 %v126, %v125
  %143 = vmatpush.bf16.msra.mxu0 %v134
  %144 = vmatpush.bf16.msra.mxu0 %v133
  %145 = vmatpush.bf16.msra.mxu0 %v132
  %146 = vmatpush.bf16.msra.mxu0 %v131
  %147 = vmatpush.bf16.msra.mxu0 %v130
  %148 = vmatpush.bf16.msra.mxu0 %v129
  %149 = vmatpush.bf16.msra.mxu0 %v128
  %150 = vmatpush.bf16.msra.mxu0 %v127
  %151 = vmatmul.bf16.gmra.mxu0 %v74
  %v152 = vpop.f32.mrf.mxu0
  %v153 = vadd.f32 %v93, %v152
  %v154 = vpop.f32.mrf.mxu0
  %v155 = vadd.f32 %v93, %v154
  %156 = vdwg.mxu0
  %v157 = vunpack.c.l.bf16 %v27
  %v158 = vunpack.c.l.bf16 %v28
  %v159 = vadd.f32 %v157, %v153
  %v160 = vadd.f32 %v158, %v155
  %v161 = vsel %vm54, %v159, 0.0
  %162 = vadd.xlane.f32.xlu0 %v161
  %v163 = vpop.xlane.xlu0 %162
  %v164 = vsel %vm54, %v160, 0.0
  %165 = vadd.xlane.f32.xlu0 %v164
  %v166 = vpop.xlane.xlu0 %165
  %v167 = vrcp.pop 32.0
  %v168 = vmul.f32 32.0, %v167
  %v169 = vsub.f32 1.0, %v168
  %v170 = vmul.f32 %v167, %v169
  %v171 = vadd.f32 %v167, %v170
  %vm172 = vweird.f32 %v167
  %v173 = vsel %vm172, %v167, %v171
  %v174 = vmul.f32 %v163, %v173
  %v175 = vmul.f32 %v166, %v173
  %v176 = vsub.f32 %v159, %v174
  %v177 = vsub.f32 %v160, %v175
  %v178 = vmul.f32 %v176, %v176
  %v179 = vmul.f32 %v177, %v177
  %v180 = vsel %vm54, %v178, 0.0
  %181 = vadd.xlane.f32.xlu0 %v180
  %v182 = vpop.xlane.xlu0 %181
  %v183 = vsel %vm54, %v179, 0.0
  %184 = vadd.xlane.f32.xlu0 %v183
  %v185 = vpop.xlane.xlu0 %184
  %v186 = vmul.f32 %v182, %v173
  %v187 = vmul.f32 %v185, %v173
  %v188 = vadd.f32 %v186, 1e-05
  %v189 = vadd.f32 %v187, 1e-05
  %v190 = vrsqrt.pop %v188
  %v191 = vmul.f32 %v190, %v188
  %v192 = vmul.f32 %v191, %v190
  %v193 = vmul.f32 0.5, %v192
  %v194 = vsub.f32 1.5, %v193
  %v195 = vmul.f32 %v190, %v194
  %vm196 = vweird.f32 %v188
  %vm197 = vweird.f32 %v190
  %vm198 = vmor %vm196, %vm197
  %v199 = vsel %vm198, %v190, %v195
  %v200 = vrsqrt.pop %v189
  %v201 = vmul.f32 %v200, %v189
  %v202 = vmul.f32 %v201, %v200
  %v203 = vmul.f32 0.5, %v202
  %v204 = vsub.f32 1.5, %v203
  %v205 = vmul.f32 %v200, %v204
  %vm206 = vweird.f32 %v189
  %vm207 = vweird.f32 %v200
  %vm208 = vmor %vm206, %vm207
  %v209 = vsel %vm208, %v200, %v205
  %v210 = vmul.f32 %v176, %v199
  %v211 = vmul.f32 %v177, %v209
  %v212 = vld [vmem:[%s5] sm:$0x1]
  %v214 = vperm.slane %v212, 0
  %v216 = vmul.f32 %v210, %v214
  %v217 = vmul.f32 %v211, %v214
  %v218 = vld [vmem:[%s6] sm:$0x1]
  %v220 = vperm.slane %v218, 0
  %v222 = vadd.f32 %v216, %v220
  %v223 = vadd.f32 %v217, %v220
  %v224 = vpack.c.bf16 %v222, %v222
  %v225 = vpack.c.bf16 %v223, %v223
  %vm226 = vcmask 257024
  %227 = vst.msk [vmem:[%s7] sm:$0xf] %vm226, %v224
  %228 = vst.msk [vmem:[%s7 + $0x4] sm:$0xf] %vm226, %v225
  // Predicated region
  $region30: #{visual_transformer_forward.22} parent=0 // pred_check
    _
  $region31: #{visual_transformer_forward.22} parent=0 // pred_check_branch
    %230 = sbr.rel (0) target = $region33
  $region32: #{visual_transformer_forward.22} parent=0 // pred_region
    _
  $region33: #{visual_transformer_forward.22} parent=0 // pred_fallthru
    _
  // Predicated region
  $region34: #{visual_transformer_forward.22} parent=0 // pred_check
    _
  $region35: #{visual_transformer_forward.22} parent=0 // pred_check_branch
    %232 = sbr.rel (0) target = $region37
  $region36: #{visual_transformer_forward.22} parent=0 // pred_region
    _
  $region37: #{visual_transformer_forward.22} parent=0 // pred_fallthru
    _

// kernel: visual_transformer_forward.21
$region0: #{visual_transformer_forward.21}
  #allocation0 [shape = 'u32[]', space=smem, size = 0x4, offset = 0x4, fixed_abs, tag = 'smem constant byte address 0x4 - core index']
  #allocation1 [shape = 'u32[72,128]{1,0:T(1,128)}', space=vmem, size = 0x9000, scoped, tag = 'internal scratch']
  %s0 = inlined_call_operand.vmem [shape: bf16[2,4,8,8], index: 0, kind: input, shape index: {}]
  %s1 = inlined_call_operand.vmem [shape: bf16[2,4,16,8], index: 1, kind: input, shape index: {}]
  %s2 = inlined_call_operand.vmem [shape: bf16[2,4,16,8], index: 2, kind: input, shape index: {}]
  %s3 = inlined_call_operand.vmem [shape: bf16[2,8,32], index: 3, kind: input, shape index: {}]
  %s4 = inlined_call_operand.vmem [shape: bf16[4,8,32], index: 4, kind: input, shape index: {}]
  %s5 = inlined_call_operand.vmem [shape: f32[1,32], index: 5, kind: input, shape index: {}]
  %s6 = inlined_call_operand.vmem [shape: f32[1,32], index: 6, kind: input, shape index: {}]
  %s7 = inlined_call_operand.vmem [shape: f32[1,32], index: 7, kind: input, shape index: {}]
  %s8 = inlined_call_operand.vmem [shape: bf16[2,8,32], index: 8, kind: output, shape index: {}]
  %s9 = sld [smem:[#allocation0]]
  $region65: #{visual_transformer_forward.21} parent=0
    _
  %s11 = ssub.s32 1, %s9
  %s12 = scalar_select 0, %s11, %s9
  loop: start=0, step=1, limit=4
  $region2: #{visual_transformer_forward.21} parent=0 // loop_pre_header
    _
  $region3: #{visual_transformer_forward.21} parent=0 // loop_header
    %s14 = sphi 0, %s18
    %p15 = scmp.ge.s32.totalorder %s14, 4
    %s24 = sphi 0, %s26
    %s27 = sphi 0, %s24
    %s28 = sphi 0, %s27
    %s44 = sphi 0, %s28
    %s50 = sphi 0, %s52
    %s53 = sphi 0, %s50
    %s54 = sphi 0, %s53
    %s70 = sphi 0, %s54
    %s76 = sphi 0, %s78
    %s79 = sphi 0, %s76
    %s80 = sphi 0, %s79
    %s96 = sphi 0, %s80
    %s102 = sphi 0, %s104
    %s105 = sphi 0, %s102
    %s106 = sphi 0, %s105
    %s122 = sphi 0, %s106
    %s126 = sphi 0, %s126
    %s128 = sphi 0, %s126
    %s129 = sphi 0, %s128
    %s143 = sphi 0, %s129
    %s147 = sphi 0, %s147
    %s149 = sphi 0, %s147
    %s150 = sphi 0, %s149
    %s164 = sphi 0, %s150
    %s168 = sphi 0, %s168
    %s170 = sphi 0, %s168
    %s171 = sphi 0, %s170
    %s185 = sphi 0, %s171
    %s189 = sphi 0, %s189
    %s191 = sphi 0, %s189
    %s192 = sphi 0, %s191
    %s206 = sphi 0, %s192
    %s212 = sphi 0, %s214
    %s215 = sphi 0, %s212
    %s216 = sphi 0, %s215
    %s232 = sphi 0, %s216
  $region4: #{visual_transformer_forward.21} parent=0 // loop_header_branch
    %17 = sbr.rel (%p15) target = $region8
  $region5: #{visual_transformer_forward.21} parent=0 // loop_body
    %s19 = ssub.s32 %s14, 1
    %s20 = ssub.s32 %s14, 2
    %s21 = sadd.s32 %s14, 1
    %s22 = ssub.s32 %s14, %s21
    %p23 = scmp.eq.s32.totalorder %s22, 0
    %s25 = sadd.s32 %s24, 1
    %s26 = scalar_select %p23, %s24, %s25
    %p29 = pneg %p23
    %p30 = scmp.eq.s32.totalorder %s14, 1
    %p31 = por %p29, %p30
    %p32 = scmp.ne.s32.totalorder %s24, %s27
    %p33 = scmp.eq.s32.totalorder %s14, 0
    %p34 = por %p32, %p33
    %p35 = scmp.ne.s32.totalorder %s24, %s27
    %p36 = scmp.eq.s32.totalorder %s19, 1
    %p37 = por %p35, %p36
    %p38 = scmp.ne.s32.totalorder %s27, %s28
    %p39 = scmp.eq.s32.totalorder %s19, 0
    %p40 = por %p38, %p39
    %p41 = scmp.ne.s32.totalorder %s27, %s28
    %p42 = scmp.eq.s32.totalorder %s20, 1
    %p43 = por %p41, %p42
    %p45 = scmp.ne.s32.totalorder %s28, %s44
    %p46 = scmp.eq.s32.totalorder %s20, 0
    %p47 = por %p45, %p46
    %s48 = ssub.s32 %s14, %s21
    %p49 = scmp.eq.s32.totalorder %s48, 0
    %s51 = sadd.s32 %s50, 1
    %s52 = scalar_select %p49, %s50, %s51
    %p55 = pneg %p49
    %p56 = scmp.eq.s32.totalorder %s14, 1
    %p57 = por %p55, %p56
    %p58 = scmp.ne.s32.totalorder %s50, %s53
    %p59 = scmp.eq.s32.totalorder %s14, 0
    %p60 = por %p58, %p59
    %p61 = scmp.ne.s32.totalorder %s50, %s53
    %p62 = scmp.eq.s32.totalorder %s19, 1
    %p63 = por %p61, %p62
    %p64 = scmp.ne.s32.totalorder %s53, %s54
    %p65 = scmp.eq.s32.totalorder %s19, 0
    %p66 = por %p64, %p65
    %p67 = scmp.ne.s32.totalorder %s53, %s54
    %p68 = scmp.eq.s32.totalorder %s20, 1
    %p69 = por %p67, %p68
    %p71 = scmp.ne.s32.totalorder %s54, %s70
    %p72 = scmp.eq.s32.totalorder %s20, 0
    %p73 = por %p71, %p72
    %s74 = ssub.s32 %s14, %s21
    %p75 = scmp.eq.s32.totalorder %s74, 0
    %s77 = sadd.s32 %s76, 1
    %s78 = scalar_select %p75, %s76, %s77
    %p81 = pneg %p75
    %p82 = scmp.eq.s32.totalorder %s14, 1
    %p83 = por %p81, %p82
    %p84 = scmp.ne.s32.totalorder %s76, %s79
    %p85 = scmp.eq.s32.totalorder %s14, 0
    %p86 = por %p84, %p85
    %p87 = scmp.ne.s32.totalorder %s76, %s79
    %p88 = scmp.eq.s32.totalorder %s19, 1
    %p89 = por %p87, %p88
    %p90 = scmp.ne.s32.totalorder %s79, %s80
    %p91 = scmp.eq.s32.totalorder %s19, 0
    %p92 = por %p90, %p91
    %p93 = scmp.ne.s32.totalorder %s79, %s80
    %p94 = scmp.eq.s32.totalorder %s20, 1
    %p95 = por %p93, %p94
    %p97 = scmp.ne.s32.totalorder %s80, %s96
    %p98 = scmp.eq.s32.totalorder %s20, 0
    %p99 = por %p97, %p98
    %s100 = ssub.s32 %s14, %s21
    %p101 = scmp.eq.s32.totalorder %s100, 0
    %s103 = sadd.s32 %s102, 1
    %s104 = scalar_select %p101, %s102, %s103
    %p107 = pneg %p101
    %p108 = scmp.eq.s32.totalorder %s14, 1
    %p109 = por %p107, %p108
    %p110 = scmp.ne.s32.totalorder %s102, %s105
    %p111 = scmp.eq.s32.totalorder %s14, 0
    %p112 = por %p110, %p111
    %p113 = scmp.ne.s32.totalorder %s102, %s105
    %p114 = scmp.eq.s32.totalorder %s19, 1
    %p115 = por %p113, %p114
    %p116 = scmp.ne.s32.totalorder %s105, %s106
    %p117 = scmp.eq.s32.totalorder %s19, 0
    %p118 = por %p116, %p117
    %p119 = scmp.ne.s32.totalorder %s105, %s106
    %p120 = scmp.eq.s32.totalorder %s20, 1
    %p121 = por %p119, %p120
    %p123 = scmp.ne.s32.totalorder %s106, %s122
    %p124 = scmp.eq.s32.totalorder %s20, 0
    %p125 = por %p123, %p124
    %s127 = sadd.s32 %s126, 1
    %p130 = scmp.eq.s32.totalorder %s14, 1
    %p131 = scmp.ne.s32.totalorder %s126, %s128
    %p132 = scmp.eq.s32.totalorder %s14, 0
    %p133 = por %p131, %p132
    %p134 = scmp.ne.s32.totalorder %s126, %s128
    %p135 = scmp.eq.s32.totalorder %s19, 1
    %p136 = por %p134, %p135
    %p137 = scmp.ne.s32.totalorder %s128, %s129
    %p138 = scmp.eq.s32.totalorder %s19, 0
    %p139 = por %p137, %p138
    %p140 = scmp.ne.s32.totalorder %s128, %s129
    %p141 = scmp.eq.s32.totalorder %s20, 1
    %p142 = por %p140, %p141
    %p144 = scmp.ne.s32.totalorder %s129, %s143
    %p145 = scmp.eq.s32.totalorder %s20, 0
    %p146 = por %p144, %p145
    %s148 = sadd.s32 %s147, 1
    %p151 = scmp.eq.s32.totalorder %s14, 1
    %p152 = scmp.ne.s32.totalorder %s147, %s149
    %p153 = scmp.eq.s32.totalorder %s14, 0
    %p154 = por %p152, %p153
    %p155 = scmp.ne.s32.totalorder %s147, %s149
    %p156 = scmp.eq.s32.totalorder %s19, 1
    %p157 = por %p155, %p156
    %p158 = scmp.ne.s32.totalorder %s149, %s150
    %p159 = scmp.eq.s32.totalorder %s19, 0
    %p160 = por %p158, %p159
    %p161 = scmp.ne.s32.totalorder %s149, %s150
    %p162 = scmp.eq.s32.totalorder %s20, 1
    %p163 = por %p161, %p162
    %p165 = scmp.ne.s32.totalorder %s150, %s164
    %p166 = scmp.eq.s32.totalorder %s20, 0
    %p167 = por %p165, %p166
    %s169 = sadd.s32 %s168, 1
    %p172 = scmp.eq.s32.totalorder %s14, 1
    %p173 = scmp.ne.s32.totalorder %s168, %s170
    %p174 = scmp.eq.s32.totalorder %s14, 0
    %p175 = por %p173, %p174
    %p176 = scmp.ne.s32.totalorder %s168, %s170
    %p177 = scmp.eq.s32.totalorder %s19, 1
    %p178 = por %p176, %p177
    %p179 = scmp.ne.s32.totalorder %s170, %s171
    %p180 = scmp.eq.s32.totalorder %s19, 0
    %p181 = por %p179, %p180
    %p182 = scmp.ne.s32.totalorder %s170, %s171
    %p183 = scmp.eq.s32.totalorder %s20, 1
    %p184 = por %p182, %p183
    %p186 = scmp.ne.s32.totalorder %s171, %s185
    %p187 = scmp.eq.s32.totalorder %s20, 0
    %p188 = por %p186, %p187
    %s190 = sadd.s32 %s189, 1
    %p193 = scmp.eq.s32.totalorder %s14, 1
    %p194 = scmp.ne.s32.totalorder %s189, %s191
    %p195 = scmp.eq.s32.totalorder %s14, 0
    %p196 = por %p194, %p195
    %p197 = scmp.ne.s32.totalorder %s189, %s191
    %p198 = scmp.eq.s32.totalorder %s19, 1
    %p199 = por %p197, %p198
    %p200 = scmp.ne.s32.totalorder %s191, %s192
    %p201 = scmp.eq.s32.totalorder %s19, 0
    %p202 = por %p200, %p201
    %p203 = scmp.ne.s32.totalorder %s191, %s192
    %p204 = scmp.eq.s32.totalorder %s20, 1
    %p205 = por %p203, %p204
    %p207 = scmp.ne.s32.totalorder %s192, %s206
    %p208 = scmp.eq.s32.totalorder %s20, 0
    %p209 = por %p207, %p208
    %s210 = ssub.s32 %s14, %s21
    %p211 = scmp.eq.s32.totalorder %s210, 0
    %s213 = sadd.s32 %s212, 1
    %s214 = scalar_select %p211, %s212, %s213
    %p217 = pneg %p211
    %p218 = scmp.eq.s32.totalorder %s14, 1
    %p219 = por %p217, %p218
    %p220 = scmp.ne.s32.totalorder %s212, %s215
    %p221 = scmp.eq.s32.totalorder %s14, 0
    %p222 = por %p220, %p221
    %p223 = scmp.ne.s32.totalorder %s212, %s215
    %p224 = scmp.eq.s32.totalorder %s19, 1
    %p225 = por %p223, %p224
    %p226 = scmp.ne.s32.totalorder %s215, %s216
    %p227 = scmp.eq.s32.totalorder %s19, 0
    %p228 = por %p226, %p227
    %p229 = scmp.ne.s32.totalorder %s215, %s216
    %p230 = scmp.eq.s32.totalorder %s20, 1
    %p231 = por %p229, %p230
    %p233 = scmp.ne.s32.totalorder %s216, %s232
    %p234 = scmp.eq.s32.totalorder %s20, 0
    %p235 = por %p233, %p234
    %p236 = scmp.le.s32.totalorder 1, %s14
    %p237 = scmp.lt.s32.totalorder %s14, 3
    %p238 = pnand %p236, %p237
    %p239 = pneg %p238
    // Predicated region
    $region9: #{visual_transformer_forward.21} parent=5 // pred_check
      _
    $region10: #{visual_transformer_forward.21} parent=5 // pred_check_branch
      %241 = sbr.rel (%p238) target = $region12
    $region11: #{visual_transformer_forward.21} parent=5 // pred_region
      %s242 = ssub.s32 %s14, 1
      // Predicated region
      $region13: #{visual_transformer_forward.21} parent=11 // pred_check
        %p243 = pneg %p139
      $region14: #{visual_transformer_forward.21} parent=11 // pred_check_branch
        %245 = sbr.rel (%p243) target = $region16
      $region15: #{visual_transformer_forward.21} parent=11 // pred_region
        _
      $region16: #{visual_transformer_forward.21} parent=11 // pred_fallthru
        _
      // Predicated region
      $region17: #{visual_transformer_forward.21} parent=11 // pred_check
        %p246 = pneg %p160
      $region18: #{visual_transformer_forward.21} parent=11 // pred_check_branch
        %248 = sbr.rel (%p246) target = $region20
      $region19: #{visual_transformer_forward.21} parent=11 // pred_region
        _
      $region20: #{visual_transformer_forward.21} parent=11 // pred_fallthru
        _
      // Predicated region
      $region21: #{visual_transformer_forward.21} parent=11 // pred_check
        %p249 = pneg %p181
      $region22: #{visual_transformer_forward.21} parent=11 // pred_check_branch
        %251 = sbr.rel (%p249) target = $region24
      $region23: #{visual_transformer_forward.21} parent=11 // pred_region
        _
      $region24: #{visual_transformer_forward.21} parent=11 // pred_fallthru
        _
      // Predicated region
      $region25: #{visual_transformer_forward.21} parent=11 // pred_check
        %p252 = pneg %p202
      $region26: #{visual_transformer_forward.21} parent=11 // pred_check_branch
        %254 = sbr.rel (%p252) target = $region28
      $region27: #{visual_transformer_forward.21} parent=11 // pred_region
        _
      $region28: #{visual_transformer_forward.21} parent=11 // pred_fallthru
        _
    $region12: #{visual_transformer_forward.21} parent=5 // pred_fallthru
      _
    %p255 = scmp.lt.s32.totalorder %s14, 2
    // Predicated region
    $region29: #{visual_transformer_forward.21} parent=5 // pred_check
      %p256 = pneg %p255
    $region30: #{visual_transformer_forward.21} parent=5 // pred_check_branch
      %258 = sbr.rel (%p256) target = $region32
    $region31: #{visual_transformer_forward.21} parent=5 // pred_region
      // Predicated region
      $region33: #{visual_transformer_forward.21} parent=31 // pred_check
        %p259 = pneg %p34
      $region34: #{visual_transformer_forward.21} parent=31 // pred_check_branch
        %261 = sbr.rel (%p259) target = $region36
      $region35: #{visual_transformer_forward.21} parent=31 // pred_region
        %p262 = scmp.lt.s32.totalorder %s14, 1
        %s263 = scalar_select %p262, %s14, 1
        %s264 = smul.addr %s263, 4
        %s265 = smul.addr %s264, 4
        %s266 = scalar_lea.vmem %s0, %s265
      $region36: #{visual_transformer_forward.21} parent=31 // pred_fallthru
        _
      // Predicated region
      $region37: #{visual_transformer_forward.21} parent=31 // pred_check
        %p267 = pneg %p60
      $region38: #{visual_transformer_forward.21} parent=31 // pred_check_branch
        %269 = sbr.rel (%p267) target = $region40
      $region39: #{visual_transformer_forward.21} parent=31 // pred_region
        %p270 = scmp.lt.s32.totalorder %s14, 1
        %s271 = scalar_select %p270, %s14, 1
        %s272 = smul.addr %s271, 8
        %s273 = smul.addr %s272, 4
        %s274 = scalar_lea.vmem %s1, %s273
      $region40: #{visual_transformer_forward.21} parent=31 // pred_fallthru
        _
      // Predicated region
      $region41: #{visual_transformer_forward.21} parent=31 // pred_check
        %p275 = pneg %p86
      $region42: #{visual_transformer_forward.21} parent=31 // pred_check_branch
        %277 = sbr.rel (%p275) target = $region44
      $region43: #{visual_transformer_forward.21} parent=31 // pred_region
        %p278 = scmp.lt.s32.totalorder %s14, 1
        %s279 = scalar_select %p278, %s14, 1
        %s280 = smul.addr %s279, 8
        %s281 = smul.addr %s280, 4
        %s282 = scalar_lea.vmem %s2, %s281
      $region44: #{visual_transformer_forward.21} parent=31 // pred_fallthru
        _
      // Predicated region
      $region45: #{visual_transformer_forward.21} parent=31 // pred_check
        %p283 = pneg %p112
      $region46: #{visual_transformer_forward.21} parent=31 // pred_check_branch
        %285 = sbr.rel (%p283) target = $region48
      $region47: #{visual_transformer_forward.21} parent=31 // pred_region
        %p286 = scmp.lt.s32.totalorder %s14, 1
        %s287 = scalar_select %p286, %s14, 1
        %s288 = smul.addr %s287, 4
        %s289 = scalar_lea.vmem %s3, %s288
      $region48: #{visual_transformer_forward.21} parent=31 // pred_fallthru
        _
    $region32: #{visual_transformer_forward.21} parent=5 // pred_fallthru
      _
    %p290 = scmp.le.s32.totalorder 1, %s14
    %p291 = scmp.lt.s32.totalorder %s14, 3
    %p292 = pnand %p290, %p291
    %p293 = pneg %p292
    // Predicated region
    $region49: #{visual_transformer_forward.21} parent=5 // pred_check
      _
    $region50: #{visual_transformer_forward.21} parent=5 // pred_check_branch
      %295 = sbr.rel (%p292) target = $region52
    $region51: #{visual_transformer_forward.21} parent=5 // pred_region
      %s296 = ssub.s32 %s14, 1
      %p297 = scmp.lt.s32.totalorder %s19, 1
      %s298 = scalar_select %p297, %s19, 1
      %s299 = smul.addr %s298, 4
      %s300 = smul.addr %s299, 4
      %s301 = scalar_lea.vmem %s0, %s300
      %p302 = pneg %p40
      %p303 = pneg %p37
      %p304 = scmp.lt.s32.totalorder %s19, 1
      %s305 = scalar_select %p304, %s19, 1
      %s306 = smul.addr %s305, 8
      %s307 = smul.addr %s306, 4
      %s308 = scalar_lea.vmem %s1, %s307
      %p309 = pneg %p66
      %p310 = pneg %p63
      %p311 = scmp.lt.s32.totalorder %s19, 1
      %s312 = scalar_select %p311, %s19, 1
      %s313 = smul.addr %s312, 8
      %s314 = smul.addr %s313, 4
      %s315 = scalar_lea.vmem %s2, %s314
      %p316 = pneg %p92
      %p317 = pneg %p89
      %p318 = scmp.lt.s32.totalorder %s19, 1
      %s319 = scalar_select %p318, %s19, 1
      %s320 = smul.addr %s319, 4
      %s321 = scalar_lea.vmem %s3, %s320
      %p322 = pneg %p118
      %p323 = pneg %p115
      %p324 = pneg %p139
      %p325 = pneg %p136
      %p326 = pneg %p160
      %p327 = pneg %p157
      %p328 = pneg %p181
      %p329 = pneg %p178
      %p330 = pneg %p202
      %p331 = pneg %p199
      %p332 = pneg %p228
      %p333 = pneg %p225
      %p334 = scmp.lt.s32.totalorder %s19, 1
      %s335 = scalar_select %p334, %s19, 1
      %s336 = smul.addr %s335, 4
      %s337 = scalar_lea.vmem %s8, %s336
      %p338 = scmp.lt.s32.totalorder %s19, 1
      %s339 = scalar_select %p338, %s19, 1
      %s340 = smul.addr %s339, 4
      %s341 = smul.addr %s340, 4
      %s342 = scalar_lea.vmem %s0, %s341
      %p343 = scmp.lt.s32.totalorder %s19, 1
      %s344 = scalar_select %p343, %s19, 1
      %s345 = smul.addr %s344, 8
      %s346 = smul.addr %s345, 4
      %s347 = scalar_lea.vmem %s1, %s346
      %p348 = scmp.lt.s32.totalorder %s19, 1
      %s349 = scalar_select %p348, %s19, 1
      %s350 = smul.addr %s349, 8
      %s351 = smul.addr %s350, 4
      %s352 = scalar_lea.vmem %s2, %s351
      %p353 = scmp.lt.s32.totalorder %s19, 1
      %s354 = scalar_select %p353, %s19, 1
      %s355 = smul.addr %s354, 4
      %s356 = scalar_lea.vmem %s3, %s355
      %p357 = scmp.lt.s32.totalorder %s19, 1
      %s358 = scalar_select %p357, %s19, 1
      %s359 = smul.addr %s358, 4
      %s360 = scalar_lea.vmem %s8, %s359
      %v362 = vld [vmem:[%s342] sm:$0xf]
      %v363 = vld [vmem:[%s342 + $0x4] sm:$0xf]
      %v364 = vld [vmem:[%s342 + $0x8] sm:$0xf]
      %v365 = vld [vmem:[%s342 + $0xc] sm:$0xf]
      %v366 = vld [vmem:[%s347] sm:$0xf]
      %v367 = vld [vmem:[%s347 + $0x4] sm:$0xf]
      %v368 = vld [vmem:[%s347 + $0x8] sm:$0xf]
      %v369 = vld [vmem:[%s347 + $0xc] sm:$0xf]
      %v370 = vld [vmem:[%s347 + $0x10] sm:$0xf]
      %v371 = vld [vmem:[%s347 + $0x14] sm:$0xf]
      %v372 = vld [vmem:[%s347 + $0x18] sm:$0xf]
      %v373 = vld [vmem:[%s347 + $0x1c] sm:$0xf]
      %v374 = vld [vmem:[%s352] sm:$0xf]
      %v375 = vld [vmem:[%s352 + $0x4] sm:$0xf]
      %v376 = vld [vmem:[%s352 + $0x8] sm:$0xf]
      %v377 = vld [vmem:[%s352 + $0xc] sm:$0xf]
      %v378 = vld [vmem:[%s352 + $0x10] sm:$0xf]
      %v379 = vld [vmem:[%s352 + $0x14] sm:$0xf]
      %v380 = vld [vmem:[%s352 + $0x18] sm:$0xf]
      %v381 = vld [vmem:[%s352 + $0x1c] sm:$0xf]
      %v382 = vld [vmem:[%s5] sm:$0x1]
      %v383 = vld [vmem:[%s356] sm:$0xf]
      %v384 = vld [vmem:[%s6] sm:$0x1]
      %v385 = vld [vmem:[%s7] sm:$0x1]
      %v388 = vunpack.c.l.b16 %v366
      %v389 = vunpack.c.l.b16 %v367
      %v390 = vpack.c.b16 %v389, %v388
      %vm391 = vcmask 64512
      %v393 = vsel %vm391, %v362, 0
      %v396 = vsel %vm391, %v390, 0
      %398 = vmatpush.bf16.xpose.msra.mxu0 0
      %399 = vmatpush.bf16.xpose.msra.mxu0 0
      %400 = vmatpush.bf16.xpose.msra.mxu0 0
      %401 = vmatpush.bf16.xpose.msra.mxu0 0
      %402 = vmatpush.bf16.xpose.msra.mxu0 0
      %403 = vmatpush.bf16.xpose.msra.mxu0 0
      %404 = vmatpush.bf16.xpose.msra.mxu0 0
      %405 = vmatpush.bf16.xpose.msra.mxu0 %v396
      %406 = vmatmul.bf16.gmra.mxu0 %v393
      %v407 = vpop.f32.mrf.mxu0
      %v408 = vadd.f32 0.0, %v407
      %v409 = vpop.f32.mrf.mxu0
      %410 = vdwg.mxu0
      %v413 = vunpack.c.l.b16 %v368
      %v414 = vunpack.c.l.b16 %v369
      %v415 = vpack.c.b16 %v414, %v413
      %v417 = vsel %vm391, %v363, 0
      %v420 = vsel %vm391, %v415, 0
      %422 = vmatpush.bf16.xpose.msra.mxu0 0
      %423 = vmatpush.bf16.xpose.msra.mxu0 0
      %424 = vmatpush.bf16.xpose.msra.mxu0 0
      %425 = vmatpush.bf16.xpose.msra.mxu0 0
      %426 = vmatpush.bf16.xpose.msra.mxu0 0
      %427 = vmatpush.bf16.xpose.msra.mxu0 0
      %428 = vmatpush.bf16.xpose.msra.mxu0 0
      %429 = vmatpush.bf16.xpose.msra.mxu0 %v420
      %430 = vmatmul.bf16.gmra.mxu0 %v417
      %v431 = vpop.f32.mrf.mxu0
      %v432 = vadd.f32 0.0, %v431
      %v433 = vpop.f32.mrf.mxu0
      %434 = vdwg.mxu0
      %v437 = vunpack.c.l.b16 %v370
      %v438 = vunpack.c.l.b16 %v371
      %v439 = vpack.c.b16 %v438, %v437
      %v441 = vsel %vm391, %v364, 0
      %v444 = vsel %vm391, %v439, 0
      %446 = vmatpush.bf16.xpose.msra.mxu0 0
      %447 = vmatpush.bf16.xpose.msra.mxu0 0
      %448 = vmatpush.bf16.xpose.msra.mxu0 0
      %449 = vmatpush.bf16.xpose.msra.mxu0 0
      %450 = vmatpush.bf16.xpose.msra.mxu0 0
      %451 = vmatpush.bf16.xpose.msra.mxu0 0
      %452 = vmatpush.bf16.xpose.msra.mxu0 0
      %453 = vmatpush.bf16.xpose.msra.mxu0 %v444
      %454 = vmatmul.bf16.gmra.mxu0 %v441
      %v455 = vpop.f32.mrf.mxu0
      %v456 = vadd.f32 0.0, %v455
      %v457 = vpop.f32.mrf.mxu0
      %458 = vdwg.mxu0
      %v461 = vunpack.c.l.b16 %v372
      %v462 = vunpack.c.l.b16 %v373
      %v463 = vpack.c.b16 %v462, %v461
      %v465 = vsel %vm391, %v365, 0
      %v468 = vsel %vm391, %v463, 0
      %470 = vmatpush.bf16.xpose.msra.mxu0 0
      %471 = vmatpush.bf16.xpose.msra.mxu0 0
      %472 = vmatpush.bf16.xpose.msra.mxu0 0
      %473 = vmatpush.bf16.xpose.msra.mxu0 0
      %474 = vmatpush.bf16.xpose.msra.mxu0 0
      %475 = vmatpush.bf16.xpose.msra.mxu0 0
      %476 = vmatpush.bf16.xpose.msra.mxu0 0
      %477 = vmatpush.bf16.xpose.msra.mxu0 %v468
      %478 = vmatmul.bf16.gmra.mxu0 %v465
      %v479 = vpop.f32.mrf.mxu0
      %v480 = vadd.f32 0.0, %v479
      %v481 = vpop.f32.mrf.mxu0
      %482 = vdwg.mxu0
      %v483 = vmul.f32 %v408, 0.35355338
      %v484 = vmul.f32 %v432, 0.35355338
      %v485 = vmul.f32 %v456, 0.35355338
      %v486 = vmul.f32 %v480, 0.35355338
      %vm487 = vcmask 130048
      %v488 = vsel %vm487, %v483, -inf
      %489 = vmax.xlane.f32.xlu0 %v488
      %v490 = vpop.xlane.xlu0 %489
      %v491 = vsel %vm487, %v484, -inf
      %492 = vmax.xlane.f32.xlu0 %v491
      %v493 = vpop.xlane.xlu0 %492
      %v494 = vsel %vm487, %v485, -inf
      %495 = vmax.xlane.f32.xlu0 %v494
      %v496 = vpop.xlane.xlu0 %495
      %v497 = vsel %vm487, %v486, -inf
      %498 = vmax.xlane.f32.xlu0 %v497
      %v499 = vpop.xlane.xlu0 %498
      %v500 = vsub.f32 %v483, %v490
      %v501 = vsub.f32 %v484, %v493
      %v502 = vsub.f32 %v485, %v496
      %v503 = vsub.f32 %v486, %v499
      %v504 = vmul.f32 %v500, 1.442695
      %v505 = vpow.pop %v504
      %v506 = vmul.f32 %v501, 1.442695
      %v507 = vpow.pop %v506
      %v508 = vmul.f32 %v502, 1.442695
      %v509 = vpow.pop %v508
      %v510 = vmul.f32 %v503, 1.442695
      %v511 = vpow.pop %v510
      %v512 = vsel %vm487, %v505, 0.0
      %513 = vadd.xlane.f32.xlu0 %v512
      %v514 = vpop.xlane.xlu0 %513
      %v515 = vsel %vm487, %v507, 0.0
      %516 = vadd.xlane.f32.xlu0 %v515
      %v517 = vpop.xlane.xlu0 %516
      %v518 = vsel %vm487, %v509, 0.0
      %519 = vadd.xlane.f32.xlu0 %v518
      %v520 = vpop.xlane.xlu0 %519
      %v521 = vsel %vm487, %v511, 0.0
      %522 = vadd.xlane.f32.xlu0 %v521
      %v523 = vpop.xlane.xlu0 %522
      %v524 = vrcp.pop %v514
      %v525 = vrcp.pop %v517
      %v526 = vrcp.pop %v520
      %v527 = vrcp.pop %v523
      %v528 = vmul.f32 %v505, %v524
      %v529 = vmul.f32 %v507, %v525
      %v530 = vmul.f32 %v509, %v526
      %v531 = vmul.f32 %v511, %v527
      %v532 = vpack.c.bf16 %v528, %v528
      %v533 = vpack.c.bf16 %v529, %v529
      %v534 = vpack.c.bf16 %v530, %v530
      %v535 = vpack.c.bf16 %v531, %v531
      %v538 = vunpack.c.l.b16 %v374
      %v539 = vunpack.c.l.b16 %v375
      %v540 = vpack.c.b16 %v539, %v538
      %v543 = vsel %vm487, %v532, 0
      %545 = vmatpush.bf16.msra.mxu0 0
      %546 = vmatpush.bf16.msra.mxu0 0
      %547 = vmatpush.bf16.msra.mxu0 0
      %548 = vmatpush.bf16.msra.mxu0 0
      %549 = vmatpush.bf16.msra.mxu0 0
      %550 = vmatpush.bf16.msra.mxu0 0
      %551 = vmatpush.bf16.msra.mxu0 0
      %552 = vmatpush.bf16.msra.mxu0 %v540
      %553 = vmatmul.bf16.gmra.mxu0 %v543
      %v554 = vpop.f32.mrf.mxu0
      %v555 = vadd.f32 0.0, %v554
      %v556 = vpop.f32.mrf.mxu0
      %557 = vdwg.mxu0
      %v560 = vunpack.c.l.b16 %v376
      %v561 = vunpack.c.l.b16 %v377
      %v562 = vpack.c.b16 %v561, %v560
      %v565 = vsel %vm487, %v533, 0
      %567 = vmatpush.bf16.msra.mxu0 0
      %568 = vmatpush.bf16.msra.mxu0 0
      %569 = vmatpush.bf16.msra.mxu0 0
      %570 = vmatpush.bf16.msra.mxu0 0
      %571 = vmatpush.bf16.msra.mxu0 0
      %572 = vmatpush.bf16.msra.mxu0 0
      %573 = vmatpush.bf16.msra.mxu0 0
      %574 = vmatpush.bf16.msra.mxu0 %v562
      %575 = vmatmul.bf16.gmra.mxu0 %v565
      %v576 = vpop.f32.mrf.mxu0
      %v577 = vadd.f32 0.0, %v576
      %v578 = vpop.f32.mrf.mxu0
      %579 = vdwg.mxu0
      %v582 = vunpack.c.l.b16 %v378
      %v583 = vunpack.c.l.b16 %v379
      %v584 = vpack.c.b16 %v583, %v582
      %v587 = vsel %vm487, %v534, 0
      %589 = vmatpush.bf16.msra.mxu0 0
      %590 = vmatpush.bf16.msra.mxu0 0
      %591 = vmatpush.bf16.msra.mxu0 0
      %592 = vmatpush.bf16.msra.mxu0 0
      %593 = vmatpush.bf16.msra.mxu0 0
      %594 = vmatpush.bf16.msra.mxu0 0
      %595 = vmatpush.bf16.msra.mxu0 0
      %596 = vmatpush.bf16.msra.mxu0 %v584
      %597 = vmatmul.bf16.gmra.mxu0 %v587
      %v598 = vpop.f32.mrf.mxu0
      %v599 = vadd.f32 0.0, %v598
      %v600 = vpop.f32.mrf.mxu0
      %601 = vdwg.mxu0
      %v604 = vunpack.c.l.b16 %v380
      %v605 = vunpack.c.l.b16 %v381
      %v606 = vpack.c.b16 %v605, %v604
      %v609 = vsel %vm487, %v535, 0
      %611 = vmatpush.bf16.msra.mxu0 0
      %612 = vmatpush.bf16.msra.mxu0 0
      %613 = vmatpush.bf16.msra.mxu0 0
      %614 = vmatpush.bf16.msra.mxu0 0
      %615 = vmatpush.bf16.msra.mxu0 0
      %616 = vmatpush.bf16.msra.mxu0 0
      %617 = vmatpush.bf16.msra.mxu0 0
      %618 = vmatpush.bf16.msra.mxu0 %v606
      %619 = vmatmul.bf16.gmra.mxu0 %v609
      %v620 = vpop.f32.mrf.mxu0
      %v621 = vadd.f32 0.0, %v620
      %v622 = vpop.f32.mrf.mxu0
      %623 = vdwg.mxu0
      %v624 = vpack.c.bf16 %v555, %v555
      %v625 = vld [vmem:[%s4] sm:$0xf]
      %v626 = vpack.c.bf16 %v577, %v577
      %s627 = scalar_lea.vmem %s4, 4
      %v628 = vld [vmem:[%s627] sm:$0xf]
      %v630 = vsel %vm391, %v626, 0
      %vm632 = vcmask 1043456
      %v634 = vsel %vm632, %v628, 0
      %636 = vmatpush.bf16.msra.mxu0 0
      %637 = vmatpush.bf16.msra.mxu0 0
      %638 = vmatpush.bf16.msra.mxu0 0
      %639 = vmatpush.bf16.msra.mxu0 0
      %640 = vmatpush.bf16.msra.mxu0 0
      %641 = vmatpush.bf16.msra.mxu0 0
      %642 = vmatpush.bf16.msra.mxu0 0
      %643 = vmatpush.bf16.msra.mxu0 %v634
      %644 = vmatmul.bf16.gmra.mxu0 %v630
      %v645 = vpop.f32.mrf.mxu0
      %v646 = vadd.f32 0.0, %v645
      %v647 = vpop.f32.mrf.mxu0
      %648 = vdwg.mxu0
      %v650 = vsel %vm391, %v624, 0
      %v653 = vsel %vm632, %v625, 0
      %655 = vmatpush.bf16.msra.mxu0 0
      %656 = vmatpush.bf16.msra.mxu0 0
      %657 = vmatpush.bf16.msra.mxu0 0
      %658 = vmatpush.bf16.msra.mxu0 0
      %659 = vmatpush.bf16.msra.mxu0 0
      %660 = vmatpush.bf16.msra.mxu0 0
      %661 = vmatpush.bf16.msra.mxu0 0
      %662 = vmatpush.bf16.msra.mxu0 %v653
      %663 = vmatmul.bf16.gmra.mxu0 %v650
      %v664 = vpop.f32.mrf.mxu0
      %v665 = vadd.f32 %v646, %v664
      %v666 = vpop.f32.mrf.mxu0
      %667 = vdwg.mxu0
      %v668 = vpack.c.bf16 %v599, %v599
      %s669 = scalar_lea.vmem %s4, 8
      %v670 = vld [vmem:[%s669] sm:$0xf]
      %v672 = vsel %vm391, %v668, 0
      %v675 = vsel %vm632, %v670, 0
      %677 = vmatpush.bf16.msra.mxu0 0
      %678 = vmatpush.bf16.msra.mxu0 0
      %679 = vmatpush.bf16.msra.mxu0 0
      %680 = vmatpush.bf16.msra.mxu0 0
      %681 = vmatpush.bf16.msra.mxu0 0
      %682 = vmatpush.bf16.msra.mxu0 0
      %683 = vmatpush.bf16.msra.mxu0 0
      %684 = vmatpush.bf16.msra.mxu0 %v675
      %685 = vmatmul.bf16.gmra.mxu0 %v672
      %v686 = vpop.f32.mrf.mxu0
      %v687 = vadd.f32 0.0, %v686
      %v688 = vpop.f32.mrf.mxu0
      %689 = vdwg.mxu0
      %v690 = vadd.f32 %v665, %v687
      %v691 = vpack.c.bf16 %v621, %v621
      %s692 = scalar_lea.vmem %s4, 12
      %v693 = vld [vmem:[%s692] sm:$0xf]
      %v695 = vsel %vm391, %v691, 0
      %v698 = vsel %vm632, %v693, 0
      %700 = vmatpush.bf16.msra.mxu0 0
      %701 = vmatpush.bf16.msra.mxu0 0
      %702 = vmatpush.bf16.msra.mxu0 0
      %703 = vmatpush.bf16.msra.mxu0 0
      %704 = vmatpush.bf16.msra.mxu0 0
      %705 = vmatpush.bf16.msra.mxu0 0
      %706 = vmatpush.bf16.msra.mxu0 0
      %707 = vmatpush.bf16.msra.mxu0 %v698
      %708 = vmatmul.bf16.gmra.mxu0 %v695
      %v709 = vpop.f32.mrf.mxu0
      %v710 = vadd.f32 0.0, %v709
      %v711 = vpop.f32.mrf.mxu0
      %712 = vdwg.mxu0
      %v713 = vadd.f32 %v690, %v710
      %v714 = vunpack.c.l.bf16 %v383
      %v715 = vadd.f32 %v714, %v713
      %v717 = vperm.slane %v382, 0
      %v719 = vadd.f32 %v715, %v717
      %vm720 = vcmask 261120
      %v721 = vsel %vm720, %v719, 0.0
      %722 = vadd.xlane.f32.xlu0 %v721
      %v723 = vpop.xlane.xlu0 %722
      %v724 = vrcp.pop 32.0
      %v725 = vmul.f32 32.0, %v724
      %v726 = vsub.f32 1.0, %v725
      %v727 = vmul.f32 %v724, %v726
      %v728 = vadd.f32 %v724, %v727
      %vm729 = vweird.f32 %v724
      %v730 = vsel %vm729, %v724, %v728
      %v731 = vmul.f32 %v723, %v730
      %v732 = vsub.f32 %v719, %v731
      %v733 = vmul.f32 %v732, %v732
      %v734 = vsel %vm720, %v733, 0.0
      %735 = vadd.xlane.f32.xlu0 %v734
      %v736 = vpop.xlane.xlu0 %735
      %v737 = vmul.f32 %v736, %v730
      %v738 = vadd.f32 %v737, 1e-05
      %v739 = vrsqrt.pop %v738
      %v740 = vmul.f32 %v739, %v738
      %v741 = vmul.f32 %v740, %v739
      %v742 = vmul.f32 0.5, %v741
      %v743 = vsub.f32 1.5, %v742
      %v744 = vmul.f32 %v739, %v743
      %vm745 = vweird.f32 %v738
      %vm746 = vweird.f32 %v739
      %vm747 = vmor %vm745, %vm746
      %v748 = vsel %vm747, %v739, %v744
      %v749 = vmul.f32 %v732, %v748
      %v751 = vperm.slane %v384, 0
      %v753 = vmul.f32 %v749, %v751
      %v755 = vperm.slane %v385, 0
      %v757 = vadd.f32 %v753, %v755
      %v758 = vpack.c.bf16 %v757, %v757
      %vm759 = vcmask 257024
      %760 = vst.msk [vmem:[%s360] sm:$0xf] %vm759, %v758
      %p761 = scmp.lt.s32.totalorder %s19, 1
      %s762 = scalar_select %p761, %s19, 1
      %s763 = smul.addr %s762, 4
      %s764 = scalar_lea.vmem %s8, %s763
      // Predicated region
      $region53: #{visual_transformer_forward.21} parent=51 // pred_check
        %p765 = pneg %p225
      $region54: #{visual_transformer_forward.21} parent=51 // pred_check_branch
        %767 = sbr.rel (%p765) target = $region56
      $region55: #{visual_transformer_forward.21} parent=51 // pred_region
        _
      $region56: #{visual_transformer_forward.21} parent=51 // pred_fallthru
        _
    $region52: #{visual_transformer_forward.21} parent=5 // pred_fallthru
      _
    %p768 = scmp.le.s32.totalorder 2, %s14
    // Predicated region
    $region57: #{visual_transformer_forward.21} parent=5 // pred_check
      %p769 = pneg %p768
    $region58: #{visual_transformer_forward.21} parent=5 // pred_check_branch
      %771 = sbr.rel (%p769) target = $region60
    $region59: #{visual_transformer_forward.21} parent=5 // pred_region
      %s772 = ssub.s32 %s14, 2
      // Predicated region
      $region61: #{visual_transformer_forward.21} parent=59 // pred_check
        %p773 = pneg %p231
      $region62: #{visual_transformer_forward.21} parent=59 // pred_check_branch
        %775 = sbr.rel (%p773) target = $region64
      $region63: #{visual_transformer_forward.21} parent=59 // pred_region
        %p776 = scmp.lt.s32.totalorder %s20, 1
        %s777 = scalar_select %p776, %s20, 1
        %s778 = smul.addr %s777, 4
        %s779 = scalar_lea.vmem %s8, %s778
      $region64: #{visual_transformer_forward.21} parent=59 // pred_fallthru
        _
    $region60: #{visual_transformer_forward.21} parent=5 // pred_fallthru
      _
  $region6: #{visual_transformer_forward.21} parent=0 // loop_footer
    %s18 = sadd.s32 1, %s14
  $region7: #{visual_transformer_forward.21} parent=0 // loop_footer_branch
    %13 = sbr.rel target = $region3
  $region8: #{visual_transformer_forward.21} parent=0 // loop_exit
    _

</llo_original>
